<compile_context>
chip_gen: v7x
topology: tpu7x:2x2x1
jax: 0.10.0
libtpu: 0.0.40
codegen_flags: <defaults>
</compile_context>

<pallas_src>
import functools

import jax
import jax.numpy as jnp
from jax.experimental import pallas as pl
from jax.experimental.pallas import tpu as pltpu


# --------------------------- model configuration ---------------------------

CFG = dict(
    P=16,        # args.window
    m=8,         # data[1] : number of series
    hidR=16,     # args.hidRNN
    hidC=16,     # args.hidCNN
    hidS=4,      # args.hidSkip
    Ck=4,        # args.CNN_kernel
    skip=2,      # args.skip
    hw=4,        # args.highway_window
    output_fun="sigmoid",
)
CFG["pt"] = (CFG["P"] - CFG["Ck"]) // CFG["skip"]


def init_params(key, cfg):
    m, hidR, hidC, hidS, Ck, skip, hw = (
        cfg["m"], cfg["hidR"], cfg["hidC"], cfg["hidS"], cfg["Ck"],
        cfg["skip"], cfg["hw"])
    ks = jax.random.split(key, 16)
    u = lambda k, shape: jax.random.uniform(k, shape, jnp.float32, -0.1, 0.1)
    return dict(
        conv_w=u(ks[0], (hidC, Ck, m)),          # torch (hidC, 1, Ck, m) squeezed
        conv_b=u(ks[1], (hidC,)),
        gru1_wih=u(ks[2], (3 * hidR, hidC)),
        gru1_whh=u(ks[3], (3 * hidR, hidR)),
        gru1_bih=u(ks[4], (3 * hidR,)),
        gru1_bhh=u(ks[5], (3 * hidR,)),
        grus_wih=u(ks[6], (3 * hidS, hidC)),
        grus_whh=u(ks[7], (3 * hidS, hidS)),
        grus_bih=u(ks[8], (3 * hidS,)),
        grus_bhh=u(ks[9], (3 * hidS,)),
        lin1_w=u(ks[10], (m, hidR + skip * hidS)),   # torch Linear weight layout
        lin1_b=u(ks[11], (m,)),
        hw_w=u(ks[12], (1, hw)),
        hw_b=u(ks[13], (1,)),
    )


# ----------------------------- fused Pallas kernel --------------------------

def _lstnet_kernel(x_ref, convw_ref, convb_ref,
                   wih1_ref, whh1_ref, bih1_ref, bhh1_ref,
                   wihs_ref, whhs_ref, bihs_ref, bhhs_ref,
                   lin1w_ref, lin1b_ref, hww_ref,
                   o_ref, *, B, P, m, Ck, hidC, hidR, hidS, skip, pt, hw, out_act):
    """Entire LSTNet forward in one VMEM-resident kernel invocation."""
    T = P - Ck + 1

    convw = convw_ref[...]          # (Ck*m, hidC)
    convb = convb_ref[...]          # (1, hidC)
    wih1 = wih1_ref[...]            # (hidC, 3*hidR)
    whh1 = whh1_ref[...]            # (hidR, 3*hidR)
    bih1 = bih1_ref[...]            # (1, 3*hidR)
    bhh1 = bhh1_ref[...]            # (1, 3*hidR)
    lin1w = lin1w_ref[...]          # (hidR + skip*hidS, m)
    lin1b = lin1b_ref[...]          # (1, m)   (highway bias pre-folded when hw > 0)

    gi1_list, gis_list, z_rows = [], [], []
    for b in range(B):
        xb = x_ref[b]                                                    # (P, m)
        # Conv2d(1, hidC, (Ck, m)) + ReLU as a single sliding-window matmul:
        # windows are built with static in-kernel slices (no wrapper im2col).
        xw = jnp.concatenate([xb[k:k + T, :] for k in range(Ck)], axis=1)  # (T, Ck*m)
        cb = jnp.maximum(
            jnp.dot(xw, convw, preferred_element_type=jnp.float32) + convb, 0.0)  # (T, hidC)

        # Time-independent GRU input projections, hoisted out of the recurrences.
        gi1_list.append(
            jnp.dot(cb, wih1, preferred_element_type=jnp.float32) + bih1)  # (T, 3*hidR)
        if skip > 0:
            cs = cb[T - pt * skip:, :]                                     # (pt*skip, hidC)
            gis_list.append(
                jnp.dot(cs, wihs_ref[...], preferred_element_type=jnp.float32)
                + bihs_ref[...])                                           # (pt*skip, 3*hidS)
        if hw > 0:
            # Highway Linear(hw, 1) folded in as a (1, hw) @ (hw, m) matmul.
            z_rows.append(
                jnp.dot(hww_ref[...], xb[P - hw:, :],
                        preferred_element_type=jnp.float32))               # (1, m)

    def gru_step(gi, h, whh, bhh, H):
        # PyTorch GRU gate ordering: [reset, update, new]; b_hn stays inside r*(...).
        gh = jnp.dot(h, whh, preferred_element_type=jnp.float32) + bhh
        r = jax.nn.sigmoid(gi[:, 0:H] + gh[:, 0:H])
        z = jax.nn.sigmoid(gi[:, H:2 * H] + gh[:, H:2 * H])
        n = jnp.tanh(gi[:, 2 * H:3 * H] + r * gh[:, 2 * H:3 * H])
        return (1.0 - z) * n + z * h

    # GRU1 recurrence, fully unrolled (T static); only h @ W_hh remains serial.
    h1 = jnp.zeros((B, hidR), jnp.float32)
    for t in range(T):
        gi_t = jnp.concatenate([gi1_list[b][t:t + 1, :] for b in range(B)], axis=0)
        h1 = gru_step(gi_t, h1, whh1, bhh1, hidR)

    r_feat = h1
    if skip > 0:
        whhs = whhs_ref[...]
        bhhs = bhhs_ref[...]
        hs = jnp.zeros((B * skip, hidS), jnp.float32)
        for p in range(pt):
            # Row n = b*skip + j feeds c[b, T - pt*skip + p*skip + j, :] (torch view order).
            gi_p = jnp.concatenate(
                [gis_list[b][p * skip:(p + 1) * skip, :] for b in range(B)], axis=0)
            hs = gru_step(gi_p, hs, whhs, bhhs, hidS)
        # (B*skip, hidS) -> (B, skip*hidS) with torch's .view row ordering.
        s_rows = [
            jnp.concatenate(
                [hs[b * skip + j:b * skip + j + 1, :] for j in range(skip)], axis=1)
            for b in range(B)]
        s_flat = jnp.concatenate(s_rows, axis=0)                           # (B, skip*hidS)
        r_feat = jnp.concatenate([h1, s_flat], axis=1)

    # linear1 + highway add + output activation, single lane-dense write.
    res = jnp.dot(r_feat, lin1w, preferred_element_type=jnp.float32) + lin1b
    if hw > 0:
        res = res + jnp.concatenate(z_rows, axis=0)
    if out_act == "sigmoid":
        res = jax.nn.sigmoid(res)
    elif out_act == "tanh":
        res = jnp.tanh(res)
    o_ref[...] = res.astype(o_ref.dtype)


# ------------------------------ wrappers ------------------------------------

def prepare_params(params, cfg):
    """Pre-arrange weights once (transposes / reshapes / bias folding) so no
    per-call XLA ops are needed outside the single fused kernel."""
    m, hidC, hidR, hidS, Ck, skip, hw = (
        cfg["m"], cfg["hidC"], cfg["hidR"], cfg["hidS"], cfg["Ck"],
        cfg["skip"], cfg["hw"])
    f32 = lambda a: jnp.asarray(a, jnp.float32)

    convw = f32(params["conv_w"]).reshape(hidC, Ck * m).T          # (Ck*m, hidC)
    convb = f32(params["conv_b"]).reshape(1, hidC)

    wih1 = f32(params["gru1_wih"]).T                               # (hidC, 3*hidR)
    whh1 = f32(params["gru1_whh"]).T                               # (hidR, 3*hidR)
    bih1 = f32(params["gru1_bih"]).reshape(1, 3 * hidR)
    bhh1 = f32(params["gru1_bhh"]).reshape(1, 3 * hidR)

    if skip > 0:
        wihs = f32(params["grus_wih"]).T                           # (hidC, 3*hidS)
        whhs = f32(params["grus_whh"]).T                           # (hidS, 3*hidS)
        bihs = f32(params["grus_bih"]).reshape(1, 3 * hidS)
        bhhs = f32(params["grus_bhh"]).reshape(1, 3 * hidS)
    else:
        wihs = jnp.zeros((hidC, 3 * hidS), jnp.float32)
        whhs = jnp.zeros((hidS, 3 * hidS), jnp.float32)
        bihs = jnp.zeros((1, 3 * hidS), jnp.float32)
        bhhs = jnp.zeros((1, 3 * hidS), jnp.float32)

    lin1w = f32(params["lin1_w"]).T                                # (K, m)
    lin1b = f32(params["lin1_b"]).reshape(1, m)
    if hw > 0:
        lin1b = lin1b + f32(params["hw_b"]).reshape(1, 1)          # fold highway bias
        hww = f32(params["hw_w"]).reshape(1, hw)
    else:
        hww = jnp.zeros((1, 1), jnp.float32)

    return (convw, convb, wih1, whh1, bih1, bhh1,
            wihs, whhs, bihs, bhhs, lin1w, lin1b, hww)


def forward_pallas(prep, x, cfg):
    B, P, m = x.shape
    kern = functools.partial(
        _lstnet_kernel,
        B=B, P=P, m=m, Ck=cfg["Ck"], hidC=cfg["hidC"], hidR=cfg["hidR"],
        hidS=cfg["hidS"], skip=cfg["skip"], pt=cfg["pt"], hw=cfg["hw"],
        out_act=cfg["output_fun"])
    n_in = 1 + len(prep)
    return pl.pallas_call(
        kern,
        out_shape=jax.ShapeDtypeStruct((B, m), jnp.float32),
        in_specs=[pl.BlockSpec(memory_space=pltpu.MemorySpace.VMEM)] * n_in,
        out_specs=pl.BlockSpec(memory_space=pltpu.MemorySpace.VMEM),
    )(x.astype(jnp.float32), *prep)
    # TODO(synk): for large B, add a "parallel" batch grid axis so v7x's two
    # TensorCores split the batch; unnecessary at these toy shapes.


# -------------------------- pure-JAX reference -------------------------------

def _gru_ref(seq, w_ih, w_hh, b_ih, b_hh):
    T, N, _ = seq.shape
    H = w_hh.shape[1]
    h = jnp.zeros((N, H), jnp.float32)
    for t in range(T):
        gi = seq[t] @ w_ih.T + b_ih
        gh = h @ w_hh.T + b_hh
        r = jax.nn.sigmoid(gi[:, :H] + gh[:, :H])
        z = jax.nn.sigmoid(gi[:, H:2 * H] + gh[:, H:2 * H])
        n = jnp.tanh(gi[:, 2 * H:] + r * gh[:, 2 * H:])
        h = (1.0 - z) * n + z * h
    return h


def forward_ref(params, x, cfg):
    B, P, m = x.shape
    Ck, hidC, hidS, skip, pt, hw = (cfg["Ck"], cfg["hidC"], cfg["hidS"],
                                    cfg["skip"], cfg["pt"], cfg["hw"])
    T = P - Ck + 1
    xw = jnp.stack([x[:, k:k + T, :] for k in range(Ck)], axis=2).reshape(B * T, Ck * m)
    c = jnp.maximum(xw @ params["conv_w"].reshape(hidC, Ck * m).T + params["conv_b"], 0.0)
    c = c.reshape(B, T, hidC)
    r = _gru_ref(jnp.transpose(c, (1, 0, 2)), params["gru1_wih"], params["gru1_whh"],
                 params["gru1_bih"], params["gru1_bhh"])
    if skip > 0:
        s = c[:, T - pt * skip:, :].reshape(B, pt, skip, hidC)
        s = jnp.transpose(s, (1, 0, 2, 3)).reshape(pt, B * skip, hidC)
        s = _gru_ref(s, params["grus_wih"], params["grus_whh"],
                     params["grus_bih"], params["grus_bhh"]).reshape(B, skip * hidS)
        r = jnp.concatenate([r, s], axis=1)
    res = r @ params["lin1_w"].T + params["lin1_b"]
    if hw > 0:
        z = jnp.transpose(x[:, P - hw:, :], (0, 2, 1)).reshape(B * m, hw)
        z = (z @ params["hw_w"].T + params["hw_b"]).reshape(B, m)
        res = res + z
    if cfg["output_fun"] == "sigmoid":
        res = jax.nn.sigmoid(res)
    elif cfg["output_fun"] == "tanh":
        res = jnp.tanh(res)
    return res


# ---------------------------------- main ------------------------------------

if __name__ == "__main__":
    key = jax.random.PRNGKey(0)
    kx, kp = jax.random.split(key)

    B = 2
    x = jax.random.normal(kx, (B, CFG["P"], CFG["m"]), jnp.float32)
    params = init_params(kp, CFG)
    prep = prepare_params(params, CFG)

    out = forward_pallas(prep, x, CFG)
    out = jax.block_until_ready(out)

    ref = forward_ref(params, x, CFG)
    assert out.shape == (B, CFG["m"]), out.shape
    assert jnp.allclose(out, ref, atol=1e-4, rtol=1e-4), (
        f"mismatch: max abs err {jnp.max(jnp.abs(out - ref))}")

    print("KERNEL_OK")
</pallas_src>

<mosaic_0001>
module attributes {stable_mosaic.version = 11 : i64} {
  func.func @_lstnet_kernel(%arg0: memref<2x16x8xf32, #tpu.memory_space<vmem>>, %arg1: memref<32x16xf32, #tpu.memory_space<vmem>>, %arg2: memref<1x16xf32, #tpu.memory_space<vmem>>, %arg3: memref<16x48xf32, #tpu.memory_space<vmem>>, %arg4: memref<16x48xf32, #tpu.memory_space<vmem>>, %arg5: memref<1x48xf32, #tpu.memory_space<vmem>>, %arg6: memref<1x48xf32, #tpu.memory_space<vmem>>, %arg7: memref<16x12xf32, #tpu.memory_space<vmem>>, %arg8: memref<4x12xf32, #tpu.memory_space<vmem>>, %arg9: memref<1x12xf32, #tpu.memory_space<vmem>>, %arg10: memref<1x12xf32, #tpu.memory_space<vmem>>, %arg11: memref<24x8xf32, #tpu.memory_space<vmem>>, %arg12: memref<1x8xf32, #tpu.memory_space<vmem>>, %arg13: memref<1x4xf32, #tpu.memory_space<vmem>>, %arg14: memref<2x8xf32, #tpu.memory_space<vmem>>) attributes {dimension_semantics = [], scalar_prefetch = 0 : i64, scratch_operands = 0 : i64, tpu.core_type = #tpu.core_type<tc>} {
    %c0 = arith.constant 0 : index
    %c0_0 = arith.constant 0 : index
    %0 = vector.load %arg1[%c0, %c0_0] : memref<32x16xf32, #tpu.memory_space<vmem>>, vector<32x16xf32>
    %c0_1 = arith.constant 0 : index
    %c0_2 = arith.constant 0 : index
    %1 = vector.load %arg2[%c0_1, %c0_2] : memref<1x16xf32, #tpu.memory_space<vmem>>, vector<1x16xf32>
    %c0_3 = arith.constant 0 : index
    %c0_4 = arith.constant 0 : index
    %2 = vector.load %arg3[%c0_3, %c0_4] : memref<16x48xf32, #tpu.memory_space<vmem>>, vector<16x48xf32>
    %c0_5 = arith.constant 0 : index
    %c0_6 = arith.constant 0 : index
    %3 = vector.load %arg4[%c0_5, %c0_6] : memref<16x48xf32, #tpu.memory_space<vmem>>, vector<16x48xf32>
    %c0_7 = arith.constant 0 : index
    %c0_8 = arith.constant 0 : index
    %4 = vector.load %arg5[%c0_7, %c0_8] : memref<1x48xf32, #tpu.memory_space<vmem>>, vector<1x48xf32>
    %c0_9 = arith.constant 0 : index
    %c0_10 = arith.constant 0 : index
    %5 = vector.load %arg6[%c0_9, %c0_10] : memref<1x48xf32, #tpu.memory_space<vmem>>, vector<1x48xf32>
    %c0_11 = arith.constant 0 : index
    %c0_12 = arith.constant 0 : index
    %6 = vector.load %arg11[%c0_11, %c0_12] : memref<24x8xf32, #tpu.memory_space<vmem>>, vector<24x8xf32>
    %c0_13 = arith.constant 0 : index
    %c0_14 = arith.constant 0 : index
    %7 = vector.load %arg12[%c0_13, %c0_14] : memref<1x8xf32, #tpu.memory_space<vmem>>, vector<1x8xf32>
    %c0_15 = arith.constant 0 : index
    %c0_16 = arith.constant 0 : index
    %c0_17 = arith.constant 0 : index
    %8 = vector.load %arg0[%c0_15, %c0_16, %c0_17] : memref<2x16x8xf32, #tpu.memory_space<vmem>>, vector<1x16x8xf32>
    %9 = vector.shape_cast %8 : vector<1x16x8xf32> to vector<16x8xf32>
    %10 = vector.extract_strided_slice %9 {offsets = [0, 0], sizes = [13, 8], strides = [1, 1]} : vector<16x8xf32> to vector<13x8xf32>
    %11 = vector.extract_strided_slice %9 {offsets = [1, 0], sizes = [13, 8], strides = [1, 1]} : vector<16x8xf32> to vector<13x8xf32>
    %12 = vector.extract_strided_slice %9 {offsets = [2, 0], sizes = [13, 8], strides = [1, 1]} : vector<16x8xf32> to vector<13x8xf32>
    %13 = vector.extract_strided_slice %9 {offsets = [3, 0], sizes = [13, 8], strides = [1, 1]} : vector<16x8xf32> to vector<13x8xf32>
    %14 = tpu.concatenate %10, %11, %12, %13 in 1 : vector<13x8xf32>, vector<13x8xf32>, vector<13x8xf32>, vector<13x8xf32> -> vector<13x32xf32>
    %cst = arith.constant dense<0.000000e+00> : vector<13x16xf32>
    %15 = tpu.matmul %14, %0, %cst {dimension_numbers = #tpu.dot_dimension_numbers<[1], [0], [0], [1], [0, 0, 1, 1], [], []>} : vector<13x32xf32>, vector<32x16xf32>, vector<13x16xf32> -> vector<13x16xf32>
    %16 = vector.broadcast %1 : vector<1x16xf32> to vector<13x16xf32>
    %17 = arith.addf %15, %16 : vector<13x16xf32>
    %cst_18 = arith.constant 0.000000e+00 : f32
    %18 = vector.broadcast %cst_18 : f32 to vector<13x16xf32>
    %19 = arith.maximumf %17, %18 : vector<13x16xf32>
    %cst_19 = arith.constant dense<0.000000e+00> : vector<13x48xf32>
    %20 = tpu.matmul %19, %2, %cst_19 {dimension_numbers = #tpu.dot_dimension_numbers<[1], [0], [0], [1], [0, 0, 1, 1], [], []>} : vector<13x16xf32>, vector<16x48xf32>, vector<13x48xf32> -> vector<13x48xf32>
    %21 = vector.broadcast %4 : vector<1x48xf32> to vector<13x48xf32>
    %22 = arith.addf %20, %21 : vector<13x48xf32>
    %23 = vector.extract_strided_slice %19 {offsets = [1, 0], sizes = [12, 16], strides = [1, 1]} : vector<13x16xf32> to vector<12x16xf32>
    %c0_20 = arith.constant 0 : index
    %c0_21 = arith.constant 0 : index
    %24 = vector.load %arg7[%c0_20, %c0_21] : memref<16x12xf32, #tpu.memory_space<vmem>>, vector<16x12xf32>
    %cst_22 = arith.constant dense<0.000000e+00> : vector<12x12xf32>
    %25 = tpu.matmul %23, %24, %cst_22 {dimension_numbers = #tpu.dot_dimension_numbers<[1], [0], [0], [1], [0, 0, 1, 1], [], []>} : vector<12x16xf32>, vector<16x12xf32>, vector<12x12xf32> -> vector<12x12xf32>
    %c0_23 = arith.constant 0 : index
    %c0_24 = arith.constant 0 : index
    %26 = vector.load %arg9[%c0_23, %c0_24] : memref<1x12xf32, #tpu.memory_space<vmem>>, vector<1x12xf32>
    %27 = vector.broadcast %26 : vector<1x12xf32> to vector<12x12xf32>
    %28 = arith.addf %25, %27 : vector<12x12xf32>
    %c0_25 = arith.constant 0 : index
    %c0_26 = arith.constant 0 : index
    %29 = vector.load %arg13[%c0_25, %c0_26] : memref<1x4xf32, #tpu.memory_space<vmem>>, vector<1x4xf32>
    %30 = vector.extract_strided_slice %9 {offsets = [12, 0], sizes = [4, 8], strides = [1, 1]} : vector<16x8xf32> to vector<4x8xf32>
    %cst_27 = arith.constant dense<0.000000e+00> : vector<1x8xf32>
    %31 = tpu.matmul %29, %30, %cst_27 {dimension_numbers = #tpu.dot_dimension_numbers<[1], [0], [0], [1], [0, 0, 1, 1], [], []>} : vector<1x4xf32>, vector<4x8xf32>, vector<1x8xf32> -> vector<1x8xf32>
    %c1 = arith.constant 1 : index
    %c0_28 = arith.constant 0 : index
    %c0_29 = arith.constant 0 : index
    %32 = vector.load %arg0[%c1, %c0_28, %c0_29] : memref<2x16x8xf32, #tpu.memory_space<vmem>>, vector<1x16x8xf32>
    %33 = vector.shape_cast %32 : vector<1x16x8xf32> to vector<16x8xf32>
    %34 = vector.extract_strided_slice %33 {offsets = [0, 0], sizes = [13, 8], strides = [1, 1]} : vector<16x8xf32> to vector<13x8xf32>
    %35 = vector.extract_strided_slice %33 {offsets = [1, 0], sizes = [13, 8], strides = [1, 1]} : vector<16x8xf32> to vector<13x8xf32>
    %36 = vector.extract_strided_slice %33 {offsets = [2, 0], sizes = [13, 8], strides = [1, 1]} : vector<16x8xf32> to vector<13x8xf32>
    %37 = vector.extract_strided_slice %33 {offsets = [3, 0], sizes = [13, 8], strides = [1, 1]} : vector<16x8xf32> to vector<13x8xf32>
    %38 = tpu.concatenate %34, %35, %36, %37 in 1 : vector<13x8xf32>, vector<13x8xf32>, vector<13x8xf32>, vector<13x8xf32> -> vector<13x32xf32>
    %cst_30 = arith.constant dense<0.000000e+00> : vector<13x16xf32>
    %39 = tpu.matmul %38, %0, %cst_30 {dimension_numbers = #tpu.dot_dimension_numbers<[1], [0], [0], [1], [0, 0, 1, 1], [], []>} : vector<13x32xf32>, vector<32x16xf32>, vector<13x16xf32> -> vector<13x16xf32>
    %40 = vector.broadcast %1 : vector<1x16xf32> to vector<13x16xf32>
    %41 = arith.addf %39, %40 : vector<13x16xf32>
    %cst_31 = arith.constant 0.000000e+00 : f32
    %42 = vector.broadcast %cst_31 : f32 to vector<13x16xf32>
    %43 = arith.maximumf %41, %42 : vector<13x16xf32>
    %cst_32 = arith.constant dense<0.000000e+00> : vector<13x48xf32>
    %44 = tpu.matmul %43, %2, %cst_32 {dimension_numbers = #tpu.dot_dimension_numbers<[1], [0], [0], [1], [0, 0, 1, 1], [], []>} : vector<13x16xf32>, vector<16x48xf32>, vector<13x48xf32> -> vector<13x48xf32>
    %45 = vector.broadcast %4 : vector<1x48xf32> to vector<13x48xf32>
    %46 = arith.addf %44, %45 : vector<13x48xf32>
    %47 = vector.extract_strided_slice %43 {offsets = [1, 0], sizes = [12, 16], strides = [1, 1]} : vector<13x16xf32> to vector<12x16xf32>
    %c0_33 = arith.constant 0 : index
    %c0_34 = arith.constant 0 : index
    %48 = vector.load %arg7[%c0_33, %c0_34] : memref<16x12xf32, #tpu.memory_space<vmem>>, vector<16x12xf32>
    %cst_35 = arith.constant dense<0.000000e+00> : vector<12x12xf32>
    %49 = tpu.matmul %47, %48, %cst_35 {dimension_numbers = #tpu.dot_dimension_numbers<[1], [0], [0], [1], [0, 0, 1, 1], [], []>} : vector<12x16xf32>, vector<16x12xf32>, vector<12x12xf32> -> vector<12x12xf32>
    %c0_36 = arith.constant 0 : index
    %c0_37 = arith.constant 0 : index
    %50 = vector.load %arg9[%c0_36, %c0_37] : memref<1x12xf32, #tpu.memory_space<vmem>>, vector<1x12xf32>
    %51 = vector.broadcast %50 : vector<1x12xf32> to vector<12x12xf32>
    %52 = arith.addf %49, %51 : vector<12x12xf32>
    %c0_38 = arith.constant 0 : index
    %c0_39 = arith.constant 0 : index
    %53 = vector.load %arg13[%c0_38, %c0_39] : memref<1x4xf32, #tpu.memory_space<vmem>>, vector<1x4xf32>
    %54 = vector.extract_strided_slice %33 {offsets = [12, 0], sizes = [4, 8], strides = [1, 1]} : vector<16x8xf32> to vector<4x8xf32>
    %cst_40 = arith.constant dense<0.000000e+00> : vector<1x8xf32>
    %55 = tpu.matmul %53, %54, %cst_40 {dimension_numbers = #tpu.dot_dimension_numbers<[1], [0], [0], [1], [0, 0, 1, 1], [], []>} : vector<1x4xf32>, vector<4x8xf32>, vector<1x8xf32> -> vector<1x8xf32>
    %cst_41 = arith.constant 0.000000e+00 : f32
    %56 = vector.broadcast %cst_41 : f32 to vector<2x16xf32>
    %57 = vector.extract_strided_slice %22 {offsets = [0, 0], sizes = [1, 48], strides = [1, 1]} : vector<13x48xf32> to vector<1x48xf32>
    %58 = vector.extract_strided_slice %46 {offsets = [0, 0], sizes = [1, 48], strides = [1, 1]} : vector<13x48xf32> to vector<1x48xf32>
    %59 = tpu.concatenate %57, %58 in 0 : vector<1x48xf32>, vector<1x48xf32> -> vector<2x48xf32>
    %cst_42 = arith.constant dense<0.000000e+00> : vector<2x48xf32>
    %60 = tpu.matmul %56, %3, %cst_42 {dimension_numbers = #tpu.dot_dimension_numbers<[1], [0], [0], [1], [0, 0, 1, 1], [], []>} : vector<2x16xf32>, vector<16x48xf32>, vector<2x48xf32> -> vector<2x48xf32>
    %61 = vector.broadcast %5 : vector<1x48xf32> to vector<2x48xf32>
    %62 = arith.addf %60, %61 : vector<2x48xf32>
    %63 = vector.extract_strided_slice %59 {offsets = [0, 0], sizes = [2, 16], strides = [1, 1]} : vector<2x48xf32> to vector<2x16xf32>
    %64 = vector.extract_strided_slice %62 {offsets = [0, 0], sizes = [2, 16], strides = [1, 1]} : vector<2x48xf32> to vector<2x16xf32>
    %65 = arith.addf %63, %64 : vector<2x16xf32>
    %66 = arith.negf %65 : vector<2x16xf32>
    %67 = math.exp %66 : vector<2x16xf32>
    %cst_43 = arith.constant 1.000000e+00 : f32
    %68 = vector.broadcast %cst_43 : f32 to vector<2x16xf32>
    %69 = arith.addf %68, %67 : vector<2x16xf32>
    %70 = arith.divf %68, %69 : vector<2x16xf32>
    %71 = vector.extract_strided_slice %59 {offsets = [0, 16], sizes = [2, 16], strides = [1, 1]} : vector<2x48xf32> to vector<2x16xf32>
    %72 = vector.extract_strided_slice %62 {offsets = [0, 16], sizes = [2, 16], strides = [1, 1]} : vector<2x48xf32> to vector<2x16xf32>
    %73 = arith.addf %71, %72 : vector<2x16xf32>
    %74 = arith.negf %73 : vector<2x16xf32>
    %75 = math.exp %74 : vector<2x16xf32>
    %cst_44 = arith.constant 1.000000e+00 : f32
    %76 = vector.broadcast %cst_44 : f32 to vector<2x16xf32>
    %77 = arith.addf %76, %75 : vector<2x16xf32>
    %78 = arith.divf %76, %77 : vector<2x16xf32>
    %79 = vector.extract_strided_slice %59 {offsets = [0, 32], sizes = [2, 16], strides = [1, 1]} : vector<2x48xf32> to vector<2x16xf32>
    %80 = vector.extract_strided_slice %62 {offsets = [0, 32], sizes = [2, 16], strides = [1, 1]} : vector<2x48xf32> to vector<2x16xf32>
    %81 = arith.mulf %70, %80 : vector<2x16xf32>
    %82 = arith.addf %79, %81 : vector<2x16xf32>
    %83 = math.tanh %82 : vector<2x16xf32>
    %cst_45 = arith.constant 1.000000e+00 : f32
    %84 = vector.broadcast %cst_45 : f32 to vector<2x16xf32>
    %85 = arith.subf %84, %78 : vector<2x16xf32>
    %86 = arith.mulf %85, %83 : vector<2x16xf32>
    %87 = arith.mulf %78, %56 : vector<2x16xf32>
    %88 = arith.addf %86, %87 : vector<2x16xf32>
    %89 = vector.extract_strided_slice %22 {offsets = [1, 0], sizes = [1, 48], strides = [1, 1]} : vector<13x48xf32> to vector<1x48xf32>
    %90 = vector.extract_strided_slice %46 {offsets = [1, 0], sizes = [1, 48], strides = [1, 1]} : vector<13x48xf32> to vector<1x48xf32>
    %91 = tpu.concatenate %89, %90 in 0 : vector<1x48xf32>, vector<1x48xf32> -> vector<2x48xf32>
    %cst_46 = arith.constant dense<0.000000e+00> : vector<2x48xf32>
    %92 = tpu.matmul %88, %3, %cst_46 {dimension_numbers = #tpu.dot_dimension_numbers<[1], [0], [0], [1], [0, 0, 1, 1], [], []>} : vector<2x16xf32>, vector<16x48xf32>, vector<2x48xf32> -> vector<2x48xf32>
    %93 = vector.broadcast %5 : vector<1x48xf32> to vector<2x48xf32>
    %94 = arith.addf %92, %93 : vector<2x48xf32>
    %95 = vector.extract_strided_slice %91 {offsets = [0, 0], sizes = [2, 16], strides = [1, 1]} : vector<2x48xf32> to vector<2x16xf32>
    %96 = vector.extract_strided_slice %94 {offsets = [0, 0], sizes = [2, 16], strides = [1, 1]} : vector<2x48xf32> to vector<2x16xf32>
    %97 = arith.addf %95, %96 : vector<2x16xf32>
    %98 = arith.negf %97 : vector<2x16xf32>
    %99 = math.exp %98 : vector<2x16xf32>
    %cst_47 = arith.constant 1.000000e+00 : f32
    %100 = vector.broadcast %cst_47 : f32 to vector<2x16xf32>
    %101 = arith.addf %100, %99 : vector<2x16xf32>
    %102 = arith.divf %100, %101 : vector<2x16xf32>
    %103 = vector.extract_strided_slice %91 {offsets = [0, 16], sizes = [2, 16], strides = [1, 1]} : vector<2x48xf32> to vector<2x16xf32>
    %104 = vector.extract_strided_slice %94 {offsets = [0, 16], sizes = [2, 16], strides = [1, 1]} : vector<2x48xf32> to vector<2x16xf32>
    %105 = arith.addf %103, %104 : vector<2x16xf32>
    %106 = arith.negf %105 : vector<2x16xf32>
    %107 = math.exp %106 : vector<2x16xf32>
    %cst_48 = arith.constant 1.000000e+00 : f32
    %108 = vector.broadcast %cst_48 : f32 to vector<2x16xf32>
    %109 = arith.addf %108, %107 : vector<2x16xf32>
    %110 = arith.divf %108, %109 : vector<2x16xf32>
    %111 = vector.extract_strided_slice %91 {offsets = [0, 32], sizes = [2, 16], strides = [1, 1]} : vector<2x48xf32> to vector<2x16xf32>
    %112 = vector.extract_strided_slice %94 {offsets = [0, 32], sizes = [2, 16], strides = [1, 1]} : vector<2x48xf32> to vector<2x16xf32>
    %113 = arith.mulf %102, %112 : vector<2x16xf32>
    %114 = arith.addf %111, %113 : vector<2x16xf32>
    %115 = math.tanh %114 : vector<2x16xf32>
    %cst_49 = arith.constant 1.000000e+00 : f32
    %116 = vector.broadcast %cst_49 : f32 to vector<2x16xf32>
    %117 = arith.subf %116, %110 : vector<2x16xf32>
    %118 = arith.mulf %117, %115 : vector<2x16xf32>
    %119 = arith.mulf %110, %88 : vector<2x16xf32>
    %120 = arith.addf %118, %119 : vector<2x16xf32>
    %121 = vector.extract_strided_slice %22 {offsets = [2, 0], sizes = [1, 48], strides = [1, 1]} : vector<13x48xf32> to vector<1x48xf32>
    %122 = vector.extract_strided_slice %46 {offsets = [2, 0], sizes = [1, 48], strides = [1, 1]} : vector<13x48xf32> to vector<1x48xf32>
    %123 = tpu.concatenate %121, %122 in 0 : vector<1x48xf32>, vector<1x48xf32> -> vector<2x48xf32>
    %cst_50 = arith.constant dense<0.000000e+00> : vector<2x48xf32>
    %124 = tpu.matmul %120, %3, %cst_50 {dimension_numbers = #tpu.dot_dimension_numbers<[1], [0], [0], [1], [0, 0, 1, 1], [], []>} : vector<2x16xf32>, vector<16x48xf32>, vector<2x48xf32> -> vector<2x48xf32>
    %125 = vector.broadcast %5 : vector<1x48xf32> to vector<2x48xf32>
    %126 = arith.addf %124, %125 : vector<2x48xf32>
    %127 = vector.extract_strided_slice %123 {offsets = [0, 0], sizes = [2, 16], strides = [1, 1]} : vector<2x48xf32> to vector<2x16xf32>
    %128 = vector.extract_strided_slice %126 {offsets = [0, 0], sizes = [2, 16], strides = [1, 1]} : vector<2x48xf32> to vector<2x16xf32>
    %129 = arith.addf %127, %128 : vector<2x16xf32>
    %130 = arith.negf %129 : vector<2x16xf32>
    %131 = math.exp %130 : vector<2x16xf32>
    %cst_51 = arith.constant 1.000000e+00 : f32
    %132 = vector.broadcast %cst_51 : f32 to vector<2x16xf32>
    %133 = arith.addf %132, %131 : vector<2x16xf32>
    %134 = arith.divf %132, %133 : vector<2x16xf32>
    %135 = vector.extract_strided_slice %123 {offsets = [0, 16], sizes = [2, 16], strides = [1, 1]} : vector<2x48xf32> to vector<2x16xf32>
    %136 = vector.extract_strided_slice %126 {offsets = [0, 16], sizes = [2, 16], strides = [1, 1]} : vector<2x48xf32> to vector<2x16xf32>
    %137 = arith.addf %135, %136 : vector<2x16xf32>
    %138 = arith.negf %137 : vector<2x16xf32>
    %139 = math.exp %138 : vector<2x16xf32>
    %cst_52 = arith.constant 1.000000e+00 : f32
    %140 = vector.broadcast %cst_52 : f32 to vector<2x16xf32>
    %141 = arith.addf %140, %139 : vector<2x16xf32>
    %142 = arith.divf %140, %141 : vector<2x16xf32>
    %143 = vector.extract_strided_slice %123 {offsets = [0, 32], sizes = [2, 16], strides = [1, 1]} : vector<2x48xf32> to vector<2x16xf32>
    %144 = vector.extract_strided_slice %126 {offsets = [0, 32], sizes = [2, 16], strides = [1, 1]} : vector<2x48xf32> to vector<2x16xf32>
    %145 = arith.mulf %134, %144 : vector<2x16xf32>
    %146 = arith.addf %143, %145 : vector<2x16xf32>
    %147 = math.tanh %146 : vector<2x16xf32>
    %cst_53 = arith.constant 1.000000e+00 : f32
    %148 = vector.broadcast %cst_53 : f32 to vector<2x16xf32>
    %149 = arith.subf %148, %142 : vector<2x16xf32>
    %150 = arith.mulf %149, %147 : vector<2x16xf32>
    %151 = arith.mulf %142, %120 : vector<2x16xf32>
    %152 = arith.addf %150, %151 : vector<2x16xf32>
    %153 = vector.extract_strided_slice %22 {offsets = [3, 0], sizes = [1, 48], strides = [1, 1]} : vector<13x48xf32> to vector<1x48xf32>
    %154 = vector.extract_strided_slice %46 {offsets = [3, 0], sizes = [1, 48], strides = [1, 1]} : vector<13x48xf32> to vector<1x48xf32>
    %155 = tpu.concatenate %153, %154 in 0 : vector<1x48xf32>, vector<1x48xf32> -> vector<2x48xf32>
    %cst_54 = arith.constant dense<0.000000e+00> : vector<2x48xf32>
    %156 = tpu.matmul %152, %3, %cst_54 {dimension_numbers = #tpu.dot_dimension_numbers<[1], [0], [0], [1], [0, 0, 1, 1], [], []>} : vector<2x16xf32>, vector<16x48xf32>, vector<2x48xf32> -> vector<2x48xf32>
    %157 = vector.broadcast %5 : vector<1x48xf32> to vector<2x48xf32>
    %158 = arith.addf %156, %157 : vector<2x48xf32>
    %159 = vector.extract_strided_slice %155 {offsets = [0, 0], sizes = [2, 16], strides = [1, 1]} : vector<2x48xf32> to vector<2x16xf32>
    %160 = vector.extract_strided_slice %158 {offsets = [0, 0], sizes = [2, 16], strides = [1, 1]} : vector<2x48xf32> to vector<2x16xf32>
    %161 = arith.addf %159, %160 : vector<2x16xf32>
    %162 = arith.negf %161 : vector<2x16xf32>
    %163 = math.exp %162 : vector<2x16xf32>
    %cst_55 = arith.constant 1.000000e+00 : f32
    %164 = vector.broadcast %cst_55 : f32 to vector<2x16xf32>
    %165 = arith.addf %164, %163 : vector<2x16xf32>
    %166 = arith.divf %164, %165 : vector<2x16xf32>
    %167 = vector.extract_strided_slice %155 {offsets = [0, 16], sizes = [2, 16], strides = [1, 1]} : vector<2x48xf32> to vector<2x16xf32>
    %168 = vector.extract_strided_slice %158 {offsets = [0, 16], sizes = [2, 16], strides = [1, 1]} : vector<2x48xf32> to vector<2x16xf32>
    %169 = arith.addf %167, %168 : vector<2x16xf32>
    %170 = arith.negf %169 : vector<2x16xf32>
    %171 = math.exp %170 : vector<2x16xf32>
    %cst_56 = arith.constant 1.000000e+00 : f32
    %172 = vector.broadcast %cst_56 : f32 to vector<2x16xf32>
    %173 = arith.addf %172, %171 : vector<2x16xf32>
    %174 = arith.divf %172, %173 : vector<2x16xf32>
    %175 = vector.extract_strided_slice %155 {offsets = [0, 32], sizes = [2, 16], strides = [1, 1]} : vector<2x48xf32> to vector<2x16xf32>
    %176 = vector.extract_strided_slice %158 {offsets = [0, 32], sizes = [2, 16], strides = [1, 1]} : vector<2x48xf32> to vector<2x16xf32>
    %177 = arith.mulf %166, %176 : vector<2x16xf32>
    %178 = arith.addf %175, %177 : vector<2x16xf32>
    %179 = math.tanh %178 : vector<2x16xf32>
    %cst_57 = arith.constant 1.000000e+00 : f32
    %180 = vector.broadcast %cst_57 : f32 to vector<2x16xf32>
    %181 = arith.subf %180, %174 : vector<2x16xf32>
    %182 = arith.mulf %181, %179 : vector<2x16xf32>
    %183 = arith.mulf %174, %152 : vector<2x16xf32>
    %184 = arith.addf %182, %183 : vector<2x16xf32>
    %185 = vector.extract_strided_slice %22 {offsets = [4, 0], sizes = [1, 48], strides = [1, 1]} : vector<13x48xf32> to vector<1x48xf32>
    %186 = vector.extract_strided_slice %46 {offsets = [4, 0], sizes = [1, 48], strides = [1, 1]} : vector<13x48xf32> to vector<1x48xf32>
    %187 = tpu.concatenate %185, %186 in 0 : vector<1x48xf32>, vector<1x48xf32> -> vector<2x48xf32>
    %cst_58 = arith.constant dense<0.000000e+00> : vector<2x48xf32>
    %188 = tpu.matmul %184, %3, %cst_58 {dimension_numbers = #tpu.dot_dimension_numbers<[1], [0], [0], [1], [0, 0, 1, 1], [], []>} : vector<2x16xf32>, vector<16x48xf32>, vector<2x48xf32> -> vector<2x48xf32>
    %189 = vector.broadcast %5 : vector<1x48xf32> to vector<2x48xf32>
    %190 = arith.addf %188, %189 : vector<2x48xf32>
    %191 = vector.extract_strided_slice %187 {offsets = [0, 0], sizes = [2, 16], strides = [1, 1]} : vector<2x48xf32> to vector<2x16xf32>
    %192 = vector.extract_strided_slice %190 {offsets = [0, 0], sizes = [2, 16], strides = [1, 1]} : vector<2x48xf32> to vector<2x16xf32>
    %193 = arith.addf %191, %192 : vector<2x16xf32>
    %194 = arith.negf %193 : vector<2x16xf32>
    %195 = math.exp %194 : vector<2x16xf32>
    %cst_59 = arith.constant 1.000000e+00 : f32
    %196 = vector.broadcast %cst_59 : f32 to vector<2x16xf32>
    %197 = arith.addf %196, %195 : vector<2x16xf32>
    %198 = arith.divf %196, %197 : vector<2x16xf32>
    %199 = vector.extract_strided_slice %187 {offsets = [0, 16], sizes = [2, 16], strides = [1, 1]} : vector<2x48xf32> to vector<2x16xf32>
    %200 = vector.extract_strided_slice %190 {offsets = [0, 16], sizes = [2, 16], strides = [1, 1]} : vector<2x48xf32> to vector<2x16xf32>
    %201 = arith.addf %199, %200 : vector<2x16xf32>
    %202 = arith.negf %201 : vector<2x16xf32>
    %203 = math.exp %202 : vector<2x16xf32>
    %cst_60 = arith.constant 1.000000e+00 : f32
    %204 = vector.broadcast %cst_60 : f32 to vector<2x16xf32>
    %205 = arith.addf %204, %203 : vector<2x16xf32>
    %206 = arith.divf %204, %205 : vector<2x16xf32>
    %207 = vector.extract_strided_slice %187 {offsets = [0, 32], sizes = [2, 16], strides = [1, 1]} : vector<2x48xf32> to vector<2x16xf32>
    %208 = vector.extract_strided_slice %190 {offsets = [0, 32], sizes = [2, 16], strides = [1, 1]} : vector<2x48xf32> to vector<2x16xf32>
    %209 = arith.mulf %198, %208 : vector<2x16xf32>
    %210 = arith.addf %207, %209 : vector<2x16xf32>
    %211 = math.tanh %210 : vector<2x16xf32>
    %cst_61 = arith.constant 1.000000e+00 : f32
    %212 = vector.broadcast %cst_61 : f32 to vector<2x16xf32>
    %213 = arith.subf %212, %206 : vector<2x16xf32>
    %214 = arith.mulf %213, %211 : vector<2x16xf32>
    %215 = arith.mulf %206, %184 : vector<2x16xf32>
    %216 = arith.addf %214, %215 : vector<2x16xf32>
    %217 = vector.extract_strided_slice %22 {offsets = [5, 0], sizes = [1, 48], strides = [1, 1]} : vector<13x48xf32> to vector<1x48xf32>
    %218 = vector.extract_strided_slice %46 {offsets = [5, 0], sizes = [1, 48], strides = [1, 1]} : vector<13x48xf32> to vector<1x48xf32>
    %219 = tpu.concatenate %217, %218 in 0 : vector<1x48xf32>, vector<1x48xf32> -> vector<2x48xf32>
    %cst_62 = arith.constant dense<0.000000e+00> : vector<2x48xf32>
    %220 = tpu.matmul %216, %3, %cst_62 {dimension_numbers = #tpu.dot_dimension_numbers<[1], [0], [0], [1], [0, 0, 1, 1], [], []>} : vector<2x16xf32>, vector<16x48xf32>, vector<2x48xf32> -> vector<2x48xf32>
    %221 = vector.broadcast %5 : vector<1x48xf32> to vector<2x48xf32>
    %222 = arith.addf %220, %221 : vector<2x48xf32>
    %223 = vector.extract_strided_slice %219 {offsets = [0, 0], sizes = [2, 16], strides = [1, 1]} : vector<2x48xf32> to vector<2x16xf32>
    %224 = vector.extract_strided_slice %222 {offsets = [0, 0], sizes = [2, 16], strides = [1, 1]} : vector<2x48xf32> to vector<2x16xf32>
    %225 = arith.addf %223, %224 : vector<2x16xf32>
    %226 = arith.negf %225 : vector<2x16xf32>
    %227 = math.exp %226 : vector<2x16xf32>
    %cst_63 = arith.constant 1.000000e+00 : f32
    %228 = vector.broadcast %cst_63 : f32 to vector<2x16xf32>
    %229 = arith.addf %228, %227 : vector<2x16xf32>
    %230 = arith.divf %228, %229 : vector<2x16xf32>
    %231 = vector.extract_strided_slice %219 {offsets = [0, 16], sizes = [2, 16], strides = [1, 1]} : vector<2x48xf32> to vector<2x16xf32>
    %232 = vector.extract_strided_slice %222 {offsets = [0, 16], sizes = [2, 16], strides = [1, 1]} : vector<2x48xf32> to vector<2x16xf32>
    %233 = arith.addf %231, %232 : vector<2x16xf32>
    %234 = arith.negf %233 : vector<2x16xf32>
    %235 = math.exp %234 : vector<2x16xf32>
    %cst_64 = arith.constant 1.000000e+00 : f32
    %236 = vector.broadcast %cst_64 : f32 to vector<2x16xf32>
    %237 = arith.addf %236, %235 : vector<2x16xf32>
    %238 = arith.divf %236, %237 : vector<2x16xf32>
    %239 = vector.extract_strided_slice %219 {offsets = [0, 32], sizes = [2, 16], strides = [1, 1]} : vector<2x48xf32> to vector<2x16xf32>
    %240 = vector.extract_strided_slice %222 {offsets = [0, 32], sizes = [2, 16], strides = [1, 1]} : vector<2x48xf32> to vector<2x16xf32>
    %241 = arith.mulf %230, %240 : vector<2x16xf32>
    %242 = arith.addf %239, %241 : vector<2x16xf32>
    %243 = math.tanh %242 : vector<2x16xf32>
    %cst_65 = arith.constant 1.000000e+00 : f32
    %244 = vector.broadcast %cst_65 : f32 to vector<2x16xf32>
    %245 = arith.subf %244, %238 : vector<2x16xf32>
    %246 = arith.mulf %245, %243 : vector<2x16xf32>
    %247 = arith.mulf %238, %216 : vector<2x16xf32>
    %248 = arith.addf %246, %247 : vector<2x16xf32>
    %249 = vector.extract_strided_slice %22 {offsets = [6, 0], sizes = [1, 48], strides = [1, 1]} : vector<13x48xf32> to vector<1x48xf32>
    %250 = vector.extract_strided_slice %46 {offsets = [6, 0], sizes = [1, 48], strides = [1, 1]} : vector<13x48xf32> to vector<1x48xf32>
    %251 = tpu.concatenate %249, %250 in 0 : vector<1x48xf32>, vector<1x48xf32> -> vector<2x48xf32>
    %cst_66 = arith.constant dense<0.000000e+00> : vector<2x48xf32>
    %252 = tpu.matmul %248, %3, %cst_66 {dimension_numbers = #tpu.dot_dimension_numbers<[1], [0], [0], [1], [0, 0, 1, 1], [], []>} : vector<2x16xf32>, vector<16x48xf32>, vector<2x48xf32> -> vector<2x48xf32>
    %253 = vector.broadcast %5 : vector<1x48xf32> to vector<2x48xf32>
    %254 = arith.addf %252, %253 : vector<2x48xf32>
    %255 = vector.extract_strided_slice %251 {offsets = [0, 0], sizes = [2, 16], strides = [1, 1]} : vector<2x48xf32> to vector<2x16xf32>
    %256 = vector.extract_strided_slice %254 {offsets = [0, 0], sizes = [2, 16], strides = [1, 1]} : vector<2x48xf32> to vector<2x16xf32>
    %257 = arith.addf %255, %256 : vector<2x16xf32>
    %258 = arith.negf %257 : vector<2x16xf32>
    %259 = math.exp %258 : vector<2x16xf32>
    %cst_67 = arith.constant 1.000000e+00 : f32
    %260 = vector.broadcast %cst_67 : f32 to vector<2x16xf32>
    %261 = arith.addf %260, %259 : vector<2x16xf32>
    %262 = arith.divf %260, %261 : vector<2x16xf32>
    %263 = vector.extract_strided_slice %251 {offsets = [0, 16], sizes = [2, 16], strides = [1, 1]} : vector<2x48xf32> to vector<2x16xf32>
    %264 = vector.extract_strided_slice %254 {offsets = [0, 16], sizes = [2, 16], strides = [1, 1]} : vector<2x48xf32> to vector<2x16xf32>
    %265 = arith.addf %263, %264 : vector<2x16xf32>
    %266 = arith.negf %265 : vector<2x16xf32>
    %267 = math.exp %266 : vector<2x16xf32>
    %cst_68 = arith.constant 1.000000e+00 : f32
    %268 = vector.broadcast %cst_68 : f32 to vector<2x16xf32>
    %269 = arith.addf %268, %267 : vector<2x16xf32>
    %270 = arith.divf %268, %269 : vector<2x16xf32>
    %271 = vector.extract_strided_slice %251 {offsets = [0, 32], sizes = [2, 16], strides = [1, 1]} : vector<2x48xf32> to vector<2x16xf32>
    %272 = vector.extract_strided_slice %254 {offsets = [0, 32], sizes = [2, 16], strides = [1, 1]} : vector<2x48xf32> to vector<2x16xf32>
    %273 = arith.mulf %262, %272 : vector<2x16xf32>
    %274 = arith.addf %271, %273 : vector<2x16xf32>
    %275 = math.tanh %274 : vector<2x16xf32>
    %cst_69 = arith.constant 1.000000e+00 : f32
    %276 = vector.broadcast %cst_69 : f32 to vector<2x16xf32>
    %277 = arith.subf %276, %270 : vector<2x16xf32>
    %278 = arith.mulf %277, %275 : vector<2x16xf32>
    %279 = arith.mulf %270, %248 : vector<2x16xf32>
    %280 = arith.addf %278, %279 : vector<2x16xf32>
    %281 = vector.extract_strided_slice %22 {offsets = [7, 0], sizes = [1, 48], strides = [1, 1]} : vector<13x48xf32> to vector<1x48xf32>
    %282 = vector.extract_strided_slice %46 {offsets = [7, 0], sizes = [1, 48], strides = [1, 1]} : vector<13x48xf32> to vector<1x48xf32>
    %283 = tpu.concatenate %281, %282 in 0 : vector<1x48xf32>, vector<1x48xf32> -> vector<2x48xf32>
    %cst_70 = arith.constant dense<0.000000e+00> : vector<2x48xf32>
    %284 = tpu.matmul %280, %3, %cst_70 {dimension_numbers = #tpu.dot_dimension_numbers<[1], [0], [0], [1], [0, 0, 1, 1], [], []>} : vector<2x16xf32>, vector<16x48xf32>, vector<2x48xf32> -> vector<2x48xf32>
    %285 = vector.broadcast %5 : vector<1x48xf32> to vector<2x48xf32>
    %286 = arith.addf %284, %285 : vector<2x48xf32>
    %287 = vector.extract_strided_slice %283 {offsets = [0, 0], sizes = [2, 16], strides = [1, 1]} : vector<2x48xf32> to vector<2x16xf32>
    %288 = vector.extract_strided_slice %286 {offsets = [0, 0], sizes = [2, 16], strides = [1, 1]} : vector<2x48xf32> to vector<2x16xf32>
    %289 = arith.addf %287, %288 : vector<2x16xf32>
    %290 = arith.negf %289 : vector<2x16xf32>
    %291 = math.exp %290 : vector<2x16xf32>
    %cst_71 = arith.constant 1.000000e+00 : f32
    %292 = vector.broadcast %cst_71 : f32 to vector<2x16xf32>
    %293 = arith.addf %292, %291 : vector<2x16xf32>
    %294 = arith.divf %292, %293 : vector<2x16xf32>
    %295 = vector.extract_strided_slice %283 {offsets = [0, 16], sizes = [2, 16], strides = [1, 1]} : vector<2x48xf32> to vector<2x16xf32>
    %296 = vector.extract_strided_slice %286 {offsets = [0, 16], sizes = [2, 16], strides = [1, 1]} : vector<2x48xf32> to vector<2x16xf32>
    %297 = arith.addf %295, %296 : vector<2x16xf32>
    %298 = arith.negf %297 : vector<2x16xf32>
    %299 = math.exp %298 : vector<2x16xf32>
    %cst_72 = arith.constant 1.000000e+00 : f32
    %300 = vector.broadcast %cst_72 : f32 to vector<2x16xf32>
    %301 = arith.addf %300, %299 : vector<2x16xf32>
    %302 = arith.divf %300, %301 : vector<2x16xf32>
    %303 = vector.extract_strided_slice %283 {offsets = [0, 32], sizes = [2, 16], strides = [1, 1]} : vector<2x48xf32> to vector<2x16xf32>
    %304 = vector.extract_strided_slice %286 {offsets = [0, 32], sizes = [2, 16], strides = [1, 1]} : vector<2x48xf32> to vector<2x16xf32>
    %305 = arith.mulf %294, %304 : vector<2x16xf32>
    %306 = arith.addf %303, %305 : vector<2x16xf32>
    %307 = math.tanh %306 : vector<2x16xf32>
    %cst_73 = arith.constant 1.000000e+00 : f32
    %308 = vector.broadcast %cst_73 : f32 to vector<2x16xf32>
    %309 = arith.subf %308, %302 : vector<2x16xf32>
    %310 = arith.mulf %309, %307 : vector<2x16xf32>
    %311 = arith.mulf %302, %280 : vector<2x16xf32>
    %312 = arith.addf %310, %311 : vector<2x16xf32>
    %313 = vector.extract_strided_slice %22 {offsets = [8, 0], sizes = [1, 48], strides = [1, 1]} : vector<13x48xf32> to vector<1x48xf32>
    %314 = vector.extract_strided_slice %46 {offsets = [8, 0], sizes = [1, 48], strides = [1, 1]} : vector<13x48xf32> to vector<1x48xf32>
    %315 = tpu.concatenate %313, %314 in 0 : vector<1x48xf32>, vector<1x48xf32> -> vector<2x48xf32>
    %cst_74 = arith.constant dense<0.000000e+00> : vector<2x48xf32>
    %316 = tpu.matmul %312, %3, %cst_74 {dimension_numbers = #tpu.dot_dimension_numbers<[1], [0], [0], [1], [0, 0, 1, 1], [], []>} : vector<2x16xf32>, vector<16x48xf32>, vector<2x48xf32> -> vector<2x48xf32>
    %317 = vector.broadcast %5 : vector<1x48xf32> to vector<2x48xf32>
    %318 = arith.addf %316, %317 : vector<2x48xf32>
    %319 = vector.extract_strided_slice %315 {offsets = [0, 0], sizes = [2, 16], strides = [1, 1]} : vector<2x48xf32> to vector<2x16xf32>
    %320 = vector.extract_strided_slice %318 {offsets = [0, 0], sizes = [2, 16], strides = [1, 1]} : vector<2x48xf32> to vector<2x16xf32>
    %321 = arith.addf %319, %320 : vector<2x16xf32>
    %322 = arith.negf %321 : vector<2x16xf32>
    %323 = math.exp %322 : vector<2x16xf32>
    %cst_75 = arith.constant 1.000000e+00 : f32
    %324 = vector.broadcast %cst_75 : f32 to vector<2x16xf32>
    %325 = arith.addf %324, %323 : vector<2x16xf32>
    %326 = arith.divf %324, %325 : vector<2x16xf32>
    %327 = vector.extract_strided_slice %315 {offsets = [0, 16], sizes = [2, 16], strides = [1, 1]} : vector<2x48xf32> to vector<2x16xf32>
    %328 = vector.extract_strided_slice %318 {offsets = [0, 16], sizes = [2, 16], strides = [1, 1]} : vector<2x48xf32> to vector<2x16xf32>
    %329 = arith.addf %327, %328 : vector<2x16xf32>
    %330 = arith.negf %329 : vector<2x16xf32>
    %331 = math.exp %330 : vector<2x16xf32>
    %cst_76 = arith.constant 1.000000e+00 : f32
    %332 = vector.broadcast %cst_76 : f32 to vector<2x16xf32>
    %333 = arith.addf %332, %331 : vector<2x16xf32>
    %334 = arith.divf %332, %333 : vector<2x16xf32>
    %335 = vector.extract_strided_slice %315 {offsets = [0, 32], sizes = [2, 16], strides = [1, 1]} : vector<2x48xf32> to vector<2x16xf32>
    %336 = vector.extract_strided_slice %318 {offsets = [0, 32], sizes = [2, 16], strides = [1, 1]} : vector<2x48xf32> to vector<2x16xf32>
    %337 = arith.mulf %326, %336 : vector<2x16xf32>
    %338 = arith.addf %335, %337 : vector<2x16xf32>
    %339 = math.tanh %338 : vector<2x16xf32>
    %cst_77 = arith.constant 1.000000e+00 : f32
    %340 = vector.broadcast %cst_77 : f32 to vector<2x16xf32>
    %341 = arith.subf %340, %334 : vector<2x16xf32>
    %342 = arith.mulf %341, %339 : vector<2x16xf32>
    %343 = arith.mulf %334, %312 : vector<2x16xf32>
    %344 = arith.addf %342, %343 : vector<2x16xf32>
    %345 = vector.extract_strided_slice %22 {offsets = [9, 0], sizes = [1, 48], strides = [1, 1]} : vector<13x48xf32> to vector<1x48xf32>
    %346 = vector.extract_strided_slice %46 {offsets = [9, 0], sizes = [1, 48], strides = [1, 1]} : vector<13x48xf32> to vector<1x48xf32>
    %347 = tpu.concatenate %345, %346 in 0 : vector<1x48xf32>, vector<1x48xf32> -> vector<2x48xf32>
    %cst_78 = arith.constant dense<0.000000e+00> : vector<2x48xf32>
    %348 = tpu.matmul %344, %3, %cst_78 {dimension_numbers = #tpu.dot_dimension_numbers<[1], [0], [0], [1], [0, 0, 1, 1], [], []>} : vector<2x16xf32>, vector<16x48xf32>, vector<2x48xf32> -> vector<2x48xf32>
    %349 = vector.broadcast %5 : vector<1x48xf32> to vector<2x48xf32>
    %350 = arith.addf %348, %349 : vector<2x48xf32>
    %351 = vector.extract_strided_slice %347 {offsets = [0, 0], sizes = [2, 16], strides = [1, 1]} : vector<2x48xf32> to vector<2x16xf32>
    %352 = vector.extract_strided_slice %350 {offsets = [0, 0], sizes = [2, 16], strides = [1, 1]} : vector<2x48xf32> to vector<2x16xf32>
    %353 = arith.addf %351, %352 : vector<2x16xf32>
    %354 = arith.negf %353 : vector<2x16xf32>
    %355 = math.exp %354 : vector<2x16xf32>
    %cst_79 = arith.constant 1.000000e+00 : f32
    %356 = vector.broadcast %cst_79 : f32 to vector<2x16xf32>
    %357 = arith.addf %356, %355 : vector<2x16xf32>
    %358 = arith.divf %356, %357 : vector<2x16xf32>
    %359 = vector.extract_strided_slice %347 {offsets = [0, 16], sizes = [2, 16], strides = [1, 1]} : vector<2x48xf32> to vector<2x16xf32>
    %360 = vector.extract_strided_slice %350 {offsets = [0, 16], sizes = [2, 16], strides = [1, 1]} : vector<2x48xf32> to vector<2x16xf32>
    %361 = arith.addf %359, %360 : vector<2x16xf32>
    %362 = arith.negf %361 : vector<2x16xf32>
    %363 = math.exp %362 : vector<2x16xf32>
    %cst_80 = arith.constant 1.000000e+00 : f32
    %364 = vector.broadcast %cst_80 : f32 to vector<2x16xf32>
    %365 = arith.addf %364, %363 : vector<2x16xf32>
    %366 = arith.divf %364, %365 : vector<2x16xf32>
    %367 = vector.extract_strided_slice %347 {offsets = [0, 32], sizes = [2, 16], strides = [1, 1]} : vector<2x48xf32> to vector<2x16xf32>
    %368 = vector.extract_strided_slice %350 {offsets = [0, 32], sizes = [2, 16], strides = [1, 1]} : vector<2x48xf32> to vector<2x16xf32>
    %369 = arith.mulf %358, %368 : vector<2x16xf32>
    %370 = arith.addf %367, %369 : vector<2x16xf32>
    %371 = math.tanh %370 : vector<2x16xf32>
    %cst_81 = arith.constant 1.000000e+00 : f32
    %372 = vector.broadcast %cst_81 : f32 to vector<2x16xf32>
    %373 = arith.subf %372, %366 : vector<2x16xf32>
    %374 = arith.mulf %373, %371 : vector<2x16xf32>
    %375 = arith.mulf %366, %344 : vector<2x16xf32>
    %376 = arith.addf %374, %375 : vector<2x16xf32>
    %377 = vector.extract_strided_slice %22 {offsets = [10, 0], sizes = [1, 48], strides = [1, 1]} : vector<13x48xf32> to vector<1x48xf32>
    %378 = vector.extract_strided_slice %46 {offsets = [10, 0], sizes = [1, 48], strides = [1, 1]} : vector<13x48xf32> to vector<1x48xf32>
    %379 = tpu.concatenate %377, %378 in 0 : vector<1x48xf32>, vector<1x48xf32> -> vector<2x48xf32>
    %cst_82 = arith.constant dense<0.000000e+00> : vector<2x48xf32>
    %380 = tpu.matmul %376, %3, %cst_82 {dimension_numbers = #tpu.dot_dimension_numbers<[1], [0], [0], [1], [0, 0, 1, 1], [], []>} : vector<2x16xf32>, vector<16x48xf32>, vector<2x48xf32> -> vector<2x48xf32>
    %381 = vector.broadcast %5 : vector<1x48xf32> to vector<2x48xf32>
    %382 = arith.addf %380, %381 : vector<2x48xf32>
    %383 = vector.extract_strided_slice %379 {offsets = [0, 0], sizes = [2, 16], strides = [1, 1]} : vector<2x48xf32> to vector<2x16xf32>
    %384 = vector.extract_strided_slice %382 {offsets = [0, 0], sizes = [2, 16], strides = [1, 1]} : vector<2x48xf32> to vector<2x16xf32>
    %385 = arith.addf %383, %384 : vector<2x16xf32>
    %386 = arith.negf %385 : vector<2x16xf32>
    %387 = math.exp %386 : vector<2x16xf32>
    %cst_83 = arith.constant 1.000000e+00 : f32
    %388 = vector.broadcast %cst_83 : f32 to vector<2x16xf32>
    %389 = arith.addf %388, %387 : vector<2x16xf32>
    %390 = arith.divf %388, %389 : vector<2x16xf32>
    %391 = vector.extract_strided_slice %379 {offsets = [0, 16], sizes = [2, 16], strides = [1, 1]} : vector<2x48xf32> to vector<2x16xf32>
    %392 = vector.extract_strided_slice %382 {offsets = [0, 16], sizes = [2, 16], strides = [1, 1]} : vector<2x48xf32> to vector<2x16xf32>
    %393 = arith.addf %391, %392 : vector<2x16xf32>
    %394 = arith.negf %393 : vector<2x16xf32>
    %395 = math.exp %394 : vector<2x16xf32>
    %cst_84 = arith.constant 1.000000e+00 : f32
    %396 = vector.broadcast %cst_84 : f32 to vector<2x16xf32>
    %397 = arith.addf %396, %395 : vector<2x16xf32>
    %398 = arith.divf %396, %397 : vector<2x16xf32>
    %399 = vector.extract_strided_slice %379 {offsets = [0, 32], sizes = [2, 16], strides = [1, 1]} : vector<2x48xf32> to vector<2x16xf32>
    %400 = vector.extract_strided_slice %382 {offsets = [0, 32], sizes = [2, 16], strides = [1, 1]} : vector<2x48xf32> to vector<2x16xf32>
    %401 = arith.mulf %390, %400 : vector<2x16xf32>
    %402 = arith.addf %399, %401 : vector<2x16xf32>
    %403 = math.tanh %402 : vector<2x16xf32>
    %cst_85 = arith.constant 1.000000e+00 : f32
    %404 = vector.broadcast %cst_85 : f32 to vector<2x16xf32>
    %405 = arith.subf %404, %398 : vector<2x16xf32>
    %406 = arith.mulf %405, %403 : vector<2x16xf32>
    %407 = arith.mulf %398, %376 : vector<2x16xf32>
    %408 = arith.addf %406, %407 : vector<2x16xf32>
    %409 = vector.extract_strided_slice %22 {offsets = [11, 0], sizes = [1, 48], strides = [1, 1]} : vector<13x48xf32> to vector<1x48xf32>
    %410 = vector.extract_strided_slice %46 {offsets = [11, 0], sizes = [1, 48], strides = [1, 1]} : vector<13x48xf32> to vector<1x48xf32>
    %411 = tpu.concatenate %409, %410 in 0 : vector<1x48xf32>, vector<1x48xf32> -> vector<2x48xf32>
    %cst_86 = arith.constant dense<0.000000e+00> : vector<2x48xf32>
    %412 = tpu.matmul %408, %3, %cst_86 {dimension_numbers = #tpu.dot_dimension_numbers<[1], [0], [0], [1], [0, 0, 1, 1], [], []>} : vector<2x16xf32>, vector<16x48xf32>, vector<2x48xf32> -> vector<2x48xf32>
    %413 = vector.broadcast %5 : vector<1x48xf32> to vector<2x48xf32>
    %414 = arith.addf %412, %413 : vector<2x48xf32>
    %415 = vector.extract_strided_slice %411 {offsets = [0, 0], sizes = [2, 16], strides = [1, 1]} : vector<2x48xf32> to vector<2x16xf32>
    %416 = vector.extract_strided_slice %414 {offsets = [0, 0], sizes = [2, 16], strides = [1, 1]} : vector<2x48xf32> to vector<2x16xf32>
    %417 = arith.addf %415, %416 : vector<2x16xf32>
    %418 = arith.negf %417 : vector<2x16xf32>
    %419 = math.exp %418 : vector<2x16xf32>
    %cst_87 = arith.constant 1.000000e+00 : f32
    %420 = vector.broadcast %cst_87 : f32 to vector<2x16xf32>
    %421 = arith.addf %420, %419 : vector<2x16xf32>
    %422 = arith.divf %420, %421 : vector<2x16xf32>
    %423 = vector.extract_strided_slice %411 {offsets = [0, 16], sizes = [2, 16], strides = [1, 1]} : vector<2x48xf32> to vector<2x16xf32>
    %424 = vector.extract_strided_slice %414 {offsets = [0, 16], sizes = [2, 16], strides = [1, 1]} : vector<2x48xf32> to vector<2x16xf32>
    %425 = arith.addf %423, %424 : vector<2x16xf32>
    %426 = arith.negf %425 : vector<2x16xf32>
    %427 = math.exp %426 : vector<2x16xf32>
    %cst_88 = arith.constant 1.000000e+00 : f32
    %428 = vector.broadcast %cst_88 : f32 to vector<2x16xf32>
    %429 = arith.addf %428, %427 : vector<2x16xf32>
    %430 = arith.divf %428, %429 : vector<2x16xf32>
    %431 = vector.extract_strided_slice %411 {offsets = [0, 32], sizes = [2, 16], strides = [1, 1]} : vector<2x48xf32> to vector<2x16xf32>
    %432 = vector.extract_strided_slice %414 {offsets = [0, 32], sizes = [2, 16], strides = [1, 1]} : vector<2x48xf32> to vector<2x16xf32>
    %433 = arith.mulf %422, %432 : vector<2x16xf32>
    %434 = arith.addf %431, %433 : vector<2x16xf32>
    %435 = math.tanh %434 : vector<2x16xf32>
    %cst_89 = arith.constant 1.000000e+00 : f32
    %436 = vector.broadcast %cst_89 : f32 to vector<2x16xf32>
    %437 = arith.subf %436, %430 : vector<2x16xf32>
    %438 = arith.mulf %437, %435 : vector<2x16xf32>
    %439 = arith.mulf %430, %408 : vector<2x16xf32>
    %440 = arith.addf %438, %439 : vector<2x16xf32>
    %441 = vector.extract_strided_slice %22 {offsets = [12, 0], sizes = [1, 48], strides = [1, 1]} : vector<13x48xf32> to vector<1x48xf32>
    %442 = vector.extract_strided_slice %46 {offsets = [12, 0], sizes = [1, 48], strides = [1, 1]} : vector<13x48xf32> to vector<1x48xf32>
    %443 = tpu.concatenate %441, %442 in 0 : vector<1x48xf32>, vector<1x48xf32> -> vector<2x48xf32>
    %cst_90 = arith.constant dense<0.000000e+00> : vector<2x48xf32>
    %444 = tpu.matmul %440, %3, %cst_90 {dimension_numbers = #tpu.dot_dimension_numbers<[1], [0], [0], [1], [0, 0, 1, 1], [], []>} : vector<2x16xf32>, vector<16x48xf32>, vector<2x48xf32> -> vector<2x48xf32>
    %445 = vector.broadcast %5 : vector<1x48xf32> to vector<2x48xf32>
    %446 = arith.addf %444, %445 : vector<2x48xf32>
    %447 = vector.extract_strided_slice %443 {offsets = [0, 0], sizes = [2, 16], strides = [1, 1]} : vector<2x48xf32> to vector<2x16xf32>
    %448 = vector.extract_strided_slice %446 {offsets = [0, 0], sizes = [2, 16], strides = [1, 1]} : vector<2x48xf32> to vector<2x16xf32>
    %449 = arith.addf %447, %448 : vector<2x16xf32>
    %450 = arith.negf %449 : vector<2x16xf32>
    %451 = math.exp %450 : vector<2x16xf32>
    %cst_91 = arith.constant 1.000000e+00 : f32
    %452 = vector.broadcast %cst_91 : f32 to vector<2x16xf32>
    %453 = arith.addf %452, %451 : vector<2x16xf32>
    %454 = arith.divf %452, %453 : vector<2x16xf32>
    %455 = vector.extract_strided_slice %443 {offsets = [0, 16], sizes = [2, 16], strides = [1, 1]} : vector<2x48xf32> to vector<2x16xf32>
    %456 = vector.extract_strided_slice %446 {offsets = [0, 16], sizes = [2, 16], strides = [1, 1]} : vector<2x48xf32> to vector<2x16xf32>
    %457 = arith.addf %455, %456 : vector<2x16xf32>
    %458 = arith.negf %457 : vector<2x16xf32>
    %459 = math.exp %458 : vector<2x16xf32>
    %cst_92 = arith.constant 1.000000e+00 : f32
    %460 = vector.broadcast %cst_92 : f32 to vector<2x16xf32>
    %461 = arith.addf %460, %459 : vector<2x16xf32>
    %462 = arith.divf %460, %461 : vector<2x16xf32>
    %463 = vector.extract_strided_slice %443 {offsets = [0, 32], sizes = [2, 16], strides = [1, 1]} : vector<2x48xf32> to vector<2x16xf32>
    %464 = vector.extract_strided_slice %446 {offsets = [0, 32], sizes = [2, 16], strides = [1, 1]} : vector<2x48xf32> to vector<2x16xf32>
    %465 = arith.mulf %454, %464 : vector<2x16xf32>
    %466 = arith.addf %463, %465 : vector<2x16xf32>
    %467 = math.tanh %466 : vector<2x16xf32>
    %cst_93 = arith.constant 1.000000e+00 : f32
    %468 = vector.broadcast %cst_93 : f32 to vector<2x16xf32>
    %469 = arith.subf %468, %462 : vector<2x16xf32>
    %470 = arith.mulf %469, %467 : vector<2x16xf32>
    %471 = arith.mulf %462, %440 : vector<2x16xf32>
    %472 = arith.addf %470, %471 : vector<2x16xf32>
    %c0_94 = arith.constant 0 : index
    %c0_95 = arith.constant 0 : index
    %473 = vector.load %arg8[%c0_94, %c0_95] : memref<4x12xf32, #tpu.memory_space<vmem>>, vector<4x12xf32>
    %c0_96 = arith.constant 0 : index
    %c0_97 = arith.constant 0 : index
    %474 = vector.load %arg10[%c0_96, %c0_97] : memref<1x12xf32, #tpu.memory_space<vmem>>, vector<1x12xf32>
    %cst_98 = arith.constant 0.000000e+00 : f32
    %475 = vector.broadcast %cst_98 : f32 to vector<4x4xf32>
    %476 = vector.extract_strided_slice %28 {offsets = [0, 0], sizes = [2, 12], strides = [1, 1]} : vector<12x12xf32> to vector<2x12xf32>
    %477 = vector.extract_strided_slice %52 {offsets = [0, 0], sizes = [2, 12], strides = [1, 1]} : vector<12x12xf32> to vector<2x12xf32>
    %478 = tpu.concatenate %476, %477 in 0 : vector<2x12xf32>, vector<2x12xf32> -> vector<4x12xf32>
    %cst_99 = arith.constant dense<0.000000e+00> : vector<4x12xf32>
    %479 = tpu.matmul %475, %473, %cst_99 {dimension_numbers = #tpu.dot_dimension_numbers<[1], [0], [0], [1], [0, 0, 1, 1], [], []>} : vector<4x4xf32>, vector<4x12xf32>, vector<4x12xf32> -> vector<4x12xf32>
    %480 = vector.broadcast %474 : vector<1x12xf32> to vector<4x12xf32>
    %481 = arith.addf %479, %480 : vector<4x12xf32>
    %482 = vector.extract_strided_slice %478 {offsets = [0, 0], sizes = [4, 4], strides = [1, 1]} : vector<4x12xf32> to vector<4x4xf32>
    %483 = vector.extract_strided_slice %481 {offsets = [0, 0], sizes = [4, 4], strides = [1, 1]} : vector<4x12xf32> to vector<4x4xf32>
    %484 = arith.addf %482, %483 : vector<4x4xf32>
    %485 = arith.negf %484 : vector<4x4xf32>
    %486 = math.exp %485 : vector<4x4xf32>
    %cst_100 = arith.constant 1.000000e+00 : f32
    %487 = vector.broadcast %cst_100 : f32 to vector<4x4xf32>
    %488 = arith.addf %487, %486 : vector<4x4xf32>
    %489 = arith.divf %487, %488 : vector<4x4xf32>
    %490 = vector.extract_strided_slice %478 {offsets = [0, 4], sizes = [4, 4], strides = [1, 1]} : vector<4x12xf32> to vector<4x4xf32>
    %491 = vector.extract_strided_slice %481 {offsets = [0, 4], sizes = [4, 4], strides = [1, 1]} : vector<4x12xf32> to vector<4x4xf32>
    %492 = arith.addf %490, %491 : vector<4x4xf32>
    %493 = arith.negf %492 : vector<4x4xf32>
    %494 = math.exp %493 : vector<4x4xf32>
    %cst_101 = arith.constant 1.000000e+00 : f32
    %495 = vector.broadcast %cst_101 : f32 to vector<4x4xf32>
    %496 = arith.addf %495, %494 : vector<4x4xf32>
    %497 = arith.divf %495, %496 : vector<4x4xf32>
    %498 = vector.extract_strided_slice %478 {offsets = [0, 8], sizes = [4, 4], strides = [1, 1]} : vector<4x12xf32> to vector<4x4xf32>
    %499 = vector.extract_strided_slice %481 {offsets = [0, 8], sizes = [4, 4], strides = [1, 1]} : vector<4x12xf32> to vector<4x4xf32>
    %500 = arith.mulf %489, %499 : vector<4x4xf32>
    %501 = arith.addf %498, %500 : vector<4x4xf32>
    %502 = math.tanh %501 : vector<4x4xf32>
    %cst_102 = arith.constant 1.000000e+00 : f32
    %503 = vector.broadcast %cst_102 : f32 to vector<4x4xf32>
    %504 = arith.subf %503, %497 : vector<4x4xf32>
    %505 = arith.mulf %504, %502 : vector<4x4xf32>
    %506 = arith.mulf %497, %475 : vector<4x4xf32>
    %507 = arith.addf %505, %506 : vector<4x4xf32>
    %508 = vector.extract_strided_slice %28 {offsets = [2, 0], sizes = [2, 12], strides = [1, 1]} : vector<12x12xf32> to vector<2x12xf32>
    %509 = vector.extract_strided_slice %52 {offsets = [2, 0], sizes = [2, 12], strides = [1, 1]} : vector<12x12xf32> to vector<2x12xf32>
    %510 = tpu.concatenate %508, %509 in 0 : vector<2x12xf32>, vector<2x12xf32> -> vector<4x12xf32>
    %cst_103 = arith.constant dense<0.000000e+00> : vector<4x12xf32>
    %511 = tpu.matmul %507, %473, %cst_103 {dimension_numbers = #tpu.dot_dimension_numbers<[1], [0], [0], [1], [0, 0, 1, 1], [], []>} : vector<4x4xf32>, vector<4x12xf32>, vector<4x12xf32> -> vector<4x12xf32>
    %512 = vector.broadcast %474 : vector<1x12xf32> to vector<4x12xf32>
    %513 = arith.addf %511, %512 : vector<4x12xf32>
    %514 = vector.extract_strided_slice %510 {offsets = [0, 0], sizes = [4, 4], strides = [1, 1]} : vector<4x12xf32> to vector<4x4xf32>
    %515 = vector.extract_strided_slice %513 {offsets = [0, 0], sizes = [4, 4], strides = [1, 1]} : vector<4x12xf32> to vector<4x4xf32>
    %516 = arith.addf %514, %515 : vector<4x4xf32>
    %517 = arith.negf %516 : vector<4x4xf32>
    %518 = math.exp %517 : vector<4x4xf32>
    %cst_104 = arith.constant 1.000000e+00 : f32
    %519 = vector.broadcast %cst_104 : f32 to vector<4x4xf32>
    %520 = arith.addf %519, %518 : vector<4x4xf32>
    %521 = arith.divf %519, %520 : vector<4x4xf32>
    %522 = vector.extract_strided_slice %510 {offsets = [0, 4], sizes = [4, 4], strides = [1, 1]} : vector<4x12xf32> to vector<4x4xf32>
    %523 = vector.extract_strided_slice %513 {offsets = [0, 4], sizes = [4, 4], strides = [1, 1]} : vector<4x12xf32> to vector<4x4xf32>
    %524 = arith.addf %522, %523 : vector<4x4xf32>
    %525 = arith.negf %524 : vector<4x4xf32>
    %526 = math.exp %525 : vector<4x4xf32>
    %cst_105 = arith.constant 1.000000e+00 : f32
    %527 = vector.broadcast %cst_105 : f32 to vector<4x4xf32>
    %528 = arith.addf %527, %526 : vector<4x4xf32>
    %529 = arith.divf %527, %528 : vector<4x4xf32>
    %530 = vector.extract_strided_slice %510 {offsets = [0, 8], sizes = [4, 4], strides = [1, 1]} : vector<4x12xf32> to vector<4x4xf32>
    %531 = vector.extract_strided_slice %513 {offsets = [0, 8], sizes = [4, 4], strides = [1, 1]} : vector<4x12xf32> to vector<4x4xf32>
    %532 = arith.mulf %521, %531 : vector<4x4xf32>
    %533 = arith.addf %530, %532 : vector<4x4xf32>
    %534 = math.tanh %533 : vector<4x4xf32>
    %cst_106 = arith.constant 1.000000e+00 : f32
    %535 = vector.broadcast %cst_106 : f32 to vector<4x4xf32>
    %536 = arith.subf %535, %529 : vector<4x4xf32>
    %537 = arith.mulf %536, %534 : vector<4x4xf32>
    %538 = arith.mulf %529, %507 : vector<4x4xf32>
    %539 = arith.addf %537, %538 : vector<4x4xf32>
    %540 = vector.extract_strided_slice %28 {offsets = [4, 0], sizes = [2, 12], strides = [1, 1]} : vector<12x12xf32> to vector<2x12xf32>
    %541 = vector.extract_strided_slice %52 {offsets = [4, 0], sizes = [2, 12], strides = [1, 1]} : vector<12x12xf32> to vector<2x12xf32>
    %542 = tpu.concatenate %540, %541 in 0 : vector<2x12xf32>, vector<2x12xf32> -> vector<4x12xf32>
    %cst_107 = arith.constant dense<0.000000e+00> : vector<4x12xf32>
    %543 = tpu.matmul %539, %473, %cst_107 {dimension_numbers = #tpu.dot_dimension_numbers<[1], [0], [0], [1], [0, 0, 1, 1], [], []>} : vector<4x4xf32>, vector<4x12xf32>, vector<4x12xf32> -> vector<4x12xf32>
    %544 = vector.broadcast %474 : vector<1x12xf32> to vector<4x12xf32>
    %545 = arith.addf %543, %544 : vector<4x12xf32>
    %546 = vector.extract_strided_slice %542 {offsets = [0, 0], sizes = [4, 4], strides = [1, 1]} : vector<4x12xf32> to vector<4x4xf32>
    %547 = vector.extract_strided_slice %545 {offsets = [0, 0], sizes = [4, 4], strides = [1, 1]} : vector<4x12xf32> to vector<4x4xf32>
    %548 = arith.addf %546, %547 : vector<4x4xf32>
    %549 = arith.negf %548 : vector<4x4xf32>
    %550 = math.exp %549 : vector<4x4xf32>
    %cst_108 = arith.constant 1.000000e+00 : f32
    %551 = vector.broadcast %cst_108 : f32 to vector<4x4xf32>
    %552 = arith.addf %551, %550 : vector<4x4xf32>
    %553 = arith.divf %551, %552 : vector<4x4xf32>
    %554 = vector.extract_strided_slice %542 {offsets = [0, 4], sizes = [4, 4], strides = [1, 1]} : vector<4x12xf32> to vector<4x4xf32>
    %555 = vector.extract_strided_slice %545 {offsets = [0, 4], sizes = [4, 4], strides = [1, 1]} : vector<4x12xf32> to vector<4x4xf32>
    %556 = arith.addf %554, %555 : vector<4x4xf32>
    %557 = arith.negf %556 : vector<4x4xf32>
    %558 = math.exp %557 : vector<4x4xf32>
    %cst_109 = arith.constant 1.000000e+00 : f32
    %559 = vector.broadcast %cst_109 : f32 to vector<4x4xf32>
    %560 = arith.addf %559, %558 : vector<4x4xf32>
    %561 = arith.divf %559, %560 : vector<4x4xf32>
    %562 = vector.extract_strided_slice %542 {offsets = [0, 8], sizes = [4, 4], strides = [1, 1]} : vector<4x12xf32> to vector<4x4xf32>
    %563 = vector.extract_strided_slice %545 {offsets = [0, 8], sizes = [4, 4], strides = [1, 1]} : vector<4x12xf32> to vector<4x4xf32>
    %564 = arith.mulf %553, %563 : vector<4x4xf32>
    %565 = arith.addf %562, %564 : vector<4x4xf32>
    %566 = math.tanh %565 : vector<4x4xf32>
    %cst_110 = arith.constant 1.000000e+00 : f32
    %567 = vector.broadcast %cst_110 : f32 to vector<4x4xf32>
    %568 = arith.subf %567, %561 : vector<4x4xf32>
    %569 = arith.mulf %568, %566 : vector<4x4xf32>
    %570 = arith.mulf %561, %539 : vector<4x4xf32>
    %571 = arith.addf %569, %570 : vector<4x4xf32>
    %572 = vector.extract_strided_slice %28 {offsets = [6, 0], sizes = [2, 12], strides = [1, 1]} : vector<12x12xf32> to vector<2x12xf32>
    %573 = vector.extract_strided_slice %52 {offsets = [6, 0], sizes = [2, 12], strides = [1, 1]} : vector<12x12xf32> to vector<2x12xf32>
    %574 = tpu.concatenate %572, %573 in 0 : vector<2x12xf32>, vector<2x12xf32> -> vector<4x12xf32>
    %cst_111 = arith.constant dense<0.000000e+00> : vector<4x12xf32>
    %575 = tpu.matmul %571, %473, %cst_111 {dimension_numbers = #tpu.dot_dimension_numbers<[1], [0], [0], [1], [0, 0, 1, 1], [], []>} : vector<4x4xf32>, vector<4x12xf32>, vector<4x12xf32> -> vector<4x12xf32>
    %576 = vector.broadcast %474 : vector<1x12xf32> to vector<4x12xf32>
    %577 = arith.addf %575, %576 : vector<4x12xf32>
    %578 = vector.extract_strided_slice %574 {offsets = [0, 0], sizes = [4, 4], strides = [1, 1]} : vector<4x12xf32> to vector<4x4xf32>
    %579 = vector.extract_strided_slice %577 {offsets = [0, 0], sizes = [4, 4], strides = [1, 1]} : vector<4x12xf32> to vector<4x4xf32>
    %580 = arith.addf %578, %579 : vector<4x4xf32>
    %581 = arith.negf %580 : vector<4x4xf32>
    %582 = math.exp %581 : vector<4x4xf32>
    %cst_112 = arith.constant 1.000000e+00 : f32
    %583 = vector.broadcast %cst_112 : f32 to vector<4x4xf32>
    %584 = arith.addf %583, %582 : vector<4x4xf32>
    %585 = arith.divf %583, %584 : vector<4x4xf32>
    %586 = vector.extract_strided_slice %574 {offsets = [0, 4], sizes = [4, 4], strides = [1, 1]} : vector<4x12xf32> to vector<4x4xf32>
    %587 = vector.extract_strided_slice %577 {offsets = [0, 4], sizes = [4, 4], strides = [1, 1]} : vector<4x12xf32> to vector<4x4xf32>
    %588 = arith.addf %586, %587 : vector<4x4xf32>
    %589 = arith.negf %588 : vector<4x4xf32>
    %590 = math.exp %589 : vector<4x4xf32>
    %cst_113 = arith.constant 1.000000e+00 : f32
    %591 = vector.broadcast %cst_113 : f32 to vector<4x4xf32>
    %592 = arith.addf %591, %590 : vector<4x4xf32>
    %593 = arith.divf %591, %592 : vector<4x4xf32>
    %594 = vector.extract_strided_slice %574 {offsets = [0, 8], sizes = [4, 4], strides = [1, 1]} : vector<4x12xf32> to vector<4x4xf32>
    %595 = vector.extract_strided_slice %577 {offsets = [0, 8], sizes = [4, 4], strides = [1, 1]} : vector<4x12xf32> to vector<4x4xf32>
    %596 = arith.mulf %585, %595 : vector<4x4xf32>
    %597 = arith.addf %594, %596 : vector<4x4xf32>
    %598 = math.tanh %597 : vector<4x4xf32>
    %cst_114 = arith.constant 1.000000e+00 : f32
    %599 = vector.broadcast %cst_114 : f32 to vector<4x4xf32>
    %600 = arith.subf %599, %593 : vector<4x4xf32>
    %601 = arith.mulf %600, %598 : vector<4x4xf32>
    %602 = arith.mulf %593, %571 : vector<4x4xf32>
    %603 = arith.addf %601, %602 : vector<4x4xf32>
    %604 = vector.extract_strided_slice %28 {offsets = [8, 0], sizes = [2, 12], strides = [1, 1]} : vector<12x12xf32> to vector<2x12xf32>
    %605 = vector.extract_strided_slice %52 {offsets = [8, 0], sizes = [2, 12], strides = [1, 1]} : vector<12x12xf32> to vector<2x12xf32>
    %606 = tpu.concatenate %604, %605 in 0 : vector<2x12xf32>, vector<2x12xf32> -> vector<4x12xf32>
    %cst_115 = arith.constant dense<0.000000e+00> : vector<4x12xf32>
    %607 = tpu.matmul %603, %473, %cst_115 {dimension_numbers = #tpu.dot_dimension_numbers<[1], [0], [0], [1], [0, 0, 1, 1], [], []>} : vector<4x4xf32>, vector<4x12xf32>, vector<4x12xf32> -> vector<4x12xf32>
    %608 = vector.broadcast %474 : vector<1x12xf32> to vector<4x12xf32>
    %609 = arith.addf %607, %608 : vector<4x12xf32>
    %610 = vector.extract_strided_slice %606 {offsets = [0, 0], sizes = [4, 4], strides = [1, 1]} : vector<4x12xf32> to vector<4x4xf32>
    %611 = vector.extract_strided_slice %609 {offsets = [0, 0], sizes = [4, 4], strides = [1, 1]} : vector<4x12xf32> to vector<4x4xf32>
    %612 = arith.addf %610, %611 : vector<4x4xf32>
    %613 = arith.negf %612 : vector<4x4xf32>
    %614 = math.exp %613 : vector<4x4xf32>
    %cst_116 = arith.constant 1.000000e+00 : f32
    %615 = vector.broadcast %cst_116 : f32 to vector<4x4xf32>
    %616 = arith.addf %615, %614 : vector<4x4xf32>
    %617 = arith.divf %615, %616 : vector<4x4xf32>
    %618 = vector.extract_strided_slice %606 {offsets = [0, 4], sizes = [4, 4], strides = [1, 1]} : vector<4x12xf32> to vector<4x4xf32>
    %619 = vector.extract_strided_slice %609 {offsets = [0, 4], sizes = [4, 4], strides = [1, 1]} : vector<4x12xf32> to vector<4x4xf32>
    %620 = arith.addf %618, %619 : vector<4x4xf32>
    %621 = arith.negf %620 : vector<4x4xf32>
    %622 = math.exp %621 : vector<4x4xf32>
    %cst_117 = arith.constant 1.000000e+00 : f32
    %623 = vector.broadcast %cst_117 : f32 to vector<4x4xf32>
    %624 = arith.addf %623, %622 : vector<4x4xf32>
    %625 = arith.divf %623, %624 : vector<4x4xf32>
    %626 = vector.extract_strided_slice %606 {offsets = [0, 8], sizes = [4, 4], strides = [1, 1]} : vector<4x12xf32> to vector<4x4xf32>
    %627 = vector.extract_strided_slice %609 {offsets = [0, 8], sizes = [4, 4], strides = [1, 1]} : vector<4x12xf32> to vector<4x4xf32>
    %628 = arith.mulf %617, %627 : vector<4x4xf32>
    %629 = arith.addf %626, %628 : vector<4x4xf32>
    %630 = math.tanh %629 : vector<4x4xf32>
    %cst_118 = arith.constant 1.000000e+00 : f32
    %631 = vector.broadcast %cst_118 : f32 to vector<4x4xf32>
    %632 = arith.subf %631, %625 : vector<4x4xf32>
    %633 = arith.mulf %632, %630 : vector<4x4xf32>
    %634 = arith.mulf %625, %603 : vector<4x4xf32>
    %635 = arith.addf %633, %634 : vector<4x4xf32>
    %636 = vector.extract_strided_slice %28 {offsets = [10, 0], sizes = [2, 12], strides = [1, 1]} : vector<12x12xf32> to vector<2x12xf32>
    %637 = vector.extract_strided_slice %52 {offsets = [10, 0], sizes = [2, 12], strides = [1, 1]} : vector<12x12xf32> to vector<2x12xf32>
    %638 = tpu.concatenate %636, %637 in 0 : vector<2x12xf32>, vector<2x12xf32> -> vector<4x12xf32>
    %cst_119 = arith.constant dense<0.000000e+00> : vector<4x12xf32>
    %639 = tpu.matmul %635, %473, %cst_119 {dimension_numbers = #tpu.dot_dimension_numbers<[1], [0], [0], [1], [0, 0, 1, 1], [], []>} : vector<4x4xf32>, vector<4x12xf32>, vector<4x12xf32> -> vector<4x12xf32>
    %640 = vector.broadcast %474 : vector<1x12xf32> to vector<4x12xf32>
    %641 = arith.addf %639, %640 : vector<4x12xf32>
    %642 = vector.extract_strided_slice %638 {offsets = [0, 0], sizes = [4, 4], strides = [1, 1]} : vector<4x12xf32> to vector<4x4xf32>
    %643 = vector.extract_strided_slice %641 {offsets = [0, 0], sizes = [4, 4], strides = [1, 1]} : vector<4x12xf32> to vector<4x4xf32>
    %644 = arith.addf %642, %643 : vector<4x4xf32>
    %645 = arith.negf %644 : vector<4x4xf32>
    %646 = math.exp %645 : vector<4x4xf32>
    %cst_120 = arith.constant 1.000000e+00 : f32
    %647 = vector.broadcast %cst_120 : f32 to vector<4x4xf32>
    %648 = arith.addf %647, %646 : vector<4x4xf32>
    %649 = arith.divf %647, %648 : vector<4x4xf32>
    %650 = vector.extract_strided_slice %638 {offsets = [0, 4], sizes = [4, 4], strides = [1, 1]} : vector<4x12xf32> to vector<4x4xf32>
    %651 = vector.extract_strided_slice %641 {offsets = [0, 4], sizes = [4, 4], strides = [1, 1]} : vector<4x12xf32> to vector<4x4xf32>
    %652 = arith.addf %650, %651 : vector<4x4xf32>
    %653 = arith.negf %652 : vector<4x4xf32>
    %654 = math.exp %653 : vector<4x4xf32>
    %cst_121 = arith.constant 1.000000e+00 : f32
    %655 = vector.broadcast %cst_121 : f32 to vector<4x4xf32>
    %656 = arith.addf %655, %654 : vector<4x4xf32>
    %657 = arith.divf %655, %656 : vector<4x4xf32>
    %658 = vector.extract_strided_slice %638 {offsets = [0, 8], sizes = [4, 4], strides = [1, 1]} : vector<4x12xf32> to vector<4x4xf32>
    %659 = vector.extract_strided_slice %641 {offsets = [0, 8], sizes = [4, 4], strides = [1, 1]} : vector<4x12xf32> to vector<4x4xf32>
    %660 = arith.mulf %649, %659 : vector<4x4xf32>
    %661 = arith.addf %658, %660 : vector<4x4xf32>
    %662 = math.tanh %661 : vector<4x4xf32>
    %cst_122 = arith.constant 1.000000e+00 : f32
    %663 = vector.broadcast %cst_122 : f32 to vector<4x4xf32>
    %664 = arith.subf %663, %657 : vector<4x4xf32>
    %665 = arith.mulf %664, %662 : vector<4x4xf32>
    %666 = arith.mulf %657, %635 : vector<4x4xf32>
    %667 = arith.addf %665, %666 : vector<4x4xf32>
    %668 = vector.extract_strided_slice %667 {offsets = [0, 0], sizes = [1, 4], strides = [1, 1]} : vector<4x4xf32> to vector<1x4xf32>
    %669 = vector.extract_strided_slice %667 {offsets = [1, 0], sizes = [1, 4], strides = [1, 1]} : vector<4x4xf32> to vector<1x4xf32>
    %670 = tpu.concatenate %668, %669 in 1 : vector<1x4xf32>, vector<1x4xf32> -> vector<1x8xf32>
    %671 = vector.extract_strided_slice %667 {offsets = [2, 0], sizes = [1, 4], strides = [1, 1]} : vector<4x4xf32> to vector<1x4xf32>
    %672 = vector.extract_strided_slice %667 {offsets = [3, 0], sizes = [1, 4], strides = [1, 1]} : vector<4x4xf32> to vector<1x4xf32>
    %673 = tpu.concatenate %671, %672 in 1 : vector<1x4xf32>, vector<1x4xf32> -> vector<1x8xf32>
    %674 = tpu.concatenate %670, %673 in 0 : vector<1x8xf32>, vector<1x8xf32> -> vector<2x8xf32>
    %675 = tpu.concatenate %472, %674 in 1 : vector<2x16xf32>, vector<2x8xf32> -> vector<2x24xf32>
    %cst_123 = arith.constant dense<0.000000e+00> : vector<2x8xf32>
    %676 = tpu.matmul %675, %6, %cst_123 {dimension_numbers = #tpu.dot_dimension_numbers<[1], [0], [0], [1], [0, 0, 1, 1], [], []>} : vector<2x24xf32>, vector<24x8xf32>, vector<2x8xf32> -> vector<2x8xf32>
    %677 = vector.broadcast %7 : vector<1x8xf32> to vector<2x8xf32>
    %678 = arith.addf %676, %677 : vector<2x8xf32>
    %679 = tpu.concatenate %31, %55 in 0 : vector<1x8xf32>, vector<1x8xf32> -> vector<2x8xf32>
    %680 = arith.addf %678, %679 : vector<2x8xf32>
    %681 = arith.negf %680 : vector<2x8xf32>
    %682 = math.exp %681 : vector<2x8xf32>
    %cst_124 = arith.constant 1.000000e+00 : f32
    %683 = vector.broadcast %cst_124 : f32 to vector<2x8xf32>
    %684 = arith.addf %683, %682 : vector<2x8xf32>
    %685 = arith.divf %683, %684 : vector<2x8xf32>
    %c0_125 = arith.constant 0 : index
    %c0_126 = arith.constant 0 : index
    %686 = vector.load %arg14[%c0_125, %c0_126] : memref<2x8xf32, #tpu.memory_space<vmem>>, vector<2x8xf32>
    tpu.vector_store %arg14[%c0_125, %c0_126], %685 {strides = array<i32>} : memref<2x8xf32, #tpu.memory_space<vmem>>, vector<2x8xf32>,
    return
  }
}

</mosaic_0001>

<llo_original>
// kernel: tpu_custom_call.1
$region0: #{tpu_custom_call.1}
  #allocation0 [shape = 'u32[]', space=smem, size = 0x4, offset = 0x4, fixed_abs, tag = 'smem constant byte address 0x4 - core index']
  #allocation1 [shape = 'u32[144,128]{1,0:T(1,128)}', space=vmem, size = 0x12000, scoped, tag = 'internal scratch']
  %s0 = inlined_call_operand.vmem [shape: f32[2,16,8], index: 0, kind: input, shape index: {}]
  %s1 = inlined_call_operand.vmem [shape: f32[32,16], index: 1, kind: input, shape index: {}]
  %s2 = inlined_call_operand.vmem [shape: f32[1,16], index: 2, kind: input, shape index: {}]
  %s3 = inlined_call_operand.vmem [shape: f32[16,48], index: 3, kind: input, shape index: {}]
  %s4 = inlined_call_operand.vmem [shape: f32[16,48], index: 4, kind: input, shape index: {}]
  %s5 = inlined_call_operand.vmem [shape: f32[1,48], index: 5, kind: input, shape index: {}]
  %s6 = inlined_call_operand.vmem [shape: f32[1,48], index: 6, kind: input, shape index: {}]
  %s7 = inlined_call_operand.vmem [shape: f32[16,12], index: 7, kind: input, shape index: {}]
  %s8 = inlined_call_operand.vmem [shape: f32[4,12], index: 8, kind: input, shape index: {}]
  %s9 = inlined_call_operand.vmem [shape: f32[1,12], index: 9, kind: input, shape index: {}]
  %s10 = inlined_call_operand.vmem [shape: f32[1,12], index: 10, kind: input, shape index: {}]
  %s11 = inlined_call_operand.vmem [shape: f32[24,8], index: 11, kind: input, shape index: {}]
  %s12 = inlined_call_operand.vmem [shape: f32[1,8], index: 12, kind: input, shape index: {}]
  %s13 = inlined_call_operand.vmem [shape: f32[1,4], index: 13, kind: input, shape index: {}]
  %s14 = inlined_call_operand.hbm [shape: f32[2,8], index: 14, kind: output, shape index: {}]
  %s15 = sld [smem:[#allocation0]]
  $region66: #{tpu_custom_call.1} parent=0
    _
  %s17 = ssub.s32 1, %s15
  %s18 = scalar_select 0, %s17, %s15
  $region1: #{tpu_custom_call.1} parent=0
    #allocation2 [shape = 'u8[1024]{0}', space=vmem, size = 0x400, scoped, tag = 'output window, operand 0, single buffered']
    #allocation3 [shape = 's32[1]{0}', space=sflag, size = 0x4, scoped, tag = 'scoped memory for tpu_custom_call.1']
    %19 = vsyncpa [#allocation3], 0
    // Predicated region
    $region2: #{tpu_custom_call.1} parent=1 // pred_check
      _
    $region3: #{tpu_custom_call.1} parent=1 // pred_check_branch
      %21 = sbr.rel (0) target = $region5
    $region4: #{tpu_custom_call.1} parent=1 // pred_region
      _
    $region5: #{tpu_custom_call.1} parent=1 // pred_fallthru
      _
    // Predicated region
    $region6: #{tpu_custom_call.1} parent=1 // pred_check
      _
    $region7: #{tpu_custom_call.1} parent=1 // pred_check_branch
      %23 = sbr.rel (0) target = $region9
    $region8: #{tpu_custom_call.1} parent=1 // pred_region
      _
    $region9: #{tpu_custom_call.1} parent=1 // pred_fallthru
      _
    // Predicated region
    $region10: #{tpu_custom_call.1} parent=1 // pred_check
      _
    $region11: #{tpu_custom_call.1} parent=1 // pred_check_branch
      %25 = sbr.rel (0) target = $region13
    $region12: #{tpu_custom_call.1} parent=1 // pred_region
      _
    $region13: #{tpu_custom_call.1} parent=1 // pred_fallthru
      _
    // Predicated region
    $region14: #{tpu_custom_call.1} parent=1 // pred_check
      _
    $region15: #{tpu_custom_call.1} parent=1 // pred_check_branch
      %27 = sbr.rel (0) target = $region17
    $region16: #{tpu_custom_call.1} parent=1 // pred_region
      _
    $region17: #{tpu_custom_call.1} parent=1 // pred_fallthru
      _
    // Predicated region
    $region18: #{tpu_custom_call.1} parent=1 // pred_check
      _
    $region19: #{tpu_custom_call.1} parent=1 // pred_check_branch
      %29 = sbr.rel (0) target = $region21
    $region20: #{tpu_custom_call.1} parent=1 // pred_region
      _
    $region21: #{tpu_custom_call.1} parent=1 // pred_fallthru
      _
    // Predicated region
    $region22: #{tpu_custom_call.1} parent=1 // pred_check
      _
    $region23: #{tpu_custom_call.1} parent=1 // pred_check_branch
      %31 = sbr.rel (0) target = $region25
    $region24: #{tpu_custom_call.1} parent=1 // pred_region
      _
    $region25: #{tpu_custom_call.1} parent=1 // pred_fallthru
      _
    // Predicated region
    $region26: #{tpu_custom_call.1} parent=1 // pred_check
      _
    $region27: #{tpu_custom_call.1} parent=1 // pred_check_branch
      %33 = sbr.rel (0) target = $region29
    $region28: #{tpu_custom_call.1} parent=1 // pred_region
      _
    $region29: #{tpu_custom_call.1} parent=1 // pred_fallthru
      _
    // Predicated region
    $region30: #{tpu_custom_call.1} parent=1 // pred_check
      _
    $region31: #{tpu_custom_call.1} parent=1 // pred_check_branch
      %35 = sbr.rel (0) target = $region33
    $region32: #{tpu_custom_call.1} parent=1 // pred_region
      _
    $region33: #{tpu_custom_call.1} parent=1 // pred_fallthru
      _
    // Predicated region
    $region34: #{tpu_custom_call.1} parent=1 // pred_check
      _
    $region35: #{tpu_custom_call.1} parent=1 // pred_check_branch
      %37 = sbr.rel (0) target = $region37
    $region36: #{tpu_custom_call.1} parent=1 // pred_region
      _
    $region37: #{tpu_custom_call.1} parent=1 // pred_fallthru
      _
    // Predicated region
    $region38: #{tpu_custom_call.1} parent=1 // pred_check
      _
    $region39: #{tpu_custom_call.1} parent=1 // pred_check_branch
      %39 = sbr.rel (0) target = $region41
    $region40: #{tpu_custom_call.1} parent=1 // pred_region
      _
    $region41: #{tpu_custom_call.1} parent=1 // pred_fallthru
      _
    // Predicated region
    $region42: #{tpu_custom_call.1} parent=1 // pred_check
      _
    $region43: #{tpu_custom_call.1} parent=1 // pred_check_branch
      %41 = sbr.rel (0) target = $region45
    $region44: #{tpu_custom_call.1} parent=1 // pred_region
      _
    $region45: #{tpu_custom_call.1} parent=1 // pred_fallthru
      _
    // Predicated region
    $region46: #{tpu_custom_call.1} parent=1 // pred_check
      _
    $region47: #{tpu_custom_call.1} parent=1 // pred_check_branch
      %43 = sbr.rel (0) target = $region49
    $region48: #{tpu_custom_call.1} parent=1 // pred_region
      _
    $region49: #{tpu_custom_call.1} parent=1 // pred_fallthru
      _
    // Predicated region
    $region50: #{tpu_custom_call.1} parent=1 // pred_check
      _
    $region51: #{tpu_custom_call.1} parent=1 // pred_check_branch
      %45 = sbr.rel (0) target = $region53
    $region52: #{tpu_custom_call.1} parent=1 // pred_region
      _
    $region53: #{tpu_custom_call.1} parent=1 // pred_fallthru
      _
    // Predicated region
    $region54: #{tpu_custom_call.1} parent=1 // pred_check
      _
    $region55: #{tpu_custom_call.1} parent=1 // pred_check_branch
      %47 = sbr.rel (0) target = $region57
    $region56: #{tpu_custom_call.1} parent=1 // pred_region
      _
    $region57: #{tpu_custom_call.1} parent=1 // pred_fallthru
      _
    %v48 = vld [vmem:[%s1] sm:$0xff]
    %v49 = vld [vmem:[%s1 + $0x8] sm:$0xff]
    %v50 = vld [vmem:[%s1 + $0x10] sm:$0xff]
    %v51 = vld [vmem:[%s1 + $0x18] sm:$0xff]
    %v52 = vld [vmem:[%s2] sm:$0x1]
    %v53 = vld [vmem:[%s3] sm:$0xff]
    %v54 = vld [vmem:[%s3 + $0x8] sm:$0xff]
    %v55 = vld [vmem:[%s4] sm:$0xff]
    %v56 = vld [vmem:[%s4 + $0x8] sm:$0xff]
    %v57 = vld [vmem:[%s5] sm:$0x1]
    %v58 = vld [vmem:[%s6] sm:$0x1]
    %v59 = vld [vmem:[%s11] sm:$0xff]
    %v60 = vld [vmem:[%s11 + $0x8] sm:$0xff]
    %v61 = vld [vmem:[%s11 + $0x10] sm:$0xff]
    %v62 = vld [vmem:[%s12] sm:$0x1]
    %v63 = vld [vmem:[%s0] sm:$0xff]
    %v64 = vld [vmem:[%s0 + $0x8] sm:$0xff]
    %vm67 = vcmask 1046528
    %v68 = vrot.slane %v63, 1
    %v69 = vrot.slane %v64, 1
    %v70 = vsel %vm67, %v68, %v69
    %71 = vrot.lane.b32.xlu0 %v70, 8
    %v72 = vpop.permute.xlu0 %71
    %73 = vrot.lane.b32.xlu0 %v69, 8
    %v74 = vpop.permute.xlu0 %73
    %vm77 = vcmask 1045504
    %v78 = vrot.slane %v63, 2
    %v79 = vrot.slane %v64, 2
    %v80 = vsel %vm77, %v78, %v79
    %81 = vrot.lane.b32.xlu0 %v80, 16
    %v82 = vpop.permute.xlu0 %81
    %83 = vrot.lane.b32.xlu0 %v79, 16
    %v84 = vpop.permute.xlu0 %83
    %vm87 = vcmask 1044480
    %v88 = vrot.slane %v63, 3
    %v89 = vrot.slane %v64, 3
    %v90 = vsel %vm87, %v88, %v89
    %91 = vrot.lane.b32.xlu0 %v90, 24
    %v92 = vpop.permute.xlu0 %91
    %93 = vrot.lane.b32.xlu0 %v89, 24
    %v94 = vpop.permute.xlu0 %93
    %vm97 = vcmask 64512
    %v98 = vsel %vm97, %v63, %v72
    %v99 = vsel %vm97, %v64, %v74
    %vm100 = vcmask 130048
    %v101 = vsel %vm100, %v98, %v82
    %v102 = vsel %vm100, %v99, %v84
    %vm103 = vcmask 195584
    %v104 = vsel %vm103, %v101, %v92
    %v105 = vsel %vm103, %v102, %v94
    %v107 = vlaneseq
    %v108 = vshrl.u32 %v107, 7
    %v109 = vsub.s32 0, %v108
    %v110 = vrot.slane %v52, %v109
    %vm112 = vcmask 261120
    %v114 = vsel %vm112, %v104, 0
    %v117 = vsel %vm112, %v105, 0
    %119 = vmatprep.subr.mxu0 0.0
    %120 = vmatpush1.msra.mxu0 %v48
    %121 = vmatprep.subr.mxu0 0.0
    %122 = vmatpush1.msra.mxu0 %v49
    %123 = vmatprep.subr.mxu0 0.0
    %124 = vmatpush1.msra.mxu0 %v50
    %125 = vmatprep.subr.mxu0 0.0
    %126 = vmatpush1.msra.mxu0 %v51
    %127 = vmatprep.subr.mxu0 0.0
    %128 = vmatpush1.msra.mxu0 0.0
    %129 = vmatprep.subr.mxu0 0.0
    %130 = vmatpush1.msra.mxu0 0.0
    %131 = vmatprep.subr.mxu0 0.0
    %132 = vmatpush1.msra.mxu0 0.0
    %133 = vmatprep.subr.mxu0 0.0
    %134 = vmatpush1.msra.mxu0 0.0
    %135 = vmatprep.subr.mxu0 0.0
    %136 = vmatpush1.msra.mxu0 0.0
    %137 = vmatprep.subr.mxu0 0.0
    %138 = vmatpush1.msra.mxu0 0.0
    %139 = vmatprep.subr.mxu0 0.0
    %140 = vmatpush1.msra.mxu0 0.0
    %141 = vmatprep.subr.mxu0 0.0
    %142 = vmatpush1.msra.mxu0 0.0
    %143 = vmatprep.subr.mxu0 0.0
    %144 = vmatpush1.msra.mxu0 0.0
    %145 = vmatprep.subr.mxu0 0.0
    %146 = vmatpush1.msra.mxu0 0.0
    %147 = vmatprep.subr.mxu0 0.0
    %148 = vmatpush1.msra.mxu0 0.0
    %149 = vmatprep.subr.mxu0 0.0
    %150 = vmatpush1.msra.mxu0 0.0
    %151 = vmatprep.subr.mxu0 0.0
    %152 = vmatpush1.msra.mxu0 0.0
    %153 = vmatprep.subr.mxu0 0.0
    %154 = vmatpush1.msra.mxu0 0.0
    %155 = vmatprep.subr.mxu0 0.0
    %156 = vmatpush1.msra.mxu0 0.0
    %157 = vmatprep.subr.mxu0 0.0
    %158 = vmatpush1.msra.mxu0 0.0
    %159 = vmatprep.subr.mxu0 0.0
    %160 = vmatpush1.msra.mxu0 0.0
    %161 = vmatprep.subr.mxu0 0.0
    %162 = vmatpush1.msra.mxu0 0.0
    %163 = vmatprep.subr.mxu0 0.0
    %164 = vmatpush1.msra.mxu0 0.0
    %165 = vmatprep.subr.mxu0 0.0
    %166 = vmatpush1.msra.mxu0 0.0
    %167 = vmatprep.subr.mxu0 0.0
    %168 = vmatpush1.msra.mxu0 0.0
    %169 = vmatprep.subr.mxu0 0.0
    %170 = vmatpush1.msra.mxu0 0.0
    %171 = vmatprep.subr.mxu0 0.0
    %172 = vmatpush1.msra.mxu0 0.0
    %173 = vmatprep.subr.mxu0 0.0
    %174 = vmatpush1.msra.mxu0 0.0
    %175 = vmatprep.subr.mxu0 0.0
    %176 = vmatpush1.msra.mxu0 0.0
    %177 = vmatprep.subr.mxu0 0.0
    %178 = vmatpush1.msra.mxu0 0.0
    %179 = vmatprep.subr.mxu0 0.0
    %180 = vmatpush1.msra.mxu0 0.0
    %181 = vmatprep.subr.mxu0 0.0
    %182 = vmatpush1.msra.mxu0 0.0
    %183 = vmatprep.mubr.f32.mxu0 0.0
    %184 = vmatmul.mubr.f32.gmra.mrb[0].mxu0 %v114
    %v185 = vpop.f32.mrb[0].mxu0
    %v186 = vadd.f32 %v110, %v185
    %v187 = vpop.f32.mrb[0].mxu0
    %188 = vmatprep.mubr.f32.mxu0 0.0
    %189 = vmatmul.mubr.f32.gmra.mrb[0].mxu0 %v117
    %v190 = vpop.f32.mrb[0].mxu0
    %v191 = vadd.f32 %v110, %v190
    %v192 = vpop.f32.mrb[0].mxu0
    %193 = vdwg.mxu0
    %v194 = vmax.f32 %v186, 0.0
    %v195 = vmax.f32 %v191, 0.0
    %v197 = vlaneseq
    %v198 = vshrl.u32 %v197, 7
    %v199 = vsub.s32 0, %v198
    %v200 = vrot.slane %v57, %v199
    %v203 = vsel %vm100, %v194, 0
    %v206 = vsel %vm100, %v195, 0
    %208 = vmatprep.subr.mxu0 0.0
    %209 = vmatpush1.msra.mxu0 %v53
    %210 = vmatprep.subr.mxu0 0.0
    %211 = vmatpush1.msra.mxu0 %v54
    %212 = vmatprep.subr.mxu0 0.0
    %213 = vmatpush1.msra.mxu0 0.0
    %214 = vmatprep.subr.mxu0 0.0
    %215 = vmatpush1.msra.mxu0 0.0
    %216 = vmatprep.subr.mxu0 0.0
    %217 = vmatpush1.msra.mxu0 0.0
    %218 = vmatprep.subr.mxu0 0.0
    %219 = vmatpush1.msra.mxu0 0.0
    %220 = vmatprep.subr.mxu0 0.0
    %221 = vmatpush1.msra.mxu0 0.0
    %222 = vmatprep.subr.mxu0 0.0
    %223 = vmatpush1.msra.mxu0 0.0
    %224 = vmatprep.subr.mxu0 0.0
    %225 = vmatpush1.msra.mxu0 0.0
    %226 = vmatprep.subr.mxu0 0.0
    %227 = vmatpush1.msra.mxu0 0.0
    %228 = vmatprep.subr.mxu0 0.0
    %229 = vmatpush1.msra.mxu0 0.0
    %230 = vmatprep.subr.mxu0 0.0
    %231 = vmatpush1.msra.mxu0 0.0
    %232 = vmatprep.subr.mxu0 0.0
    %233 = vmatpush1.msra.mxu0 0.0
    %234 = vmatprep.subr.mxu0 0.0
    %235 = vmatpush1.msra.mxu0 0.0
    %236 = vmatprep.subr.mxu0 0.0
    %237 = vmatpush1.msra.mxu0 0.0
    %238 = vmatprep.subr.mxu0 0.0
    %239 = vmatpush1.msra.mxu0 0.0
    %240 = vmatprep.subr.mxu0 0.0
    %241 = vmatpush1.msra.mxu0 0.0
    %242 = vmatprep.subr.mxu0 0.0
    %243 = vmatpush1.msra.mxu0 0.0
    %244 = vmatprep.subr.mxu0 0.0
    %245 = vmatpush1.msra.mxu0 0.0
    %246 = vmatprep.subr.mxu0 0.0
    %247 = vmatpush1.msra.mxu0 0.0
    %248 = vmatprep.subr.mxu0 0.0
    %249 = vmatpush1.msra.mxu0 0.0
    %250 = vmatprep.subr.mxu0 0.0
    %251 = vmatpush1.msra.mxu0 0.0
    %252 = vmatprep.subr.mxu0 0.0
    %253 = vmatpush1.msra.mxu0 0.0
    %254 = vmatprep.subr.mxu0 0.0
    %255 = vmatpush1.msra.mxu0 0.0
    %256 = vmatprep.subr.mxu0 0.0
    %257 = vmatpush1.msra.mxu0 0.0
    %258 = vmatprep.subr.mxu0 0.0
    %259 = vmatpush1.msra.mxu0 0.0
    %260 = vmatprep.subr.mxu0 0.0
    %261 = vmatpush1.msra.mxu0 0.0
    %262 = vmatprep.subr.mxu0 0.0
    %263 = vmatpush1.msra.mxu0 0.0
    %264 = vmatprep.subr.mxu0 0.0
    %265 = vmatpush1.msra.mxu0 0.0
    %266 = vmatprep.subr.mxu0 0.0
    %267 = vmatpush1.msra.mxu0 0.0
    %268 = vmatprep.subr.mxu0 0.0
    %269 = vmatpush1.msra.mxu0 0.0
    %270 = vmatprep.subr.mxu0 0.0
    %271 = vmatpush1.msra.mxu0 0.0
    %272 = vmatprep.mubr.f32.mxu0 0.0
    %273 = vmatmul.mubr.f32.gmra.mrb[0].mxu0 %v203
    %v274 = vpop.f32.mrb[0].mxu0
    %v275 = vadd.f32 %v200, %v274
    %v276 = vpop.f32.mrb[0].mxu0
    %277 = vmatprep.mubr.f32.mxu0 0.0
    %278 = vmatmul.mubr.f32.gmra.mrb[0].mxu0 %v206
    %v279 = vpop.f32.mrb[0].mxu0
    %v280 = vadd.f32 %v200, %v279
    %v281 = vpop.f32.mrb[0].mxu0
    %282 = vdwg.mxu0
    %v283 = vld [vmem:[%s7] sm:$0xff]
    %v284 = vld [vmem:[%s7 + $0x8] sm:$0xff]
    %v285 = vld [vmem:[%s9] sm:$0x1]
    %v287 = vlaneseq
    %v288 = vshrl.u32 %v287, 7
    %v289 = vsub.s32 0, %v288
    %v290 = vrot.slane %v285, %v289
    %v292 = vrot.slane %v194, 1
    %v293 = vrot.slane %v195, 1
    %v294 = vsel %vm67, %v292, %v293
    %v295 = vsel %vm100, %v294, 0
    %v297 = vsel %vm100, %v293, 0
    %299 = vmatprep.subr.mxu0 0.0
    %300 = vmatpush1.msra.mxu0 %v283
    %301 = vmatprep.subr.mxu0 0.0
    %302 = vmatpush1.msra.mxu0 %v284
    %303 = vmatprep.subr.mxu0 0.0
    %304 = vmatpush1.msra.mxu0 0.0
    %305 = vmatprep.subr.mxu0 0.0
    %306 = vmatpush1.msra.mxu0 0.0
    %307 = vmatprep.subr.mxu0 0.0
    %308 = vmatpush1.msra.mxu0 0.0
    %309 = vmatprep.subr.mxu0 0.0
    %310 = vmatpush1.msra.mxu0 0.0
    %311 = vmatprep.subr.mxu0 0.0
    %312 = vmatpush1.msra.mxu0 0.0
    %313 = vmatprep.subr.mxu0 0.0
    %314 = vmatpush1.msra.mxu0 0.0
    %315 = vmatprep.subr.mxu0 0.0
    %316 = vmatpush1.msra.mxu0 0.0
    %317 = vmatprep.subr.mxu0 0.0
    %318 = vmatpush1.msra.mxu0 0.0
    %319 = vmatprep.subr.mxu0 0.0
    %320 = vmatpush1.msra.mxu0 0.0
    %321 = vmatprep.subr.mxu0 0.0
    %322 = vmatpush1.msra.mxu0 0.0
    %323 = vmatprep.subr.mxu0 0.0
    %324 = vmatpush1.msra.mxu0 0.0
    %325 = vmatprep.subr.mxu0 0.0
    %326 = vmatpush1.msra.mxu0 0.0
    %327 = vmatprep.subr.mxu0 0.0
    %328 = vmatpush1.msra.mxu0 0.0
    %329 = vmatprep.subr.mxu0 0.0
    %330 = vmatpush1.msra.mxu0 0.0
    %331 = vmatprep.subr.mxu0 0.0
    %332 = vmatpush1.msra.mxu0 0.0
    %333 = vmatprep.subr.mxu0 0.0
    %334 = vmatpush1.msra.mxu0 0.0
    %335 = vmatprep.subr.mxu0 0.0
    %336 = vmatpush1.msra.mxu0 0.0
    %337 = vmatprep.subr.mxu0 0.0
    %338 = vmatpush1.msra.mxu0 0.0
    %339 = vmatprep.subr.mxu0 0.0
    %340 = vmatpush1.msra.mxu0 0.0
    %341 = vmatprep.subr.mxu0 0.0
    %342 = vmatpush1.msra.mxu0 0.0
    %343 = vmatprep.subr.mxu0 0.0
    %344 = vmatpush1.msra.mxu0 0.0
    %345 = vmatprep.subr.mxu0 0.0
    %346 = vmatpush1.msra.mxu0 0.0
    %347 = vmatprep.subr.mxu0 0.0
    %348 = vmatpush1.msra.mxu0 0.0
    %349 = vmatprep.subr.mxu0 0.0
    %350 = vmatpush1.msra.mxu0 0.0
    %351 = vmatprep.subr.mxu0 0.0
    %352 = vmatpush1.msra.mxu0 0.0
    %353 = vmatprep.subr.mxu0 0.0
    %354 = vmatpush1.msra.mxu0 0.0
    %355 = vmatprep.subr.mxu0 0.0
    %356 = vmatpush1.msra.mxu0 0.0
    %357 = vmatprep.subr.mxu0 0.0
    %358 = vmatpush1.msra.mxu0 0.0
    %359 = vmatprep.subr.mxu0 0.0
    %360 = vmatpush1.msra.mxu0 0.0
    %361 = vmatprep.subr.mxu0 0.0
    %362 = vmatpush1.msra.mxu0 0.0
    %363 = vmatprep.mubr.f32.mxu0 0.0
    %364 = vmatmul.mubr.f32.gmra.mrb[0].mxu0 %v295
    %v365 = vpop.f32.mrb[0].mxu0
    %v366 = vadd.f32 %v290, %v365
    %v367 = vpop.f32.mrb[0].mxu0
    %368 = vmatprep.mubr.f32.mxu0 0.0
    %369 = vmatmul.mubr.f32.gmra.mrb[0].mxu0 %v297
    %v370 = vpop.f32.mrb[0].mxu0
    %v371 = vadd.f32 %v290, %v370
    %v372 = vpop.f32.mrb[0].mxu0
    %373 = vdwg.mxu0
    %v374 = vld [vmem:[%s13] sm:$0x1]
    %v375 = vrot.slane %v64, 4
    %vm376 = vcmask 31744
    %v378 = vsel %vm376, %v374, 0
    %vm380 = vcmask 1043456
    %v381 = vsel %vm380, %v375, 0
    %383 = vmatprep.subr.mxu0 0.0
    %384 = vmatpush1.msra.mxu0 %v381
    %385 = vmatprep.subr.mxu0 0.0
    %386 = vmatpush1.msra.mxu0 0.0
    %387 = vmatprep.subr.mxu0 0.0
    %388 = vmatpush1.msra.mxu0 0.0
    %389 = vmatprep.subr.mxu0 0.0
    %390 = vmatpush1.msra.mxu0 0.0
    %391 = vmatprep.subr.mxu0 0.0
    %392 = vmatpush1.msra.mxu0 0.0
    %393 = vmatprep.subr.mxu0 0.0
    %394 = vmatpush1.msra.mxu0 0.0
    %395 = vmatprep.subr.mxu0 0.0
    %396 = vmatpush1.msra.mxu0 0.0
    %397 = vmatprep.subr.mxu0 0.0
    %398 = vmatpush1.msra.mxu0 0.0
    %399 = vmatprep.subr.mxu0 0.0
    %400 = vmatpush1.msra.mxu0 0.0
    %401 = vmatprep.subr.mxu0 0.0
    %402 = vmatpush1.msra.mxu0 0.0
    %403 = vmatprep.subr.mxu0 0.0
    %404 = vmatpush1.msra.mxu0 0.0
    %405 = vmatprep.subr.mxu0 0.0
    %406 = vmatpush1.msra.mxu0 0.0
    %407 = vmatprep.subr.mxu0 0.0
    %408 = vmatpush1.msra.mxu0 0.0
    %409 = vmatprep.subr.mxu0 0.0
    %410 = vmatpush1.msra.mxu0 0.0
    %411 = vmatprep.subr.mxu0 0.0
    %412 = vmatpush1.msra.mxu0 0.0
    %413 = vmatprep.subr.mxu0 0.0
    %414 = vmatpush1.msra.mxu0 0.0
    %415 = vmatprep.subr.mxu0 0.0
    %416 = vmatpush1.msra.mxu0 0.0
    %417 = vmatprep.subr.mxu0 0.0
    %418 = vmatpush1.msra.mxu0 0.0
    %419 = vmatprep.subr.mxu0 0.0
    %420 = vmatpush1.msra.mxu0 0.0
    %421 = vmatprep.subr.mxu0 0.0
    %422 = vmatpush1.msra.mxu0 0.0
    %423 = vmatprep.subr.mxu0 0.0
    %424 = vmatpush1.msra.mxu0 0.0
    %425 = vmatprep.subr.mxu0 0.0
    %426 = vmatpush1.msra.mxu0 0.0
    %427 = vmatprep.subr.mxu0 0.0
    %428 = vmatpush1.msra.mxu0 0.0
    %429 = vmatprep.subr.mxu0 0.0
    %430 = vmatpush1.msra.mxu0 0.0
    %431 = vmatprep.subr.mxu0 0.0
    %432 = vmatpush1.msra.mxu0 0.0
    %433 = vmatprep.subr.mxu0 0.0
    %434 = vmatpush1.msra.mxu0 0.0
    %435 = vmatprep.subr.mxu0 0.0
    %436 = vmatpush1.msra.mxu0 0.0
    %437 = vmatprep.subr.mxu0 0.0
    %438 = vmatpush1.msra.mxu0 0.0
    %439 = vmatprep.subr.mxu0 0.0
    %440 = vmatpush1.msra.mxu0 0.0
    %441 = vmatprep.subr.mxu0 0.0
    %442 = vmatpush1.msra.mxu0 0.0
    %443 = vmatprep.subr.mxu0 0.0
    %444 = vmatpush1.msra.mxu0 0.0
    %445 = vmatprep.subr.mxu0 0.0
    %446 = vmatpush1.msra.mxu0 0.0
    %447 = vmatprep.mubr.f32.mxu0 0.0
    %448 = vmatmul.mubr.f32.gmra.mrb[0].mxu0 %v378
    %v449 = vpop.f32.mrb[0].mxu0
    %v450 = vadd.f32 0.0, %v449
    %v451 = vpop.f32.mrb[0].mxu0
    %452 = vdwg.mxu0
    %s453 = scalar_lea.vmem %s0, 16
    %v454 = vld [vmem:[%s453] sm:$0xff]
    %v455 = vld [vmem:[%s453 + $0x8] sm:$0xff]
    %v458 = vrot.slane %v454, 1
    %v459 = vrot.slane %v455, 1
    %v460 = vsel %vm67, %v458, %v459
    %461 = vrot.lane.b32.xlu0 %v460, 8
    %v462 = vpop.permute.xlu0 %461
    %463 = vrot.lane.b32.xlu0 %v459, 8
    %v464 = vpop.permute.xlu0 %463
    %v467 = vrot.slane %v454, 2
    %v468 = vrot.slane %v455, 2
    %v469 = vsel %vm77, %v467, %v468
    %470 = vrot.lane.b32.xlu0 %v469, 16
    %v471 = vpop.permute.xlu0 %470
    %472 = vrot.lane.b32.xlu0 %v468, 16
    %v473 = vpop.permute.xlu0 %472
    %v476 = vrot.slane %v454, 3
    %v477 = vrot.slane %v455, 3
    %v478 = vsel %vm87, %v476, %v477
    %479 = vrot.lane.b32.xlu0 %v478, 24
    %v480 = vpop.permute.xlu0 %479
    %481 = vrot.lane.b32.xlu0 %v477, 24
    %v482 = vpop.permute.xlu0 %481
    %v485 = vsel %vm97, %v454, %v462
    %v486 = vsel %vm97, %v455, %v464
    %v487 = vsel %vm100, %v485, %v471
    %v488 = vsel %vm100, %v486, %v473
    %v489 = vsel %vm103, %v487, %v480
    %v490 = vsel %vm103, %v488, %v482
    %v492 = vsel %vm112, %v489, 0
    %v495 = vsel %vm112, %v490, 0
    %497 = vmatprep.subr.mxu0 0.0
    %498 = vmatpush1.msra.mxu0 %v48
    %499 = vmatprep.subr.mxu0 0.0
    %500 = vmatpush1.msra.mxu0 %v49
    %501 = vmatprep.subr.mxu0 0.0
    %502 = vmatpush1.msra.mxu0 %v50
    %503 = vmatprep.subr.mxu0 0.0
    %504 = vmatpush1.msra.mxu0 %v51
    %505 = vmatprep.subr.mxu0 0.0
    %506 = vmatpush1.msra.mxu0 0.0
    %507 = vmatprep.subr.mxu0 0.0
    %508 = vmatpush1.msra.mxu0 0.0
    %509 = vmatprep.subr.mxu0 0.0
    %510 = vmatpush1.msra.mxu0 0.0
    %511 = vmatprep.subr.mxu0 0.0
    %512 = vmatpush1.msra.mxu0 0.0
    %513 = vmatprep.subr.mxu0 0.0
    %514 = vmatpush1.msra.mxu0 0.0
    %515 = vmatprep.subr.mxu0 0.0
    %516 = vmatpush1.msra.mxu0 0.0
    %517 = vmatprep.subr.mxu0 0.0
    %518 = vmatpush1.msra.mxu0 0.0
    %519 = vmatprep.subr.mxu0 0.0
    %520 = vmatpush1.msra.mxu0 0.0
    %521 = vmatprep.subr.mxu0 0.0
    %522 = vmatpush1.msra.mxu0 0.0
    %523 = vmatprep.subr.mxu0 0.0
    %524 = vmatpush1.msra.mxu0 0.0
    %525 = vmatprep.subr.mxu0 0.0
    %526 = vmatpush1.msra.mxu0 0.0
    %527 = vmatprep.subr.mxu0 0.0
    %528 = vmatpush1.msra.mxu0 0.0
    %529 = vmatprep.subr.mxu0 0.0
    %530 = vmatpush1.msra.mxu0 0.0
    %531 = vmatprep.subr.mxu0 0.0
    %532 = vmatpush1.msra.mxu0 0.0
    %533 = vmatprep.subr.mxu0 0.0
    %534 = vmatpush1.msra.mxu0 0.0
    %535 = vmatprep.subr.mxu0 0.0
    %536 = vmatpush1.msra.mxu0 0.0
    %537 = vmatprep.subr.mxu0 0.0
    %538 = vmatpush1.msra.mxu0 0.0
    %539 = vmatprep.subr.mxu0 0.0
    %540 = vmatpush1.msra.mxu0 0.0
    %541 = vmatprep.subr.mxu0 0.0
    %542 = vmatpush1.msra.mxu0 0.0
    %543 = vmatprep.subr.mxu0 0.0
    %544 = vmatpush1.msra.mxu0 0.0
    %545 = vmatprep.subr.mxu0 0.0
    %546 = vmatpush1.msra.mxu0 0.0
    %547 = vmatprep.subr.mxu0 0.0
    %548 = vmatpush1.msra.mxu0 0.0
    %549 = vmatprep.subr.mxu0 0.0
    %550 = vmatpush1.msra.mxu0 0.0
    %551 = vmatprep.subr.mxu0 0.0
    %552 = vmatpush1.msra.mxu0 0.0
    %553 = vmatprep.subr.mxu0 0.0
    %554 = vmatpush1.msra.mxu0 0.0
    %555 = vmatprep.subr.mxu0 0.0
    %556 = vmatpush1.msra.mxu0 0.0
    %557 = vmatprep.subr.mxu0 0.0
    %558 = vmatpush1.msra.mxu0 0.0
    %559 = vmatprep.subr.mxu0 0.0
    %560 = vmatpush1.msra.mxu0 0.0
    %561 = vmatprep.mubr.f32.mxu0 0.0
    %562 = vmatmul.mubr.f32.gmra.mrb[0].mxu0 %v492
    %v563 = vpop.f32.mrb[0].mxu0
    %v564 = vadd.f32 %v110, %v563
    %v565 = vpop.f32.mrb[0].mxu0
    %566 = vmatprep.mubr.f32.mxu0 0.0
    %567 = vmatmul.mubr.f32.gmra.mrb[0].mxu0 %v495
    %v568 = vpop.f32.mrb[0].mxu0
    %v569 = vadd.f32 %v110, %v568
    %v570 = vpop.f32.mrb[0].mxu0
    %571 = vdwg.mxu0
    %v572 = vmax.f32 %v564, 0.0
    %v573 = vmax.f32 %v569, 0.0
    %v575 = vsel %vm100, %v572, 0
    %v578 = vsel %vm100, %v573, 0
    %580 = vmatprep.subr.mxu0 0.0
    %581 = vmatpush1.msra.mxu0 %v53
    %582 = vmatprep.subr.mxu0 0.0
    %583 = vmatpush1.msra.mxu0 %v54
    %584 = vmatprep.subr.mxu0 0.0
    %585 = vmatpush1.msra.mxu0 0.0
    %586 = vmatprep.subr.mxu0 0.0
    %587 = vmatpush1.msra.mxu0 0.0
    %588 = vmatprep.subr.mxu0 0.0
    %589 = vmatpush1.msra.mxu0 0.0
    %590 = vmatprep.subr.mxu0 0.0
    %591 = vmatpush1.msra.mxu0 0.0
    %592 = vmatprep.subr.mxu0 0.0
    %593 = vmatpush1.msra.mxu0 0.0
    %594 = vmatprep.subr.mxu0 0.0
    %595 = vmatpush1.msra.mxu0 0.0
    %596 = vmatprep.subr.mxu0 0.0
    %597 = vmatpush1.msra.mxu0 0.0
    %598 = vmatprep.subr.mxu0 0.0
    %599 = vmatpush1.msra.mxu0 0.0
    %600 = vmatprep.subr.mxu0 0.0
    %601 = vmatpush1.msra.mxu0 0.0
    %602 = vmatprep.subr.mxu0 0.0
    %603 = vmatpush1.msra.mxu0 0.0
    %604 = vmatprep.subr.mxu0 0.0
    %605 = vmatpush1.msra.mxu0 0.0
    %606 = vmatprep.subr.mxu0 0.0
    %607 = vmatpush1.msra.mxu0 0.0
    %608 = vmatprep.subr.mxu0 0.0
    %609 = vmatpush1.msra.mxu0 0.0
    %610 = vmatprep.subr.mxu0 0.0
    %611 = vmatpush1.msra.mxu0 0.0
    %612 = vmatprep.subr.mxu0 0.0
    %613 = vmatpush1.msra.mxu0 0.0
    %614 = vmatprep.subr.mxu0 0.0
    %615 = vmatpush1.msra.mxu0 0.0
    %616 = vmatprep.subr.mxu0 0.0
    %617 = vmatpush1.msra.mxu0 0.0
    %618 = vmatprep.subr.mxu0 0.0
    %619 = vmatpush1.msra.mxu0 0.0
    %620 = vmatprep.subr.mxu0 0.0
    %621 = vmatpush1.msra.mxu0 0.0
    %622 = vmatprep.subr.mxu0 0.0
    %623 = vmatpush1.msra.mxu0 0.0
    %624 = vmatprep.subr.mxu0 0.0
    %625 = vmatpush1.msra.mxu0 0.0
    %626 = vmatprep.subr.mxu0 0.0
    %627 = vmatpush1.msra.mxu0 0.0
    %628 = vmatprep.subr.mxu0 0.0
    %629 = vmatpush1.msra.mxu0 0.0
    %630 = vmatprep.subr.mxu0 0.0
    %631 = vmatpush1.msra.mxu0 0.0
    %632 = vmatprep.subr.mxu0 0.0
    %633 = vmatpush1.msra.mxu0 0.0
    %634 = vmatprep.subr.mxu0 0.0
    %635 = vmatpush1.msra.mxu0 0.0
    %636 = vmatprep.subr.mxu0 0.0
    %637 = vmatpush1.msra.mxu0 0.0
    %638 = vmatprep.subr.mxu0 0.0
    %639 = vmatpush1.msra.mxu0 0.0
    %640 = vmatprep.subr.mxu0 0.0
    %641 = vmatpush1.msra.mxu0 0.0
    %642 = vmatprep.subr.mxu0 0.0
    %643 = vmatpush1.msra.mxu0 0.0
    %644 = vmatprep.mubr.f32.mxu0 0.0
    %645 = vmatmul.mubr.f32.gmra.mrb[0].mxu0 %v575
    %v646 = vpop.f32.mrb[0].mxu0
    %v647 = vadd.f32 %v200, %v646
    %v648 = vpop.f32.mrb[0].mxu0
    %649 = vmatprep.mubr.f32.mxu0 0.0
    %650 = vmatmul.mubr.f32.gmra.mrb[0].mxu0 %v578
    %v651 = vpop.f32.mrb[0].mxu0
    %v652 = vadd.f32 %v200, %v651
    %v653 = vpop.f32.mrb[0].mxu0
    %654 = vdwg.mxu0
    %v655 = vrot.slane %v572, 1
    %v656 = vrot.slane %v573, 1
    %v657 = vsel %vm67, %v655, %v656
    %v658 = vsel %vm100, %v657, 0
    %v660 = vsel %vm100, %v656, 0
    %662 = vmatprep.subr.mxu0 0.0
    %663 = vmatpush1.msra.mxu0 %v283
    %664 = vmatprep.subr.mxu0 0.0
    %665 = vmatpush1.msra.mxu0 %v284
    %666 = vmatprep.subr.mxu0 0.0
    %667 = vmatpush1.msra.mxu0 0.0
    %668 = vmatprep.subr.mxu0 0.0
    %669 = vmatpush1.msra.mxu0 0.0
    %670 = vmatprep.subr.mxu0 0.0
    %671 = vmatpush1.msra.mxu0 0.0
    %672 = vmatprep.subr.mxu0 0.0
    %673 = vmatpush1.msra.mxu0 0.0
    %674 = vmatprep.subr.mxu0 0.0
    %675 = vmatpush1.msra.mxu0 0.0
    %676 = vmatprep.subr.mxu0 0.0
    %677 = vmatpush1.msra.mxu0 0.0
    %678 = vmatprep.subr.mxu0 0.0
    %679 = vmatpush1.msra.mxu0 0.0
    %680 = vmatprep.subr.mxu0 0.0
    %681 = vmatpush1.msra.mxu0 0.0
    %682 = vmatprep.subr.mxu0 0.0
    %683 = vmatpush1.msra.mxu0 0.0
    %684 = vmatprep.subr.mxu0 0.0
    %685 = vmatpush1.msra.mxu0 0.0
    %686 = vmatprep.subr.mxu0 0.0
    %687 = vmatpush1.msra.mxu0 0.0
    %688 = vmatprep.subr.mxu0 0.0
    %689 = vmatpush1.msra.mxu0 0.0
    %690 = vmatprep.subr.mxu0 0.0
    %691 = vmatpush1.msra.mxu0 0.0
    %692 = vmatprep.subr.mxu0 0.0
    %693 = vmatpush1.msra.mxu0 0.0
    %694 = vmatprep.subr.mxu0 0.0
    %695 = vmatpush1.msra.mxu0 0.0
    %696 = vmatprep.subr.mxu0 0.0
    %697 = vmatpush1.msra.mxu0 0.0
    %698 = vmatprep.subr.mxu0 0.0
    %699 = vmatpush1.msra.mxu0 0.0
    %700 = vmatprep.subr.mxu0 0.0
    %701 = vmatpush1.msra.mxu0 0.0
    %702 = vmatprep.subr.mxu0 0.0
    %703 = vmatpush1.msra.mxu0 0.0
    %704 = vmatprep.subr.mxu0 0.0
    %705 = vmatpush1.msra.mxu0 0.0
    %706 = vmatprep.subr.mxu0 0.0
    %707 = vmatpush1.msra.mxu0 0.0
    %708 = vmatprep.subr.mxu0 0.0
    %709 = vmatpush1.msra.mxu0 0.0
    %710 = vmatprep.subr.mxu0 0.0
    %711 = vmatpush1.msra.mxu0 0.0
    %712 = vmatprep.subr.mxu0 0.0
    %713 = vmatpush1.msra.mxu0 0.0
    %714 = vmatprep.subr.mxu0 0.0
    %715 = vmatpush1.msra.mxu0 0.0
    %716 = vmatprep.subr.mxu0 0.0
    %717 = vmatpush1.msra.mxu0 0.0
    %718 = vmatprep.subr.mxu0 0.0
    %719 = vmatpush1.msra.mxu0 0.0
    %720 = vmatprep.subr.mxu0 0.0
    %721 = vmatpush1.msra.mxu0 0.0
    %722 = vmatprep.subr.mxu0 0.0
    %723 = vmatpush1.msra.mxu0 0.0
    %724 = vmatprep.subr.mxu0 0.0
    %725 = vmatpush1.msra.mxu0 0.0
    %726 = vmatprep.mubr.f32.mxu0 0.0
    %727 = vmatmul.mubr.f32.gmra.mrb[0].mxu0 %v658
    %v728 = vpop.f32.mrb[0].mxu0
    %v729 = vadd.f32 %v290, %v728
    %v730 = vpop.f32.mrb[0].mxu0
    %731 = vmatprep.mubr.f32.mxu0 0.0
    %732 = vmatmul.mubr.f32.gmra.mrb[0].mxu0 %v660
    %v733 = vpop.f32.mrb[0].mxu0
    %v734 = vadd.f32 %v290, %v733
    %v735 = vpop.f32.mrb[0].mxu0
    %736 = vdwg.mxu0
    %v737 = vrot.slane %v455, 4
    %v738 = vsel %vm380, %v737, 0
    %740 = vmatprep.subr.mxu0 0.0
    %741 = vmatpush1.msra.mxu0 %v738
    %742 = vmatprep.subr.mxu0 0.0
    %743 = vmatpush1.msra.mxu0 0.0
    %744 = vmatprep.subr.mxu0 0.0
    %745 = vmatpush1.msra.mxu0 0.0
    %746 = vmatprep.subr.mxu0 0.0
    %747 = vmatpush1.msra.mxu0 0.0
    %748 = vmatprep.subr.mxu0 0.0
    %749 = vmatpush1.msra.mxu0 0.0
    %750 = vmatprep.subr.mxu0 0.0
    %751 = vmatpush1.msra.mxu0 0.0
    %752 = vmatprep.subr.mxu0 0.0
    %753 = vmatpush1.msra.mxu0 0.0
    %754 = vmatprep.subr.mxu0 0.0
    %755 = vmatpush1.msra.mxu0 0.0
    %756 = vmatprep.subr.mxu0 0.0
    %757 = vmatpush1.msra.mxu0 0.0
    %758 = vmatprep.subr.mxu0 0.0
    %759 = vmatpush1.msra.mxu0 0.0
    %760 = vmatprep.subr.mxu0 0.0
    %761 = vmatpush1.msra.mxu0 0.0
    %762 = vmatprep.subr.mxu0 0.0
    %763 = vmatpush1.msra.mxu0 0.0
    %764 = vmatprep.subr.mxu0 0.0
    %765 = vmatpush1.msra.mxu0 0.0
    %766 = vmatprep.subr.mxu0 0.0
    %767 = vmatpush1.msra.mxu0 0.0
    %768 = vmatprep.subr.mxu0 0.0
    %769 = vmatpush1.msra.mxu0 0.0
    %770 = vmatprep.subr.mxu0 0.0
    %771 = vmatpush1.msra.mxu0 0.0
    %772 = vmatprep.subr.mxu0 0.0
    %773 = vmatpush1.msra.mxu0 0.0
    %774 = vmatprep.subr.mxu0 0.0
    %775 = vmatpush1.msra.mxu0 0.0
    %776 = vmatprep.subr.mxu0 0.0
    %777 = vmatpush1.msra.mxu0 0.0
    %778 = vmatprep.subr.mxu0 0.0
    %779 = vmatpush1.msra.mxu0 0.0
    %780 = vmatprep.subr.mxu0 0.0
    %781 = vmatpush1.msra.mxu0 0.0
    %782 = vmatprep.subr.mxu0 0.0
    %783 = vmatpush1.msra.mxu0 0.0
    %784 = vmatprep.subr.mxu0 0.0
    %785 = vmatpush1.msra.mxu0 0.0
    %786 = vmatprep.subr.mxu0 0.0
    %787 = vmatpush1.msra.mxu0 0.0
    %788 = vmatprep.subr.mxu0 0.0
    %789 = vmatpush1.msra.mxu0 0.0
    %790 = vmatprep.subr.mxu0 0.0
    %791 = vmatpush1.msra.mxu0 0.0
    %792 = vmatprep.subr.mxu0 0.0
    %793 = vmatpush1.msra.mxu0 0.0
    %794 = vmatprep.subr.mxu0 0.0
    %795 = vmatpush1.msra.mxu0 0.0
    %796 = vmatprep.subr.mxu0 0.0
    %797 = vmatpush1.msra.mxu0 0.0
    %798 = vmatprep.subr.mxu0 0.0
    %799 = vmatpush1.msra.mxu0 0.0
    %800 = vmatprep.subr.mxu0 0.0
    %801 = vmatpush1.msra.mxu0 0.0
    %802 = vmatprep.subr.mxu0 0.0
    %803 = vmatpush1.msra.mxu0 0.0
    %804 = vmatprep.mubr.f32.mxu0 0.0
    %805 = vmatmul.mubr.f32.gmra.mrb[0].mxu0 %v378
    %v806 = vpop.f32.mrb[0].mxu0
    %v807 = vadd.f32 0.0, %v806
    %v808 = vpop.f32.mrb[0].mxu0
    %809 = vdwg.mxu0
    %v811 = vrot.slane %v647, 7
    %vm813 = vcmask 1040384
    %v814 = vsel %vm813, %v275, %v811
    %v816 = vlaneseq
    %v817 = vshrl.u32 %v816, 7
    %v818 = vsub.s32 0, %v817
    %v819 = vrot.slane %v58, %v818
    %v822 = vsel %vm100, 0.0, 0
    %824 = vmatprep.subr.mxu0 0.0
    %825 = vmatpush1.msra.mxu0 %v55
    %826 = vmatprep.subr.mxu0 0.0
    %827 = vmatpush1.msra.mxu0 %v56
    %828 = vmatprep.subr.mxu0 0.0
    %829 = vmatpush1.msra.mxu0 0.0
    %830 = vmatprep.subr.mxu0 0.0
    %831 = vmatpush1.msra.mxu0 0.0
    %832 = vmatprep.subr.mxu0 0.0
    %833 = vmatpush1.msra.mxu0 0.0
    %834 = vmatprep.subr.mxu0 0.0
    %835 = vmatpush1.msra.mxu0 0.0
    %836 = vmatprep.subr.mxu0 0.0
    %837 = vmatpush1.msra.mxu0 0.0
    %838 = vmatprep.subr.mxu0 0.0
    %839 = vmatpush1.msra.mxu0 0.0
    %840 = vmatprep.subr.mxu0 0.0
    %841 = vmatpush1.msra.mxu0 0.0
    %842 = vmatprep.subr.mxu0 0.0
    %843 = vmatpush1.msra.mxu0 0.0
    %844 = vmatprep.subr.mxu0 0.0
    %845 = vmatpush1.msra.mxu0 0.0
    %846 = vmatprep.subr.mxu0 0.0
    %847 = vmatpush1.msra.mxu0 0.0
    %848 = vmatprep.subr.mxu0 0.0
    %849 = vmatpush1.msra.mxu0 0.0
    %850 = vmatprep.subr.mxu0 0.0
    %851 = vmatpush1.msra.mxu0 0.0
    %852 = vmatprep.subr.mxu0 0.0
    %853 = vmatpush1.msra.mxu0 0.0
    %854 = vmatprep.subr.mxu0 0.0
    %855 = vmatpush1.msra.mxu0 0.0
    %856 = vmatprep.subr.mxu0 0.0
    %857 = vmatpush1.msra.mxu0 0.0
    %858 = vmatprep.subr.mxu0 0.0
    %859 = vmatpush1.msra.mxu0 0.0
    %860 = vmatprep.subr.mxu0 0.0
    %861 = vmatpush1.msra.mxu0 0.0
    %862 = vmatprep.subr.mxu0 0.0
    %863 = vmatpush1.msra.mxu0 0.0
    %864 = vmatprep.subr.mxu0 0.0
    %865 = vmatpush1.msra.mxu0 0.0
    %866 = vmatprep.subr.mxu0 0.0
    %867 = vmatpush1.msra.mxu0 0.0
    %868 = vmatprep.subr.mxu0 0.0
    %869 = vmatpush1.msra.mxu0 0.0
    %870 = vmatprep.subr.mxu0 0.0
    %871 = vmatpush1.msra.mxu0 0.0
    %872 = vmatprep.subr.mxu0 0.0
    %873 = vmatpush1.msra.mxu0 0.0
    %874 = vmatprep.subr.mxu0 0.0
    %875 = vmatpush1.msra.mxu0 0.0
    %876 = vmatprep.subr.mxu0 0.0
    %877 = vmatpush1.msra.mxu0 0.0
    %878 = vmatprep.subr.mxu0 0.0
    %879 = vmatpush1.msra.mxu0 0.0
    %880 = vmatprep.subr.mxu0 0.0
    %881 = vmatpush1.msra.mxu0 0.0
    %882 = vmatprep.subr.mxu0 0.0
    %883 = vmatpush1.msra.mxu0 0.0
    %884 = vmatprep.subr.mxu0 0.0
    %885 = vmatpush1.msra.mxu0 0.0
    %886 = vmatprep.subr.mxu0 0.0
    %887 = vmatpush1.msra.mxu0 0.0
    %888 = vmatprep.mubr.f32.mxu0 0.0
    %889 = vmatmul.mubr.f32.gmra.mrb[0].mxu0 %v822
    %v890 = vpop.f32.mrb[0].mxu0
    %v891 = vadd.f32 %v819, %v890
    %v892 = vpop.f32.mrb[0].mxu0
    %893 = vdwg.mxu0
    %v894 = vadd.f32 %v814, %v891
    %v895 = vxor.u32 %v894, 2147483648
    %v896 = vmul.f32 %v895, 1.442695
    %v897 = vpow.pop %v896
    %v898 = vadd.f32 %v897, 1.0
    %v899 = vrcp.pop %v898
    %v900 = vmul.f32 1.0, %v899
    %902 = vrot.lane.b32.xlu0 %v891, 96
    %v903 = vpop.permute.xlu0 %902
    %v905 = vmul.f32 %v900, %v903
    %907 = vrot.lane.b32.xlu0 %v905, 32
    %v908 = vpop.permute.xlu0 %907
    %v910 = vadd.f32 %v814, %v908
    %v911 = vtanh.pop %v910
    %v912 = vsub.f32 1.0, %v900
    %914 = vrot.lane.b32.xlu0 %v911, 112
    %v915 = vpop.permute.xlu0 %914
    %v917 = vmul.f32 %v912, %v915
    %v918 = vmul.f32 %v900, 0.0
    %v919 = vadd.f32 %v917, %v918
    %v921 = vrot.slane %v275, 1
    %v923 = vsel %vm813, %v921, %v647
    %925 = vrot.lane.b32.xlu0 %v919, 112
    %v926 = vpop.permute.xlu0 %925
    %v927 = vsel %vm100, %v926, 0
    %929 = vmatprep.subr.mxu0 0.0
    %930 = vmatpush1.msra.mxu0 %v55
    %931 = vmatprep.subr.mxu0 0.0
    %932 = vmatpush1.msra.mxu0 %v56
    %933 = vmatprep.subr.mxu0 0.0
    %934 = vmatpush1.msra.mxu0 0.0
    %935 = vmatprep.subr.mxu0 0.0
    %936 = vmatpush1.msra.mxu0 0.0
    %937 = vmatprep.subr.mxu0 0.0
    %938 = vmatpush1.msra.mxu0 0.0
    %939 = vmatprep.subr.mxu0 0.0
    %940 = vmatpush1.msra.mxu0 0.0
    %941 = vmatprep.subr.mxu0 0.0
    %942 = vmatpush1.msra.mxu0 0.0
    %943 = vmatprep.subr.mxu0 0.0
    %944 = vmatpush1.msra.mxu0 0.0
    %945 = vmatprep.subr.mxu0 0.0
    %946 = vmatpush1.msra.mxu0 0.0
    %947 = vmatprep.subr.mxu0 0.0
    %948 = vmatpush1.msra.mxu0 0.0
    %949 = vmatprep.subr.mxu0 0.0
    %950 = vmatpush1.msra.mxu0 0.0
    %951 = vmatprep.subr.mxu0 0.0
    %952 = vmatpush1.msra.mxu0 0.0
    %953 = vmatprep.subr.mxu0 0.0
    %954 = vmatpush1.msra.mxu0 0.0
    %955 = vmatprep.subr.mxu0 0.0
    %956 = vmatpush1.msra.mxu0 0.0
    %957 = vmatprep.subr.mxu0 0.0
    %958 = vmatpush1.msra.mxu0 0.0
    %959 = vmatprep.subr.mxu0 0.0
    %960 = vmatpush1.msra.mxu0 0.0
    %961 = vmatprep.subr.mxu0 0.0
    %962 = vmatpush1.msra.mxu0 0.0
    %963 = vmatprep.subr.mxu0 0.0
    %964 = vmatpush1.msra.mxu0 0.0
    %965 = vmatprep.subr.mxu0 0.0
    %966 = vmatpush1.msra.mxu0 0.0
    %967 = vmatprep.subr.mxu0 0.0
    %968 = vmatpush1.msra.mxu0 0.0
    %969 = vmatprep.subr.mxu0 0.0
    %970 = vmatpush1.msra.mxu0 0.0
    %971 = vmatprep.subr.mxu0 0.0
    %972 = vmatpush1.msra.mxu0 0.0
    %973 = vmatprep.subr.mxu0 0.0
    %974 = vmatpush1.msra.mxu0 0.0
    %975 = vmatprep.subr.mxu0 0.0
    %976 = vmatpush1.msra.mxu0 0.0
    %977 = vmatprep.subr.mxu0 0.0
    %978 = vmatpush1.msra.mxu0 0.0
    %979 = vmatprep.subr.mxu0 0.0
    %980 = vmatpush1.msra.mxu0 0.0
    %981 = vmatprep.subr.mxu0 0.0
    %982 = vmatpush1.msra.mxu0 0.0
    %983 = vmatprep.subr.mxu0 0.0
    %984 = vmatpush1.msra.mxu0 0.0
    %985 = vmatprep.subr.mxu0 0.0
    %986 = vmatpush1.msra.mxu0 0.0
    %987 = vmatprep.subr.mxu0 0.0
    %988 = vmatpush1.msra.mxu0 0.0
    %989 = vmatprep.subr.mxu0 0.0
    %990 = vmatpush1.msra.mxu0 0.0
    %991 = vmatprep.subr.mxu0 0.0
    %992 = vmatpush1.msra.mxu0 0.0
    %993 = vmatprep.mubr.f32.mxu0 0.0
    %994 = vmatmul.mubr.f32.gmra.mrb[0].mxu0 %v927
    %v995 = vpop.f32.mrb[0].mxu0
    %v996 = vadd.f32 %v819, %v995
    %v997 = vpop.f32.mrb[0].mxu0
    %998 = vdwg.mxu0
    %v999 = vadd.f32 %v923, %v996
    %v1000 = vxor.u32 %v999, 2147483648
    %v1001 = vmul.f32 %v1000, 1.442695
    %v1002 = vpow.pop %v1001
    %v1003 = vadd.f32 %v1002, 1.0
    %v1004 = vrcp.pop %v1003
    %v1005 = vmul.f32 1.0, %v1004
    %1007 = vrot.lane.b32.xlu0 %v996, 96
    %v1008 = vpop.permute.xlu0 %1007
    %v1010 = vmul.f32 %v1005, %v1008
    %1012 = vrot.lane.b32.xlu0 %v1010, 32
    %v1013 = vpop.permute.xlu0 %1012
    %v1015 = vadd.f32 %v923, %v1013
    %v1016 = vtanh.pop %v1015
    %v1017 = vsub.f32 1.0, %v1005
    %1019 = vrot.lane.b32.xlu0 %v1016, 112
    %v1020 = vpop.permute.xlu0 %1019
    %v1022 = vmul.f32 %v1017, %v1020
    %v1023 = vmul.f32 %v1005, %v919
    %v1024 = vadd.f32 %v1022, %v1023
    %v1025 = vrot.slane %v275, 2
    %v1027 = vrot.slane %v647, 1
    %v1029 = vsel %vm813, %v1025, %v1027
    %1031 = vrot.lane.b32.xlu0 %v1024, 112
    %v1032 = vpop.permute.xlu0 %1031
    %v1033 = vsel %vm100, %v1032, 0
    %1035 = vmatprep.subr.mxu0 0.0
    %1036 = vmatpush1.msra.mxu0 %v55
    %1037 = vmatprep.subr.mxu0 0.0
    %1038 = vmatpush1.msra.mxu0 %v56
    %1039 = vmatprep.subr.mxu0 0.0
    %1040 = vmatpush1.msra.mxu0 0.0
    %1041 = vmatprep.subr.mxu0 0.0
    %1042 = vmatpush1.msra.mxu0 0.0
    %1043 = vmatprep.subr.mxu0 0.0
    %1044 = vmatpush1.msra.mxu0 0.0
    %1045 = vmatprep.subr.mxu0 0.0
    %1046 = vmatpush1.msra.mxu0 0.0
    %1047 = vmatprep.subr.mxu0 0.0
    %1048 = vmatpush1.msra.mxu0 0.0
    %1049 = vmatprep.subr.mxu0 0.0
    %1050 = vmatpush1.msra.mxu0 0.0
    %1051 = vmatprep.subr.mxu0 0.0
    %1052 = vmatpush1.msra.mxu0 0.0
    %1053 = vmatprep.subr.mxu0 0.0
    %1054 = vmatpush1.msra.mxu0 0.0
    %1055 = vmatprep.subr.mxu0 0.0
    %1056 = vmatpush1.msra.mxu0 0.0
    %1057 = vmatprep.subr.mxu0 0.0
    %1058 = vmatpush1.msra.mxu0 0.0
    %1059 = vmatprep.subr.mxu0 0.0
    %1060 = vmatpush1.msra.mxu0 0.0
    %1061 = vmatprep.subr.mxu0 0.0
    %1062 = vmatpush1.msra.mxu0 0.0
    %1063 = vmatprep.subr.mxu0 0.0
    %1064 = vmatpush1.msra.mxu0 0.0
    %1065 = vmatprep.subr.mxu0 0.0
    %1066 = vmatpush1.msra.mxu0 0.0
    %1067 = vmatprep.subr.mxu0 0.0
    %1068 = vmatpush1.msra.mxu0 0.0
    %1069 = vmatprep.subr.mxu0 0.0
    %1070 = vmatpush1.msra.mxu0 0.0
    %1071 = vmatprep.subr.mxu0 0.0
    %1072 = vmatpush1.msra.mxu0 0.0
    %1073 = vmatprep.subr.mxu0 0.0
    %1074 = vmatpush1.msra.mxu0 0.0
    %1075 = vmatprep.subr.mxu0 0.0
    %1076 = vmatpush1.msra.mxu0 0.0
    %1077 = vmatprep.subr.mxu0 0.0
    %1078 = vmatpush1.msra.mxu0 0.0
    %1079 = vmatprep.subr.mxu0 0.0
    %1080 = vmatpush1.msra.mxu0 0.0
    %1081 = vmatprep.subr.mxu0 0.0
    %1082 = vmatpush1.msra.mxu0 0.0
    %1083 = vmatprep.subr.mxu0 0.0
    %1084 = vmatpush1.msra.mxu0 0.0
    %1085 = vmatprep.subr.mxu0 0.0
    %1086 = vmatpush1.msra.mxu0 0.0
    %1087 = vmatprep.subr.mxu0 0.0
    %1088 = vmatpush1.msra.mxu0 0.0
    %1089 = vmatprep.subr.mxu0 0.0
    %1090 = vmatpush1.msra.mxu0 0.0
    %1091 = vmatprep.subr.mxu0 0.0
    %1092 = vmatpush1.msra.mxu0 0.0
    %1093 = vmatprep.subr.mxu0 0.0
    %1094 = vmatpush1.msra.mxu0 0.0
    %1095 = vmatprep.subr.mxu0 0.0
    %1096 = vmatpush1.msra.mxu0 0.0
    %1097 = vmatprep.subr.mxu0 0.0
    %1098 = vmatpush1.msra.mxu0 0.0
    %1099 = vmatprep.mubr.f32.mxu0 0.0
    %1100 = vmatmul.mubr.f32.gmra.mrb[0].mxu0 %v1033
    %v1101 = vpop.f32.mrb[0].mxu0
    %v1102 = vadd.f32 %v819, %v1101
    %v1103 = vpop.f32.mrb[0].mxu0
    %1104 = vdwg.mxu0
    %v1105 = vadd.f32 %v1029, %v1102
    %v1106 = vxor.u32 %v1105, 2147483648
    %v1107 = vmul.f32 %v1106, 1.442695
    %v1108 = vpow.pop %v1107
    %v1109 = vadd.f32 %v1108, 1.0
    %v1110 = vrcp.pop %v1109
    %v1111 = vmul.f32 1.0, %v1110
    %1113 = vrot.lane.b32.xlu0 %v1102, 96
    %v1114 = vpop.permute.xlu0 %1113
    %v1116 = vmul.f32 %v1111, %v1114
    %1118 = vrot.lane.b32.xlu0 %v1116, 32
    %v1119 = vpop.permute.xlu0 %1118
    %v1121 = vadd.f32 %v1029, %v1119
    %v1122 = vtanh.pop %v1121
    %v1123 = vsub.f32 1.0, %v1111
    %1125 = vrot.lane.b32.xlu0 %v1122, 112
    %v1126 = vpop.permute.xlu0 %1125
    %v1128 = vmul.f32 %v1123, %v1126
    %v1129 = vmul.f32 %v1111, %v1024
    %v1130 = vadd.f32 %v1128, %v1129
    %v1131 = vrot.slane %v275, 3
    %v1133 = vrot.slane %v647, 2
    %v1135 = vsel %vm813, %v1131, %v1133
    %1137 = vrot.lane.b32.xlu0 %v1130, 112
    %v1138 = vpop.permute.xlu0 %1137
    %v1139 = vsel %vm100, %v1138, 0
    %1141 = vmatprep.subr.mxu0 0.0
    %1142 = vmatpush1.msra.mxu0 %v55
    %1143 = vmatprep.subr.mxu0 0.0
    %1144 = vmatpush1.msra.mxu0 %v56
    %1145 = vmatprep.subr.mxu0 0.0
    %1146 = vmatpush1.msra.mxu0 0.0
    %1147 = vmatprep.subr.mxu0 0.0
    %1148 = vmatpush1.msra.mxu0 0.0
    %1149 = vmatprep.subr.mxu0 0.0
    %1150 = vmatpush1.msra.mxu0 0.0
    %1151 = vmatprep.subr.mxu0 0.0
    %1152 = vmatpush1.msra.mxu0 0.0
    %1153 = vmatprep.subr.mxu0 0.0
    %1154 = vmatpush1.msra.mxu0 0.0
    %1155 = vmatprep.subr.mxu0 0.0
    %1156 = vmatpush1.msra.mxu0 0.0
    %1157 = vmatprep.subr.mxu0 0.0
    %1158 = vmatpush1.msra.mxu0 0.0
    %1159 = vmatprep.subr.mxu0 0.0
    %1160 = vmatpush1.msra.mxu0 0.0
    %1161 = vmatprep.subr.mxu0 0.0
    %1162 = vmatpush1.msra.mxu0 0.0
    %1163 = vmatprep.subr.mxu0 0.0
    %1164 = vmatpush1.msra.mxu0 0.0
    %1165 = vmatprep.subr.mxu0 0.0
    %1166 = vmatpush1.msra.mxu0 0.0
    %1167 = vmatprep.subr.mxu0 0.0
    %1168 = vmatpush1.msra.mxu0 0.0
    %1169 = vmatprep.subr.mxu0 0.0
    %1170 = vmatpush1.msra.mxu0 0.0
    %1171 = vmatprep.subr.mxu0 0.0
    %1172 = vmatpush1.msra.mxu0 0.0
    %1173 = vmatprep.subr.mxu0 0.0
    %1174 = vmatpush1.msra.mxu0 0.0
    %1175 = vmatprep.subr.mxu0 0.0
    %1176 = vmatpush1.msra.mxu0 0.0
    %1177 = vmatprep.subr.mxu0 0.0
    %1178 = vmatpush1.msra.mxu0 0.0
    %1179 = vmatprep.subr.mxu0 0.0
    %1180 = vmatpush1.msra.mxu0 0.0
    %1181 = vmatprep.subr.mxu0 0.0
    %1182 = vmatpush1.msra.mxu0 0.0
    %1183 = vmatprep.subr.mxu0 0.0
    %1184 = vmatpush1.msra.mxu0 0.0
    %1185 = vmatprep.subr.mxu0 0.0
    %1186 = vmatpush1.msra.mxu0 0.0
    %1187 = vmatprep.subr.mxu0 0.0
    %1188 = vmatpush1.msra.mxu0 0.0
    %1189 = vmatprep.subr.mxu0 0.0
    %1190 = vmatpush1.msra.mxu0 0.0
    %1191 = vmatprep.subr.mxu0 0.0
    %1192 = vmatpush1.msra.mxu0 0.0
    %1193 = vmatprep.subr.mxu0 0.0
    %1194 = vmatpush1.msra.mxu0 0.0
    %1195 = vmatprep.subr.mxu0 0.0
    %1196 = vmatpush1.msra.mxu0 0.0
    %1197 = vmatprep.subr.mxu0 0.0
    %1198 = vmatpush1.msra.mxu0 0.0
    %1199 = vmatprep.subr.mxu0 0.0
    %1200 = vmatpush1.msra.mxu0 0.0
    %1201 = vmatprep.subr.mxu0 0.0
    %1202 = vmatpush1.msra.mxu0 0.0
    %1203 = vmatprep.subr.mxu0 0.0
    %1204 = vmatpush1.msra.mxu0 0.0
    %1205 = vmatprep.mubr.f32.mxu0 0.0
    %1206 = vmatmul.mubr.f32.gmra.mrb[0].mxu0 %v1139
    %v1207 = vpop.f32.mrb[0].mxu0
    %v1208 = vadd.f32 %v819, %v1207
    %v1209 = vpop.f32.mrb[0].mxu0
    %1210 = vdwg.mxu0
    %v1211 = vadd.f32 %v1135, %v1208
    %v1212 = vxor.u32 %v1211, 2147483648
    %v1213 = vmul.f32 %v1212, 1.442695
    %v1214 = vpow.pop %v1213
    %v1215 = vadd.f32 %v1214, 1.0
    %v1216 = vrcp.pop %v1215
    %v1217 = vmul.f32 1.0, %v1216
    %1219 = vrot.lane.b32.xlu0 %v1208, 96
    %v1220 = vpop.permute.xlu0 %1219
    %v1222 = vmul.f32 %v1217, %v1220
    %1224 = vrot.lane.b32.xlu0 %v1222, 32
    %v1225 = vpop.permute.xlu0 %1224
    %v1227 = vadd.f32 %v1135, %v1225
    %v1228 = vtanh.pop %v1227
    %v1229 = vsub.f32 1.0, %v1217
    %1231 = vrot.lane.b32.xlu0 %v1228, 112
    %v1232 = vpop.permute.xlu0 %1231
    %v1234 = vmul.f32 %v1229, %v1232
    %v1235 = vmul.f32 %v1217, %v1130
    %v1236 = vadd.f32 %v1234, %v1235
    %v1237 = vrot.slane %v275, 4
    %v1239 = vrot.slane %v647, 3
    %v1241 = vsel %vm813, %v1237, %v1239
    %1243 = vrot.lane.b32.xlu0 %v1236, 112
    %v1244 = vpop.permute.xlu0 %1243
    %v1245 = vsel %vm100, %v1244, 0
    %1247 = vmatprep.subr.mxu0 0.0
    %1248 = vmatpush1.msra.mxu0 %v55
    %1249 = vmatprep.subr.mxu0 0.0
    %1250 = vmatpush1.msra.mxu0 %v56
    %1251 = vmatprep.subr.mxu0 0.0
    %1252 = vmatpush1.msra.mxu0 0.0
    %1253 = vmatprep.subr.mxu0 0.0
    %1254 = vmatpush1.msra.mxu0 0.0
    %1255 = vmatprep.subr.mxu0 0.0
    %1256 = vmatpush1.msra.mxu0 0.0
    %1257 = vmatprep.subr.mxu0 0.0
    %1258 = vmatpush1.msra.mxu0 0.0
    %1259 = vmatprep.subr.mxu0 0.0
    %1260 = vmatpush1.msra.mxu0 0.0
    %1261 = vmatprep.subr.mxu0 0.0
    %1262 = vmatpush1.msra.mxu0 0.0
    %1263 = vmatprep.subr.mxu0 0.0
    %1264 = vmatpush1.msra.mxu0 0.0
    %1265 = vmatprep.subr.mxu0 0.0
    %1266 = vmatpush1.msra.mxu0 0.0
    %1267 = vmatprep.subr.mxu0 0.0
    %1268 = vmatpush1.msra.mxu0 0.0
    %1269 = vmatprep.subr.mxu0 0.0
    %1270 = vmatpush1.msra.mxu0 0.0
    %1271 = vmatprep.subr.mxu0 0.0
    %1272 = vmatpush1.msra.mxu0 0.0
    %1273 = vmatprep.subr.mxu0 0.0
    %1274 = vmatpush1.msra.mxu0 0.0
    %1275 = vmatprep.subr.mxu0 0.0
    %1276 = vmatpush1.msra.mxu0 0.0
    %1277 = vmatprep.subr.mxu0 0.0
    %1278 = vmatpush1.msra.mxu0 0.0
    %1279 = vmatprep.subr.mxu0 0.0
    %1280 = vmatpush1.msra.mxu0 0.0
    %1281 = vmatprep.subr.mxu0 0.0
    %1282 = vmatpush1.msra.mxu0 0.0
    %1283 = vmatprep.subr.mxu0 0.0
    %1284 = vmatpush1.msra.mxu0 0.0
    %1285 = vmatprep.subr.mxu0 0.0
    %1286 = vmatpush1.msra.mxu0 0.0
    %1287 = vmatprep.subr.mxu0 0.0
    %1288 = vmatpush1.msra.mxu0 0.0
    %1289 = vmatprep.subr.mxu0 0.0
    %1290 = vmatpush1.msra.mxu0 0.0
    %1291 = vmatprep.subr.mxu0 0.0
    %1292 = vmatpush1.msra.mxu0 0.0
    %1293 = vmatprep.subr.mxu0 0.0
    %1294 = vmatpush1.msra.mxu0 0.0
    %1295 = vmatprep.subr.mxu0 0.0
    %1296 = vmatpush1.msra.mxu0 0.0
    %1297 = vmatprep.subr.mxu0 0.0
    %1298 = vmatpush1.msra.mxu0 0.0
    %1299 = vmatprep.subr.mxu0 0.0
    %1300 = vmatpush1.msra.mxu0 0.0
    %1301 = vmatprep.subr.mxu0 0.0
    %1302 = vmatpush1.msra.mxu0 0.0
    %1303 = vmatprep.subr.mxu0 0.0
    %1304 = vmatpush1.msra.mxu0 0.0
    %1305 = vmatprep.subr.mxu0 0.0
    %1306 = vmatpush1.msra.mxu0 0.0
    %1307 = vmatprep.subr.mxu0 0.0
    %1308 = vmatpush1.msra.mxu0 0.0
    %1309 = vmatprep.subr.mxu0 0.0
    %1310 = vmatpush1.msra.mxu0 0.0
    %1311 = vmatprep.mubr.f32.mxu0 0.0
    %1312 = vmatmul.mubr.f32.gmra.mrb[0].mxu0 %v1245
    %v1313 = vpop.f32.mrb[0].mxu0
    %v1314 = vadd.f32 %v819, %v1313
    %v1315 = vpop.f32.mrb[0].mxu0
    %1316 = vdwg.mxu0
    %v1317 = vadd.f32 %v1241, %v1314
    %v1318 = vxor.u32 %v1317, 2147483648
    %v1319 = vmul.f32 %v1318, 1.442695
    %v1320 = vpow.pop %v1319
    %v1321 = vadd.f32 %v1320, 1.0
    %v1322 = vrcp.pop %v1321
    %v1323 = vmul.f32 1.0, %v1322
    %1325 = vrot.lane.b32.xlu0 %v1314, 96
    %v1326 = vpop.permute.xlu0 %1325
    %v1328 = vmul.f32 %v1323, %v1326
    %1330 = vrot.lane.b32.xlu0 %v1328, 32
    %v1331 = vpop.permute.xlu0 %1330
    %v1333 = vadd.f32 %v1241, %v1331
    %v1334 = vtanh.pop %v1333
    %v1335 = vsub.f32 1.0, %v1323
    %1337 = vrot.lane.b32.xlu0 %v1334, 112
    %v1338 = vpop.permute.xlu0 %1337
    %v1340 = vmul.f32 %v1335, %v1338
    %v1341 = vmul.f32 %v1323, %v1236
    %v1342 = vadd.f32 %v1340, %v1341
    %v1343 = vrot.slane %v275, 5
    %v1345 = vrot.slane %v647, 4
    %v1347 = vsel %vm813, %v1343, %v1345
    %1349 = vrot.lane.b32.xlu0 %v1342, 112
    %v1350 = vpop.permute.xlu0 %1349
    %v1351 = vsel %vm100, %v1350, 0
    %1353 = vmatprep.subr.mxu0 0.0
    %1354 = vmatpush1.msra.mxu0 %v55
    %1355 = vmatprep.subr.mxu0 0.0
    %1356 = vmatpush1.msra.mxu0 %v56
    %1357 = vmatprep.subr.mxu0 0.0
    %1358 = vmatpush1.msra.mxu0 0.0
    %1359 = vmatprep.subr.mxu0 0.0
    %1360 = vmatpush1.msra.mxu0 0.0
    %1361 = vmatprep.subr.mxu0 0.0
    %1362 = vmatpush1.msra.mxu0 0.0
    %1363 = vmatprep.subr.mxu0 0.0
    %1364 = vmatpush1.msra.mxu0 0.0
    %1365 = vmatprep.subr.mxu0 0.0
    %1366 = vmatpush1.msra.mxu0 0.0
    %1367 = vmatprep.subr.mxu0 0.0
    %1368 = vmatpush1.msra.mxu0 0.0
    %1369 = vmatprep.subr.mxu0 0.0
    %1370 = vmatpush1.msra.mxu0 0.0
    %1371 = vmatprep.subr.mxu0 0.0
    %1372 = vmatpush1.msra.mxu0 0.0
    %1373 = vmatprep.subr.mxu0 0.0
    %1374 = vmatpush1.msra.mxu0 0.0
    %1375 = vmatprep.subr.mxu0 0.0
    %1376 = vmatpush1.msra.mxu0 0.0
    %1377 = vmatprep.subr.mxu0 0.0
    %1378 = vmatpush1.msra.mxu0 0.0
    %1379 = vmatprep.subr.mxu0 0.0
    %1380 = vmatpush1.msra.mxu0 0.0
    %1381 = vmatprep.subr.mxu0 0.0
    %1382 = vmatpush1.msra.mxu0 0.0
    %1383 = vmatprep.subr.mxu0 0.0
    %1384 = vmatpush1.msra.mxu0 0.0
    %1385 = vmatprep.subr.mxu0 0.0
    %1386 = vmatpush1.msra.mxu0 0.0
    %1387 = vmatprep.subr.mxu0 0.0
    %1388 = vmatpush1.msra.mxu0 0.0
    %1389 = vmatprep.subr.mxu0 0.0
    %1390 = vmatpush1.msra.mxu0 0.0
    %1391 = vmatprep.subr.mxu0 0.0
    %1392 = vmatpush1.msra.mxu0 0.0
    %1393 = vmatprep.subr.mxu0 0.0
    %1394 = vmatpush1.msra.mxu0 0.0
    %1395 = vmatprep.subr.mxu0 0.0
    %1396 = vmatpush1.msra.mxu0 0.0
    %1397 = vmatprep.subr.mxu0 0.0
    %1398 = vmatpush1.msra.mxu0 0.0
    %1399 = vmatprep.subr.mxu0 0.0
    %1400 = vmatpush1.msra.mxu0 0.0
    %1401 = vmatprep.subr.mxu0 0.0
    %1402 = vmatpush1.msra.mxu0 0.0
    %1403 = vmatprep.subr.mxu0 0.0
    %1404 = vmatpush1.msra.mxu0 0.0
    %1405 = vmatprep.subr.mxu0 0.0
    %1406 = vmatpush1.msra.mxu0 0.0
    %1407 = vmatprep.subr.mxu0 0.0
    %1408 = vmatpush1.msra.mxu0 0.0
    %1409 = vmatprep.subr.mxu0 0.0
    %1410 = vmatpush1.msra.mxu0 0.0
    %1411 = vmatprep.subr.mxu0 0.0
    %1412 = vmatpush1.msra.mxu0 0.0
    %1413 = vmatprep.subr.mxu0 0.0
    %1414 = vmatpush1.msra.mxu0 0.0
    %1415 = vmatprep.subr.mxu0 0.0
    %1416 = vmatpush1.msra.mxu0 0.0
    %1417 = vmatprep.mubr.f32.mxu0 0.0
    %1418 = vmatmul.mubr.f32.gmra.mrb[0].mxu0 %v1351
    %v1419 = vpop.f32.mrb[0].mxu0
    %v1420 = vadd.f32 %v819, %v1419
    %v1421 = vpop.f32.mrb[0].mxu0
    %1422 = vdwg.mxu0
    %v1423 = vadd.f32 %v1347, %v1420
    %v1424 = vxor.u32 %v1423, 2147483648
    %v1425 = vmul.f32 %v1424, 1.442695
    %v1426 = vpow.pop %v1425
    %v1427 = vadd.f32 %v1426, 1.0
    %v1428 = vrcp.pop %v1427
    %v1429 = vmul.f32 1.0, %v1428
    %1431 = vrot.lane.b32.xlu0 %v1420, 96
    %v1432 = vpop.permute.xlu0 %1431
    %v1434 = vmul.f32 %v1429, %v1432
    %1436 = vrot.lane.b32.xlu0 %v1434, 32
    %v1437 = vpop.permute.xlu0 %1436
    %v1439 = vadd.f32 %v1347, %v1437
    %v1440 = vtanh.pop %v1439
    %v1441 = vsub.f32 1.0, %v1429
    %1443 = vrot.lane.b32.xlu0 %v1440, 112
    %v1444 = vpop.permute.xlu0 %1443
    %v1446 = vmul.f32 %v1441, %v1444
    %v1447 = vmul.f32 %v1429, %v1342
    %v1448 = vadd.f32 %v1446, %v1447
    %v1449 = vrot.slane %v275, 6
    %v1451 = vrot.slane %v647, 5
    %v1453 = vsel %vm813, %v1449, %v1451
    %1455 = vrot.lane.b32.xlu0 %v1448, 112
    %v1456 = vpop.permute.xlu0 %1455
    %v1457 = vsel %vm100, %v1456, 0
    %1459 = vmatprep.subr.mxu0 0.0
    %1460 = vmatpush1.msra.mxu0 %v55
    %1461 = vmatprep.subr.mxu0 0.0
    %1462 = vmatpush1.msra.mxu0 %v56
    %1463 = vmatprep.subr.mxu0 0.0
    %1464 = vmatpush1.msra.mxu0 0.0
    %1465 = vmatprep.subr.mxu0 0.0
    %1466 = vmatpush1.msra.mxu0 0.0
    %1467 = vmatprep.subr.mxu0 0.0
    %1468 = vmatpush1.msra.mxu0 0.0
    %1469 = vmatprep.subr.mxu0 0.0
    %1470 = vmatpush1.msra.mxu0 0.0
    %1471 = vmatprep.subr.mxu0 0.0
    %1472 = vmatpush1.msra.mxu0 0.0
    %1473 = vmatprep.subr.mxu0 0.0
    %1474 = vmatpush1.msra.mxu0 0.0
    %1475 = vmatprep.subr.mxu0 0.0
    %1476 = vmatpush1.msra.mxu0 0.0
    %1477 = vmatprep.subr.mxu0 0.0
    %1478 = vmatpush1.msra.mxu0 0.0
    %1479 = vmatprep.subr.mxu0 0.0
    %1480 = vmatpush1.msra.mxu0 0.0
    %1481 = vmatprep.subr.mxu0 0.0
    %1482 = vmatpush1.msra.mxu0 0.0
    %1483 = vmatprep.subr.mxu0 0.0
    %1484 = vmatpush1.msra.mxu0 0.0
    %1485 = vmatprep.subr.mxu0 0.0
    %1486 = vmatpush1.msra.mxu0 0.0
    %1487 = vmatprep.subr.mxu0 0.0
    %1488 = vmatpush1.msra.mxu0 0.0
    %1489 = vmatprep.subr.mxu0 0.0
    %1490 = vmatpush1.msra.mxu0 0.0
    %1491 = vmatprep.subr.mxu0 0.0
    %1492 = vmatpush1.msra.mxu0 0.0
    %1493 = vmatprep.subr.mxu0 0.0
    %1494 = vmatpush1.msra.mxu0 0.0
    %1495 = vmatprep.subr.mxu0 0.0
    %1496 = vmatpush1.msra.mxu0 0.0
    %1497 = vmatprep.subr.mxu0 0.0
    %1498 = vmatpush1.msra.mxu0 0.0
    %1499 = vmatprep.subr.mxu0 0.0
    %1500 = vmatpush1.msra.mxu0 0.0
    %1501 = vmatprep.subr.mxu0 0.0
    %1502 = vmatpush1.msra.mxu0 0.0
    %1503 = vmatprep.subr.mxu0 0.0
    %1504 = vmatpush1.msra.mxu0 0.0
    %1505 = vmatprep.subr.mxu0 0.0
    %1506 = vmatpush1.msra.mxu0 0.0
    %1507 = vmatprep.subr.mxu0 0.0
    %1508 = vmatpush1.msra.mxu0 0.0
    %1509 = vmatprep.subr.mxu0 0.0
    %1510 = vmatpush1.msra.mxu0 0.0
    %1511 = vmatprep.subr.mxu0 0.0
    %1512 = vmatpush1.msra.mxu0 0.0
    %1513 = vmatprep.subr.mxu0 0.0
    %1514 = vmatpush1.msra.mxu0 0.0
    %1515 = vmatprep.subr.mxu0 0.0
    %1516 = vmatpush1.msra.mxu0 0.0
    %1517 = vmatprep.subr.mxu0 0.0
    %1518 = vmatpush1.msra.mxu0 0.0
    %1519 = vmatprep.subr.mxu0 0.0
    %1520 = vmatpush1.msra.mxu0 0.0
    %1521 = vmatprep.subr.mxu0 0.0
    %1522 = vmatpush1.msra.mxu0 0.0
    %1523 = vmatprep.mubr.f32.mxu0 0.0
    %1524 = vmatmul.mubr.f32.gmra.mrb[0].mxu0 %v1457
    %v1525 = vpop.f32.mrb[0].mxu0
    %v1526 = vadd.f32 %v819, %v1525
    %v1527 = vpop.f32.mrb[0].mxu0
    %1528 = vdwg.mxu0
    %v1529 = vadd.f32 %v1453, %v1526
    %v1530 = vxor.u32 %v1529, 2147483648
    %v1531 = vmul.f32 %v1530, 1.442695
    %v1532 = vpow.pop %v1531
    %v1533 = vadd.f32 %v1532, 1.0
    %v1534 = vrcp.pop %v1533
    %v1535 = vmul.f32 1.0, %v1534
    %1537 = vrot.lane.b32.xlu0 %v1526, 96
    %v1538 = vpop.permute.xlu0 %1537
    %v1540 = vmul.f32 %v1535, %v1538
    %1542 = vrot.lane.b32.xlu0 %v1540, 32
    %v1543 = vpop.permute.xlu0 %1542
    %v1545 = vadd.f32 %v1453, %v1543
    %v1546 = vtanh.pop %v1545
    %v1547 = vsub.f32 1.0, %v1535
    %1549 = vrot.lane.b32.xlu0 %v1546, 112
    %v1550 = vpop.permute.xlu0 %1549
    %v1552 = vmul.f32 %v1547, %v1550
    %v1553 = vmul.f32 %v1535, %v1448
    %v1554 = vadd.f32 %v1552, %v1553
    %v1555 = vrot.slane %v275, 7
    %v1557 = vrot.slane %v647, 6
    %v1559 = vsel %vm813, %v1555, %v1557
    %1561 = vrot.lane.b32.xlu0 %v1554, 112
    %v1562 = vpop.permute.xlu0 %1561
    %v1563 = vsel %vm100, %v1562, 0
    %1565 = vmatprep.subr.mxu0 0.0
    %1566 = vmatpush1.msra.mxu0 %v55
    %1567 = vmatprep.subr.mxu0 0.0
    %1568 = vmatpush1.msra.mxu0 %v56
    %1569 = vmatprep.subr.mxu0 0.0
    %1570 = vmatpush1.msra.mxu0 0.0
    %1571 = vmatprep.subr.mxu0 0.0
    %1572 = vmatpush1.msra.mxu0 0.0
    %1573 = vmatprep.subr.mxu0 0.0
    %1574 = vmatpush1.msra.mxu0 0.0
    %1575 = vmatprep.subr.mxu0 0.0
    %1576 = vmatpush1.msra.mxu0 0.0
    %1577 = vmatprep.subr.mxu0 0.0
    %1578 = vmatpush1.msra.mxu0 0.0
    %1579 = vmatprep.subr.mxu0 0.0
    %1580 = vmatpush1.msra.mxu0 0.0
    %1581 = vmatprep.subr.mxu0 0.0
    %1582 = vmatpush1.msra.mxu0 0.0
    %1583 = vmatprep.subr.mxu0 0.0
    %1584 = vmatpush1.msra.mxu0 0.0
    %1585 = vmatprep.subr.mxu0 0.0
    %1586 = vmatpush1.msra.mxu0 0.0
    %1587 = vmatprep.subr.mxu0 0.0
    %1588 = vmatpush1.msra.mxu0 0.0
    %1589 = vmatprep.subr.mxu0 0.0
    %1590 = vmatpush1.msra.mxu0 0.0
    %1591 = vmatprep.subr.mxu0 0.0
    %1592 = vmatpush1.msra.mxu0 0.0
    %1593 = vmatprep.subr.mxu0 0.0
    %1594 = vmatpush1.msra.mxu0 0.0
    %1595 = vmatprep.subr.mxu0 0.0
    %1596 = vmatpush1.msra.mxu0 0.0
    %1597 = vmatprep.subr.mxu0 0.0
    %1598 = vmatpush1.msra.mxu0 0.0
    %1599 = vmatprep.subr.mxu0 0.0
    %1600 = vmatpush1.msra.mxu0 0.0
    %1601 = vmatprep.subr.mxu0 0.0
    %1602 = vmatpush1.msra.mxu0 0.0
    %1603 = vmatprep.subr.mxu0 0.0
    %1604 = vmatpush1.msra.mxu0 0.0
    %1605 = vmatprep.subr.mxu0 0.0
    %1606 = vmatpush1.msra.mxu0 0.0
    %1607 = vmatprep.subr.mxu0 0.0
    %1608 = vmatpush1.msra.mxu0 0.0
    %1609 = vmatprep.subr.mxu0 0.0
    %1610 = vmatpush1.msra.mxu0 0.0
    %1611 = vmatprep.subr.mxu0 0.0
    %1612 = vmatpush1.msra.mxu0 0.0
    %1613 = vmatprep.subr.mxu0 0.0
    %1614 = vmatpush1.msra.mxu0 0.0
    %1615 = vmatprep.subr.mxu0 0.0
    %1616 = vmatpush1.msra.mxu0 0.0
    %1617 = vmatprep.subr.mxu0 0.0
    %1618 = vmatpush1.msra.mxu0 0.0
    %1619 = vmatprep.subr.mxu0 0.0
    %1620 = vmatpush1.msra.mxu0 0.0
    %1621 = vmatprep.subr.mxu0 0.0
    %1622 = vmatpush1.msra.mxu0 0.0
    %1623 = vmatprep.subr.mxu0 0.0
    %1624 = vmatpush1.msra.mxu0 0.0
    %1625 = vmatprep.subr.mxu0 0.0
    %1626 = vmatpush1.msra.mxu0 0.0
    %1627 = vmatprep.subr.mxu0 0.0
    %1628 = vmatpush1.msra.mxu0 0.0
    %1629 = vmatprep.mubr.f32.mxu0 0.0
    %1630 = vmatmul.mubr.f32.gmra.mrb[0].mxu0 %v1563
    %v1631 = vpop.f32.mrb[0].mxu0
    %v1632 = vadd.f32 %v819, %v1631
    %v1633 = vpop.f32.mrb[0].mxu0
    %1634 = vdwg.mxu0
    %v1635 = vadd.f32 %v1559, %v1632
    %v1636 = vxor.u32 %v1635, 2147483648
    %v1637 = vmul.f32 %v1636, 1.442695
    %v1638 = vpow.pop %v1637
    %v1639 = vadd.f32 %v1638, 1.0
    %v1640 = vrcp.pop %v1639
    %v1641 = vmul.f32 1.0, %v1640
    %1643 = vrot.lane.b32.xlu0 %v1632, 96
    %v1644 = vpop.permute.xlu0 %1643
    %v1646 = vmul.f32 %v1641, %v1644
    %1648 = vrot.lane.b32.xlu0 %v1646, 32
    %v1649 = vpop.permute.xlu0 %1648
    %v1651 = vadd.f32 %v1559, %v1649
    %v1652 = vtanh.pop %v1651
    %v1653 = vsub.f32 1.0, %v1641
    %1655 = vrot.lane.b32.xlu0 %v1652, 112
    %v1656 = vpop.permute.xlu0 %1655
    %v1658 = vmul.f32 %v1653, %v1656
    %v1659 = vmul.f32 %v1641, %v1554
    %v1660 = vadd.f32 %v1658, %v1659
    %v1662 = vrot.slane %v652, 7
    %v1664 = vsel %vm813, %v280, %v1662
    %1666 = vrot.lane.b32.xlu0 %v1660, 112
    %v1667 = vpop.permute.xlu0 %1666
    %v1668 = vsel %vm100, %v1667, 0
    %1670 = vmatprep.subr.mxu0 0.0
    %1671 = vmatpush1.msra.mxu0 %v55
    %1672 = vmatprep.subr.mxu0 0.0
    %1673 = vmatpush1.msra.mxu0 %v56
    %1674 = vmatprep.subr.mxu0 0.0
    %1675 = vmatpush1.msra.mxu0 0.0
    %1676 = vmatprep.subr.mxu0 0.0
    %1677 = vmatpush1.msra.mxu0 0.0
    %1678 = vmatprep.subr.mxu0 0.0
    %1679 = vmatpush1.msra.mxu0 0.0
    %1680 = vmatprep.subr.mxu0 0.0
    %1681 = vmatpush1.msra.mxu0 0.0
    %1682 = vmatprep.subr.mxu0 0.0
    %1683 = vmatpush1.msra.mxu0 0.0
    %1684 = vmatprep.subr.mxu0 0.0
    %1685 = vmatpush1.msra.mxu0 0.0
    %1686 = vmatprep.subr.mxu0 0.0
    %1687 = vmatpush1.msra.mxu0 0.0
    %1688 = vmatprep.subr.mxu0 0.0
    %1689 = vmatpush1.msra.mxu0 0.0
    %1690 = vmatprep.subr.mxu0 0.0
    %1691 = vmatpush1.msra.mxu0 0.0
    %1692 = vmatprep.subr.mxu0 0.0
    %1693 = vmatpush1.msra.mxu0 0.0
    %1694 = vmatprep.subr.mxu0 0.0
    %1695 = vmatpush1.msra.mxu0 0.0
    %1696 = vmatprep.subr.mxu0 0.0
    %1697 = vmatpush1.msra.mxu0 0.0
    %1698 = vmatprep.subr.mxu0 0.0
    %1699 = vmatpush1.msra.mxu0 0.0
    %1700 = vmatprep.subr.mxu0 0.0
    %1701 = vmatpush1.msra.mxu0 0.0
    %1702 = vmatprep.subr.mxu0 0.0
    %1703 = vmatpush1.msra.mxu0 0.0
    %1704 = vmatprep.subr.mxu0 0.0
    %1705 = vmatpush1.msra.mxu0 0.0
    %1706 = vmatprep.subr.mxu0 0.0
    %1707 = vmatpush1.msra.mxu0 0.0
    %1708 = vmatprep.subr.mxu0 0.0
    %1709 = vmatpush1.msra.mxu0 0.0
    %1710 = vmatprep.subr.mxu0 0.0
    %1711 = vmatpush1.msra.mxu0 0.0
    %1712 = vmatprep.subr.mxu0 0.0
    %1713 = vmatpush1.msra.mxu0 0.0
    %1714 = vmatprep.subr.mxu0 0.0
    %1715 = vmatpush1.msra.mxu0 0.0
    %1716 = vmatprep.subr.mxu0 0.0
    %1717 = vmatpush1.msra.mxu0 0.0
    %1718 = vmatprep.subr.mxu0 0.0
    %1719 = vmatpush1.msra.mxu0 0.0
    %1720 = vmatprep.subr.mxu0 0.0
    %1721 = vmatpush1.msra.mxu0 0.0
    %1722 = vmatprep.subr.mxu0 0.0
    %1723 = vmatpush1.msra.mxu0 0.0
    %1724 = vmatprep.subr.mxu0 0.0
    %1725 = vmatpush1.msra.mxu0 0.0
    %1726 = vmatprep.subr.mxu0 0.0
    %1727 = vmatpush1.msra.mxu0 0.0
    %1728 = vmatprep.subr.mxu0 0.0
    %1729 = vmatpush1.msra.mxu0 0.0
    %1730 = vmatprep.subr.mxu0 0.0
    %1731 = vmatpush1.msra.mxu0 0.0
    %1732 = vmatprep.subr.mxu0 0.0
    %1733 = vmatpush1.msra.mxu0 0.0
    %1734 = vmatprep.mubr.f32.mxu0 0.0
    %1735 = vmatmul.mubr.f32.gmra.mrb[0].mxu0 %v1668
    %v1736 = vpop.f32.mrb[0].mxu0
    %v1737 = vadd.f32 %v819, %v1736
    %v1738 = vpop.f32.mrb[0].mxu0
    %1739 = vdwg.mxu0
    %v1740 = vadd.f32 %v1664, %v1737
    %v1741 = vxor.u32 %v1740, 2147483648
    %v1742 = vmul.f32 %v1741, 1.442695
    %v1743 = vpow.pop %v1742
    %v1744 = vadd.f32 %v1743, 1.0
    %v1745 = vrcp.pop %v1744
    %v1746 = vmul.f32 1.0, %v1745
    %1748 = vrot.lane.b32.xlu0 %v1737, 96
    %v1749 = vpop.permute.xlu0 %1748
    %v1751 = vmul.f32 %v1746, %v1749
    %1753 = vrot.lane.b32.xlu0 %v1751, 32
    %v1754 = vpop.permute.xlu0 %1753
    %v1756 = vadd.f32 %v1664, %v1754
    %v1757 = vtanh.pop %v1756
    %v1758 = vsub.f32 1.0, %v1746
    %1760 = vrot.lane.b32.xlu0 %v1757, 112
    %v1761 = vpop.permute.xlu0 %1760
    %v1763 = vmul.f32 %v1758, %v1761
    %v1764 = vmul.f32 %v1746, %v1660
    %v1765 = vadd.f32 %v1763, %v1764
    %v1767 = vrot.slane %v280, 1
    %v1769 = vsel %vm813, %v1767, %v652
    %1771 = vrot.lane.b32.xlu0 %v1765, 112
    %v1772 = vpop.permute.xlu0 %1771
    %v1773 = vsel %vm100, %v1772, 0
    %1775 = vmatprep.subr.mxu0 0.0
    %1776 = vmatpush1.msra.mxu0 %v55
    %1777 = vmatprep.subr.mxu0 0.0
    %1778 = vmatpush1.msra.mxu0 %v56
    %1779 = vmatprep.subr.mxu0 0.0
    %1780 = vmatpush1.msra.mxu0 0.0
    %1781 = vmatprep.subr.mxu0 0.0
    %1782 = vmatpush1.msra.mxu0 0.0
    %1783 = vmatprep.subr.mxu0 0.0
    %1784 = vmatpush1.msra.mxu0 0.0
    %1785 = vmatprep.subr.mxu0 0.0
    %1786 = vmatpush1.msra.mxu0 0.0
    %1787 = vmatprep.subr.mxu0 0.0
    %1788 = vmatpush1.msra.mxu0 0.0
    %1789 = vmatprep.subr.mxu0 0.0
    %1790 = vmatpush1.msra.mxu0 0.0
    %1791 = vmatprep.subr.mxu0 0.0
    %1792 = vmatpush1.msra.mxu0 0.0
    %1793 = vmatprep.subr.mxu0 0.0
    %1794 = vmatpush1.msra.mxu0 0.0
    %1795 = vmatprep.subr.mxu0 0.0
    %1796 = vmatpush1.msra.mxu0 0.0
    %1797 = vmatprep.subr.mxu0 0.0
    %1798 = vmatpush1.msra.mxu0 0.0
    %1799 = vmatprep.subr.mxu0 0.0
    %1800 = vmatpush1.msra.mxu0 0.0
    %1801 = vmatprep.subr.mxu0 0.0
    %1802 = vmatpush1.msra.mxu0 0.0
    %1803 = vmatprep.subr.mxu0 0.0
    %1804 = vmatpush1.msra.mxu0 0.0
    %1805 = vmatprep.subr.mxu0 0.0
    %1806 = vmatpush1.msra.mxu0 0.0
    %1807 = vmatprep.subr.mxu0 0.0
    %1808 = vmatpush1.msra.mxu0 0.0
    %1809 = vmatprep.subr.mxu0 0.0
    %1810 = vmatpush1.msra.mxu0 0.0
    %1811 = vmatprep.subr.mxu0 0.0
    %1812 = vmatpush1.msra.mxu0 0.0
    %1813 = vmatprep.subr.mxu0 0.0
    %1814 = vmatpush1.msra.mxu0 0.0
    %1815 = vmatprep.subr.mxu0 0.0
    %1816 = vmatpush1.msra.mxu0 0.0
    %1817 = vmatprep.subr.mxu0 0.0
    %1818 = vmatpush1.msra.mxu0 0.0
    %1819 = vmatprep.subr.mxu0 0.0
    %1820 = vmatpush1.msra.mxu0 0.0
    %1821 = vmatprep.subr.mxu0 0.0
    %1822 = vmatpush1.msra.mxu0 0.0
    %1823 = vmatprep.subr.mxu0 0.0
    %1824 = vmatpush1.msra.mxu0 0.0
    %1825 = vmatprep.subr.mxu0 0.0
    %1826 = vmatpush1.msra.mxu0 0.0
    %1827 = vmatprep.subr.mxu0 0.0
    %1828 = vmatpush1.msra.mxu0 0.0
    %1829 = vmatprep.subr.mxu0 0.0
    %1830 = vmatpush1.msra.mxu0 0.0
    %1831 = vmatprep.subr.mxu0 0.0
    %1832 = vmatpush1.msra.mxu0 0.0
    %1833 = vmatprep.subr.mxu0 0.0
    %1834 = vmatpush1.msra.mxu0 0.0
    %1835 = vmatprep.subr.mxu0 0.0
    %1836 = vmatpush1.msra.mxu0 0.0
    %1837 = vmatprep.subr.mxu0 0.0
    %1838 = vmatpush1.msra.mxu0 0.0
    %1839 = vmatprep.mubr.f32.mxu0 0.0
    %1840 = vmatmul.mubr.f32.gmra.mrb[0].mxu0 %v1773
    %v1841 = vpop.f32.mrb[0].mxu0
    %v1842 = vadd.f32 %v819, %v1841
    %v1843 = vpop.f32.mrb[0].mxu0
    %1844 = vdwg.mxu0
    %v1845 = vadd.f32 %v1769, %v1842
    %v1846 = vxor.u32 %v1845, 2147483648
    %v1847 = vmul.f32 %v1846, 1.442695
    %v1848 = vpow.pop %v1847
    %v1849 = vadd.f32 %v1848, 1.0
    %v1850 = vrcp.pop %v1849
    %v1851 = vmul.f32 1.0, %v1850
    %1853 = vrot.lane.b32.xlu0 %v1842, 96
    %v1854 = vpop.permute.xlu0 %1853
    %v1856 = vmul.f32 %v1851, %v1854
    %1858 = vrot.lane.b32.xlu0 %v1856, 32
    %v1859 = vpop.permute.xlu0 %1858
    %v1861 = vadd.f32 %v1769, %v1859
    %v1862 = vtanh.pop %v1861
    %v1863 = vsub.f32 1.0, %v1851
    %1865 = vrot.lane.b32.xlu0 %v1862, 112
    %v1866 = vpop.permute.xlu0 %1865
    %v1868 = vmul.f32 %v1863, %v1866
    %v1869 = vmul.f32 %v1851, %v1765
    %v1870 = vadd.f32 %v1868, %v1869
    %v1871 = vrot.slane %v280, 2
    %v1873 = vrot.slane %v652, 1
    %v1875 = vsel %vm813, %v1871, %v1873
    %1877 = vrot.lane.b32.xlu0 %v1870, 112
    %v1878 = vpop.permute.xlu0 %1877
    %v1879 = vsel %vm100, %v1878, 0
    %1881 = vmatprep.subr.mxu0 0.0
    %1882 = vmatpush1.msra.mxu0 %v55
    %1883 = vmatprep.subr.mxu0 0.0
    %1884 = vmatpush1.msra.mxu0 %v56
    %1885 = vmatprep.subr.mxu0 0.0
    %1886 = vmatpush1.msra.mxu0 0.0
    %1887 = vmatprep.subr.mxu0 0.0
    %1888 = vmatpush1.msra.mxu0 0.0
    %1889 = vmatprep.subr.mxu0 0.0
    %1890 = vmatpush1.msra.mxu0 0.0
    %1891 = vmatprep.subr.mxu0 0.0
    %1892 = vmatpush1.msra.mxu0 0.0
    %1893 = vmatprep.subr.mxu0 0.0
    %1894 = vmatpush1.msra.mxu0 0.0
    %1895 = vmatprep.subr.mxu0 0.0
    %1896 = vmatpush1.msra.mxu0 0.0
    %1897 = vmatprep.subr.mxu0 0.0
    %1898 = vmatpush1.msra.mxu0 0.0
    %1899 = vmatprep.subr.mxu0 0.0
    %1900 = vmatpush1.msra.mxu0 0.0
    %1901 = vmatprep.subr.mxu0 0.0
    %1902 = vmatpush1.msra.mxu0 0.0
    %1903 = vmatprep.subr.mxu0 0.0
    %1904 = vmatpush1.msra.mxu0 0.0
    %1905 = vmatprep.subr.mxu0 0.0
    %1906 = vmatpush1.msra.mxu0 0.0
    %1907 = vmatprep.subr.mxu0 0.0
    %1908 = vmatpush1.msra.mxu0 0.0
    %1909 = vmatprep.subr.mxu0 0.0
    %1910 = vmatpush1.msra.mxu0 0.0
    %1911 = vmatprep.subr.mxu0 0.0
    %1912 = vmatpush1.msra.mxu0 0.0
    %1913 = vmatprep.subr.mxu0 0.0
    %1914 = vmatpush1.msra.mxu0 0.0
    %1915 = vmatprep.subr.mxu0 0.0
    %1916 = vmatpush1.msra.mxu0 0.0
    %1917 = vmatprep.subr.mxu0 0.0
    %1918 = vmatpush1.msra.mxu0 0.0
    %1919 = vmatprep.subr.mxu0 0.0
    %1920 = vmatpush1.msra.mxu0 0.0
    %1921 = vmatprep.subr.mxu0 0.0
    %1922 = vmatpush1.msra.mxu0 0.0
    %1923 = vmatprep.subr.mxu0 0.0
    %1924 = vmatpush1.msra.mxu0 0.0
    %1925 = vmatprep.subr.mxu0 0.0
    %1926 = vmatpush1.msra.mxu0 0.0
    %1927 = vmatprep.subr.mxu0 0.0
    %1928 = vmatpush1.msra.mxu0 0.0
    %1929 = vmatprep.subr.mxu0 0.0
    %1930 = vmatpush1.msra.mxu0 0.0
    %1931 = vmatprep.subr.mxu0 0.0
    %1932 = vmatpush1.msra.mxu0 0.0
    %1933 = vmatprep.subr.mxu0 0.0
    %1934 = vmatpush1.msra.mxu0 0.0
    %1935 = vmatprep.subr.mxu0 0.0
    %1936 = vmatpush1.msra.mxu0 0.0
    %1937 = vmatprep.subr.mxu0 0.0
    %1938 = vmatpush1.msra.mxu0 0.0
    %1939 = vmatprep.subr.mxu0 0.0
    %1940 = vmatpush1.msra.mxu0 0.0
    %1941 = vmatprep.subr.mxu0 0.0
    %1942 = vmatpush1.msra.mxu0 0.0
    %1943 = vmatprep.subr.mxu0 0.0
    %1944 = vmatpush1.msra.mxu0 0.0
    %1945 = vmatprep.mubr.f32.mxu0 0.0
    %1946 = vmatmul.mubr.f32.gmra.mrb[0].mxu0 %v1879
    %v1947 = vpop.f32.mrb[0].mxu0
    %v1948 = vadd.f32 %v819, %v1947
    %v1949 = vpop.f32.mrb[0].mxu0
    %1950 = vdwg.mxu0
    %v1951 = vadd.f32 %v1875, %v1948
    %v1952 = vxor.u32 %v1951, 2147483648
    %v1953 = vmul.f32 %v1952, 1.442695
    %v1954 = vpow.pop %v1953
    %v1955 = vadd.f32 %v1954, 1.0
    %v1956 = vrcp.pop %v1955
    %v1957 = vmul.f32 1.0, %v1956
    %1959 = vrot.lane.b32.xlu0 %v1948, 96
    %v1960 = vpop.permute.xlu0 %1959
    %v1962 = vmul.f32 %v1957, %v1960
    %1964 = vrot.lane.b32.xlu0 %v1962, 32
    %v1965 = vpop.permute.xlu0 %1964
    %v1967 = vadd.f32 %v1875, %v1965
    %v1968 = vtanh.pop %v1967
    %v1969 = vsub.f32 1.0, %v1957
    %1971 = vrot.lane.b32.xlu0 %v1968, 112
    %v1972 = vpop.permute.xlu0 %1971
    %v1974 = vmul.f32 %v1969, %v1972
    %v1975 = vmul.f32 %v1957, %v1870
    %v1976 = vadd.f32 %v1974, %v1975
    %v1977 = vrot.slane %v280, 3
    %v1979 = vrot.slane %v652, 2
    %v1981 = vsel %vm813, %v1977, %v1979
    %1983 = vrot.lane.b32.xlu0 %v1976, 112
    %v1984 = vpop.permute.xlu0 %1983
    %v1985 = vsel %vm100, %v1984, 0
    %1987 = vmatprep.subr.mxu0 0.0
    %1988 = vmatpush1.msra.mxu0 %v55
    %1989 = vmatprep.subr.mxu0 0.0
    %1990 = vmatpush1.msra.mxu0 %v56
    %1991 = vmatprep.subr.mxu0 0.0
    %1992 = vmatpush1.msra.mxu0 0.0
    %1993 = vmatprep.subr.mxu0 0.0
    %1994 = vmatpush1.msra.mxu0 0.0
    %1995 = vmatprep.subr.mxu0 0.0
    %1996 = vmatpush1.msra.mxu0 0.0
    %1997 = vmatprep.subr.mxu0 0.0
    %1998 = vmatpush1.msra.mxu0 0.0
    %1999 = vmatprep.subr.mxu0 0.0
    %2000 = vmatpush1.msra.mxu0 0.0
    %2001 = vmatprep.subr.mxu0 0.0
    %2002 = vmatpush1.msra.mxu0 0.0
    %2003 = vmatprep.subr.mxu0 0.0
    %2004 = vmatpush1.msra.mxu0 0.0
    %2005 = vmatprep.subr.mxu0 0.0
    %2006 = vmatpush1.msra.mxu0 0.0
    %2007 = vmatprep.subr.mxu0 0.0
    %2008 = vmatpush1.msra.mxu0 0.0
    %2009 = vmatprep.subr.mxu0 0.0
    %2010 = vmatpush1.msra.mxu0 0.0
    %2011 = vmatprep.subr.mxu0 0.0
    %2012 = vmatpush1.msra.mxu0 0.0
    %2013 = vmatprep.subr.mxu0 0.0
    %2014 = vmatpush1.msra.mxu0 0.0
    %2015 = vmatprep.subr.mxu0 0.0
    %2016 = vmatpush1.msra.mxu0 0.0
    %2017 = vmatprep.subr.mxu0 0.0
    %2018 = vmatpush1.msra.mxu0 0.0
    %2019 = vmatprep.subr.mxu0 0.0
    %2020 = vmatpush1.msra.mxu0 0.0
    %2021 = vmatprep.subr.mxu0 0.0
    %2022 = vmatpush1.msra.mxu0 0.0
    %2023 = vmatprep.subr.mxu0 0.0
    %2024 = vmatpush1.msra.mxu0 0.0
    %2025 = vmatprep.subr.mxu0 0.0
    %2026 = vmatpush1.msra.mxu0 0.0
    %2027 = vmatprep.subr.mxu0 0.0
    %2028 = vmatpush1.msra.mxu0 0.0
    %2029 = vmatprep.subr.mxu0 0.0
    %2030 = vmatpush1.msra.mxu0 0.0
    %2031 = vmatprep.subr.mxu0 0.0
    %2032 = vmatpush1.msra.mxu0 0.0
    %2033 = vmatprep.subr.mxu0 0.0
    %2034 = vmatpush1.msra.mxu0 0.0
    %2035 = vmatprep.subr.mxu0 0.0
    %2036 = vmatpush1.msra.mxu0 0.0
    %2037 = vmatprep.subr.mxu0 0.0
    %2038 = vmatpush1.msra.mxu0 0.0
    %2039 = vmatprep.subr.mxu0 0.0
    %2040 = vmatpush1.msra.mxu0 0.0
    %2041 = vmatprep.subr.mxu0 0.0
    %2042 = vmatpush1.msra.mxu0 0.0
    %2043 = vmatprep.subr.mxu0 0.0
    %2044 = vmatpush1.msra.mxu0 0.0
    %2045 = vmatprep.subr.mxu0 0.0
    %2046 = vmatpush1.msra.mxu0 0.0
    %2047 = vmatprep.subr.mxu0 0.0
    %2048 = vmatpush1.msra.mxu0 0.0
    %2049 = vmatprep.subr.mxu0 0.0
    %2050 = vmatpush1.msra.mxu0 0.0
    %2051 = vmatprep.mubr.f32.mxu0 0.0
    %2052 = vmatmul.mubr.f32.gmra.mrb[0].mxu0 %v1985
    %v2053 = vpop.f32.mrb[0].mxu0
    %v2054 = vadd.f32 %v819, %v2053
    %v2055 = vpop.f32.mrb[0].mxu0
    %2056 = vdwg.mxu0
    %v2057 = vadd.f32 %v1981, %v2054
    %v2058 = vxor.u32 %v2057, 2147483648
    %v2059 = vmul.f32 %v2058, 1.442695
    %v2060 = vpow.pop %v2059
    %v2061 = vadd.f32 %v2060, 1.0
    %v2062 = vrcp.pop %v2061
    %v2063 = vmul.f32 1.0, %v2062
    %2065 = vrot.lane.b32.xlu0 %v2054, 96
    %v2066 = vpop.permute.xlu0 %2065
    %v2068 = vmul.f32 %v2063, %v2066
    %2070 = vrot.lane.b32.xlu0 %v2068, 32
    %v2071 = vpop.permute.xlu0 %2070
    %v2073 = vadd.f32 %v1981, %v2071
    %v2074 = vtanh.pop %v2073
    %v2075 = vsub.f32 1.0, %v2063
    %2077 = vrot.lane.b32.xlu0 %v2074, 112
    %v2078 = vpop.permute.xlu0 %2077
    %v2080 = vmul.f32 %v2075, %v2078
    %v2081 = vmul.f32 %v2063, %v1976
    %v2082 = vadd.f32 %v2080, %v2081
    %v2083 = vrot.slane %v280, 4
    %v2085 = vrot.slane %v652, 3
    %v2087 = vsel %vm813, %v2083, %v2085
    %2089 = vrot.lane.b32.xlu0 %v2082, 112
    %v2090 = vpop.permute.xlu0 %2089
    %v2091 = vsel %vm100, %v2090, 0
    %2093 = vmatprep.subr.mxu0 0.0
    %2094 = vmatpush1.msra.mxu0 %v55
    %2095 = vmatprep.subr.mxu0 0.0
    %2096 = vmatpush1.msra.mxu0 %v56
    %2097 = vmatprep.subr.mxu0 0.0
    %2098 = vmatpush1.msra.mxu0 0.0
    %2099 = vmatprep.subr.mxu0 0.0
    %2100 = vmatpush1.msra.mxu0 0.0
    %2101 = vmatprep.subr.mxu0 0.0
    %2102 = vmatpush1.msra.mxu0 0.0
    %2103 = vmatprep.subr.mxu0 0.0
    %2104 = vmatpush1.msra.mxu0 0.0
    %2105 = vmatprep.subr.mxu0 0.0
    %2106 = vmatpush1.msra.mxu0 0.0
    %2107 = vmatprep.subr.mxu0 0.0
    %2108 = vmatpush1.msra.mxu0 0.0
    %2109 = vmatprep.subr.mxu0 0.0
    %2110 = vmatpush1.msra.mxu0 0.0
    %2111 = vmatprep.subr.mxu0 0.0
    %2112 = vmatpush1.msra.mxu0 0.0
    %2113 = vmatprep.subr.mxu0 0.0
    %2114 = vmatpush1.msra.mxu0 0.0
    %2115 = vmatprep.subr.mxu0 0.0
    %2116 = vmatpush1.msra.mxu0 0.0
    %2117 = vmatprep.subr.mxu0 0.0
    %2118 = vmatpush1.msra.mxu0 0.0
    %2119 = vmatprep.subr.mxu0 0.0
    %2120 = vmatpush1.msra.mxu0 0.0
    %2121 = vmatprep.subr.mxu0 0.0
    %2122 = vmatpush1.msra.mxu0 0.0
    %2123 = vmatprep.subr.mxu0 0.0
    %2124 = vmatpush1.msra.mxu0 0.0
    %2125 = vmatprep.subr.mxu0 0.0
    %2126 = vmatpush1.msra.mxu0 0.0
    %2127 = vmatprep.subr.mxu0 0.0
    %2128 = vmatpush1.msra.mxu0 0.0
    %2129 = vmatprep.subr.mxu0 0.0
    %2130 = vmatpush1.msra.mxu0 0.0
    %2131 = vmatprep.subr.mxu0 0.0
    %2132 = vmatpush1.msra.mxu0 0.0
    %2133 = vmatprep.subr.mxu0 0.0
    %2134 = vmatpush1.msra.mxu0 0.0
    %2135 = vmatprep.subr.mxu0 0.0
    %2136 = vmatpush1.msra.mxu0 0.0
    %2137 = vmatprep.subr.mxu0 0.0
    %2138 = vmatpush1.msra.mxu0 0.0
    %2139 = vmatprep.subr.mxu0 0.0
    %2140 = vmatpush1.msra.mxu0 0.0
    %2141 = vmatprep.subr.mxu0 0.0
    %2142 = vmatpush1.msra.mxu0 0.0
    %2143 = vmatprep.subr.mxu0 0.0
    %2144 = vmatpush1.msra.mxu0 0.0
    %2145 = vmatprep.subr.mxu0 0.0
    %2146 = vmatpush1.msra.mxu0 0.0
    %2147 = vmatprep.subr.mxu0 0.0
    %2148 = vmatpush1.msra.mxu0 0.0
    %2149 = vmatprep.subr.mxu0 0.0
    %2150 = vmatpush1.msra.mxu0 0.0
    %2151 = vmatprep.subr.mxu0 0.0
    %2152 = vmatpush1.msra.mxu0 0.0
    %2153 = vmatprep.subr.mxu0 0.0
    %2154 = vmatpush1.msra.mxu0 0.0
    %2155 = vmatprep.subr.mxu0 0.0
    %2156 = vmatpush1.msra.mxu0 0.0
    %2157 = vmatprep.mubr.f32.mxu0 0.0
    %2158 = vmatmul.mubr.f32.gmra.mrb[0].mxu0 %v2091
    %v2159 = vpop.f32.mrb[0].mxu0
    %v2160 = vadd.f32 %v819, %v2159
    %v2161 = vpop.f32.mrb[0].mxu0
    %2162 = vdwg.mxu0
    %v2163 = vadd.f32 %v2087, %v2160
    %v2164 = vxor.u32 %v2163, 2147483648
    %v2165 = vmul.f32 %v2164, 1.442695
    %v2166 = vpow.pop %v2165
    %v2167 = vadd.f32 %v2166, 1.0
    %v2168 = vrcp.pop %v2167
    %v2169 = vmul.f32 1.0, %v2168
    %2171 = vrot.lane.b32.xlu0 %v2160, 96
    %v2172 = vpop.permute.xlu0 %2171
    %v2174 = vmul.f32 %v2169, %v2172
    %2176 = vrot.lane.b32.xlu0 %v2174, 32
    %v2177 = vpop.permute.xlu0 %2176
    %v2179 = vadd.f32 %v2087, %v2177
    %v2180 = vtanh.pop %v2179
    %v2181 = vsub.f32 1.0, %v2169
    %2183 = vrot.lane.b32.xlu0 %v2180, 112
    %v2184 = vpop.permute.xlu0 %2183
    %v2186 = vmul.f32 %v2181, %v2184
    %v2187 = vmul.f32 %v2169, %v2082
    %v2188 = vadd.f32 %v2186, %v2187
    %v2189 = vld [vmem:[%s8] sm:$0xf]
    %v2190 = vld [vmem:[%s10] sm:$0x1]
    %v2192 = vrot.slane %v729, 6
    %vm2194 = vcmask 1041408
    %v2195 = vsel %vm2194, %v366, %v2192
    %v2197 = vlaneseq
    %v2198 = vshrl.u32 %v2197, 7
    %v2199 = vsub.s32 0, %v2198
    %v2200 = vrot.slane %v2190, %v2199
    %v2202 = vsel %vm376, 0.0, 0
    %v2205 = vsel %vm380, %v2189, 0
    %2207 = vmatprep.subr.mxu0 0.0
    %2208 = vmatpush1.msra.mxu0 %v2205
    %2209 = vmatprep.subr.mxu0 0.0
    %2210 = vmatpush1.msra.mxu0 0.0
    %2211 = vmatprep.subr.mxu0 0.0
    %2212 = vmatpush1.msra.mxu0 0.0
    %2213 = vmatprep.subr.mxu0 0.0
    %2214 = vmatpush1.msra.mxu0 0.0
    %2215 = vmatprep.subr.mxu0 0.0
    %2216 = vmatpush1.msra.mxu0 0.0
    %2217 = vmatprep.subr.mxu0 0.0
    %2218 = vmatpush1.msra.mxu0 0.0
    %2219 = vmatprep.subr.mxu0 0.0
    %2220 = vmatpush1.msra.mxu0 0.0
    %2221 = vmatprep.subr.mxu0 0.0
    %2222 = vmatpush1.msra.mxu0 0.0
    %2223 = vmatprep.subr.mxu0 0.0
    %2224 = vmatpush1.msra.mxu0 0.0
    %2225 = vmatprep.subr.mxu0 0.0
    %2226 = vmatpush1.msra.mxu0 0.0
    %2227 = vmatprep.subr.mxu0 0.0
    %2228 = vmatpush1.msra.mxu0 0.0
    %2229 = vmatprep.subr.mxu0 0.0
    %2230 = vmatpush1.msra.mxu0 0.0
    %2231 = vmatprep.subr.mxu0 0.0
    %2232 = vmatpush1.msra.mxu0 0.0
    %2233 = vmatprep.subr.mxu0 0.0
    %2234 = vmatpush1.msra.mxu0 0.0
    %2235 = vmatprep.subr.mxu0 0.0
    %2236 = vmatpush1.msra.mxu0 0.0
    %2237 = vmatprep.subr.mxu0 0.0
    %2238 = vmatpush1.msra.mxu0 0.0
    %2239 = vmatprep.subr.mxu0 0.0
    %2240 = vmatpush1.msra.mxu0 0.0
    %2241 = vmatprep.subr.mxu0 0.0
    %2242 = vmatpush1.msra.mxu0 0.0
    %2243 = vmatprep.subr.mxu0 0.0
    %2244 = vmatpush1.msra.mxu0 0.0
    %2245 = vmatprep.subr.mxu0 0.0
    %2246 = vmatpush1.msra.mxu0 0.0
    %2247 = vmatprep.subr.mxu0 0.0
    %2248 = vmatpush1.msra.mxu0 0.0
    %2249 = vmatprep.subr.mxu0 0.0
    %2250 = vmatpush1.msra.mxu0 0.0
    %2251 = vmatprep.subr.mxu0 0.0
    %2252 = vmatpush1.msra.mxu0 0.0
    %2253 = vmatprep.subr.mxu0 0.0
    %2254 = vmatpush1.msra.mxu0 0.0
    %2255 = vmatprep.subr.mxu0 0.0
    %2256 = vmatpush1.msra.mxu0 0.0
    %2257 = vmatprep.subr.mxu0 0.0
    %2258 = vmatpush1.msra.mxu0 0.0
    %2259 = vmatprep.subr.mxu0 0.0
    %2260 = vmatpush1.msra.mxu0 0.0
    %2261 = vmatprep.subr.mxu0 0.0
    %2262 = vmatpush1.msra.mxu0 0.0
    %2263 = vmatprep.subr.mxu0 0.0
    %2264 = vmatpush1.msra.mxu0 0.0
    %2265 = vmatprep.subr.mxu0 0.0
    %2266 = vmatpush1.msra.mxu0 0.0
    %2267 = vmatprep.subr.mxu0 0.0
    %2268 = vmatpush1.msra.mxu0 0.0
    %2269 = vmatprep.subr.mxu0 0.0
    %2270 = vmatpush1.msra.mxu0 0.0
    %2271 = vmatprep.mubr.f32.mxu0 0.0
    %2272 = vmatmul.mubr.f32.gmra.mrb[0].mxu0 %v2202
    %v2273 = vpop.f32.mrb[0].mxu0
    %v2274 = vadd.f32 %v2200, %v2273
    %v2275 = vpop.f32.mrb[0].mxu0
    %2276 = vdwg.mxu0
    %v2277 = vadd.f32 %v2195, %v2274
    %v2278 = vxor.u32 %v2277, 2147483648
    %v2279 = vmul.f32 %v2278, 1.442695
    %v2280 = vpow.pop %v2279
    %v2281 = vadd.f32 %v2280, 1.0
    %v2282 = vrcp.pop %v2281
    %v2283 = vmul.f32 1.0, %v2282
    %2285 = vrot.lane.b32.xlu0 %v2274, 120
    %v2286 = vpop.permute.xlu0 %2285
    %v2288 = vmul.f32 %v2283, %v2286
    %2290 = vrot.lane.b32.xlu0 %v2288, 8
    %v2291 = vpop.permute.xlu0 %2290
    %v2293 = vadd.f32 %v2195, %v2291
    %v2294 = vtanh.pop %v2293
    %v2295 = vsub.f32 1.0, %v2283
    %2297 = vrot.lane.b32.xlu0 %v2294, 124
    %v2298 = vpop.permute.xlu0 %2297
    %v2300 = vmul.f32 %v2295, %v2298
    %v2301 = vmul.f32 %v2283, 0.0
    %v2302 = vadd.f32 %v2300, %v2301
    %v2304 = vrot.slane %v366, 2
    %v2306 = vsel %vm2194, %v2304, %v729
    %2308 = vrot.lane.b32.xlu0 %v2302, 124
    %v2309 = vpop.permute.xlu0 %2308
    %v2310 = vsel %vm376, %v2309, 0
    %2312 = vmatprep.subr.mxu0 0.0
    %2313 = vmatpush1.msra.mxu0 %v2205
    %2314 = vmatprep.subr.mxu0 0.0
    %2315 = vmatpush1.msra.mxu0 0.0
    %2316 = vmatprep.subr.mxu0 0.0
    %2317 = vmatpush1.msra.mxu0 0.0
    %2318 = vmatprep.subr.mxu0 0.0
    %2319 = vmatpush1.msra.mxu0 0.0
    %2320 = vmatprep.subr.mxu0 0.0
    %2321 = vmatpush1.msra.mxu0 0.0
    %2322 = vmatprep.subr.mxu0 0.0
    %2323 = vmatpush1.msra.mxu0 0.0
    %2324 = vmatprep.subr.mxu0 0.0
    %2325 = vmatpush1.msra.mxu0 0.0
    %2326 = vmatprep.subr.mxu0 0.0
    %2327 = vmatpush1.msra.mxu0 0.0
    %2328 = vmatprep.subr.mxu0 0.0
    %2329 = vmatpush1.msra.mxu0 0.0
    %2330 = vmatprep.subr.mxu0 0.0
    %2331 = vmatpush1.msra.mxu0 0.0
    %2332 = vmatprep.subr.mxu0 0.0
    %2333 = vmatpush1.msra.mxu0 0.0
    %2334 = vmatprep.subr.mxu0 0.0
    %2335 = vmatpush1.msra.mxu0 0.0
    %2336 = vmatprep.subr.mxu0 0.0
    %2337 = vmatpush1.msra.mxu0 0.0
    %2338 = vmatprep.subr.mxu0 0.0
    %2339 = vmatpush1.msra.mxu0 0.0
    %2340 = vmatprep.subr.mxu0 0.0
    %2341 = vmatpush1.msra.mxu0 0.0
    %2342 = vmatprep.subr.mxu0 0.0
    %2343 = vmatpush1.msra.mxu0 0.0
    %2344 = vmatprep.subr.mxu0 0.0
    %2345 = vmatpush1.msra.mxu0 0.0
    %2346 = vmatprep.subr.mxu0 0.0
    %2347 = vmatpush1.msra.mxu0 0.0
    %2348 = vmatprep.subr.mxu0 0.0
    %2349 = vmatpush1.msra.mxu0 0.0
    %2350 = vmatprep.subr.mxu0 0.0
    %2351 = vmatpush1.msra.mxu0 0.0
    %2352 = vmatprep.subr.mxu0 0.0
    %2353 = vmatpush1.msra.mxu0 0.0
    %2354 = vmatprep.subr.mxu0 0.0
    %2355 = vmatpush1.msra.mxu0 0.0
    %2356 = vmatprep.subr.mxu0 0.0
    %2357 = vmatpush1.msra.mxu0 0.0
    %2358 = vmatprep.subr.mxu0 0.0
    %2359 = vmatpush1.msra.mxu0 0.0
    %2360 = vmatprep.subr.mxu0 0.0
    %2361 = vmatpush1.msra.mxu0 0.0
    %2362 = vmatprep.subr.mxu0 0.0
    %2363 = vmatpush1.msra.mxu0 0.0
    %2364 = vmatprep.subr.mxu0 0.0
    %2365 = vmatpush1.msra.mxu0 0.0
    %2366 = vmatprep.subr.mxu0 0.0
    %2367 = vmatpush1.msra.mxu0 0.0
    %2368 = vmatprep.subr.mxu0 0.0
    %2369 = vmatpush1.msra.mxu0 0.0
    %2370 = vmatprep.subr.mxu0 0.0
    %2371 = vmatpush1.msra.mxu0 0.0
    %2372 = vmatprep.subr.mxu0 0.0
    %2373 = vmatpush1.msra.mxu0 0.0
    %2374 = vmatprep.subr.mxu0 0.0
    %2375 = vmatpush1.msra.mxu0 0.0
    %2376 = vmatprep.mubr.f32.mxu0 0.0
    %2377 = vmatmul.mubr.f32.gmra.mrb[0].mxu0 %v2310
    %v2378 = vpop.f32.mrb[0].mxu0
    %v2379 = vadd.f32 %v2200, %v2378
    %v2380 = vpop.f32.mrb[0].mxu0
    %2381 = vdwg.mxu0
    %v2382 = vadd.f32 %v2306, %v2379
    %v2383 = vxor.u32 %v2382, 2147483648
    %v2384 = vmul.f32 %v2383, 1.442695
    %v2385 = vpow.pop %v2384
    %v2386 = vadd.f32 %v2385, 1.0
    %v2387 = vrcp.pop %v2386
    %v2388 = vmul.f32 1.0, %v2387
    %2390 = vrot.lane.b32.xlu0 %v2379, 120
    %v2391 = vpop.permute.xlu0 %2390
    %v2393 = vmul.f32 %v2388, %v2391
    %2395 = vrot.lane.b32.xlu0 %v2393, 8
    %v2396 = vpop.permute.xlu0 %2395
    %v2398 = vadd.f32 %v2306, %v2396
    %v2399 = vtanh.pop %v2398
    %v2400 = vsub.f32 1.0, %v2388
    %2402 = vrot.lane.b32.xlu0 %v2399, 124
    %v2403 = vpop.permute.xlu0 %2402
    %v2405 = vmul.f32 %v2400, %v2403
    %v2406 = vmul.f32 %v2388, %v2302
    %v2407 = vadd.f32 %v2405, %v2406
    %v2408 = vrot.slane %v366, 4
    %v2410 = vrot.slane %v729, 2
    %v2412 = vsel %vm2194, %v2408, %v2410
    %2414 = vrot.lane.b32.xlu0 %v2407, 124
    %v2415 = vpop.permute.xlu0 %2414
    %v2416 = vsel %vm376, %v2415, 0
    %2418 = vmatprep.subr.mxu0 0.0
    %2419 = vmatpush1.msra.mxu0 %v2205
    %2420 = vmatprep.subr.mxu0 0.0
    %2421 = vmatpush1.msra.mxu0 0.0
    %2422 = vmatprep.subr.mxu0 0.0
    %2423 = vmatpush1.msra.mxu0 0.0
    %2424 = vmatprep.subr.mxu0 0.0
    %2425 = vmatpush1.msra.mxu0 0.0
    %2426 = vmatprep.subr.mxu0 0.0
    %2427 = vmatpush1.msra.mxu0 0.0
    %2428 = vmatprep.subr.mxu0 0.0
    %2429 = vmatpush1.msra.mxu0 0.0
    %2430 = vmatprep.subr.mxu0 0.0
    %2431 = vmatpush1.msra.mxu0 0.0
    %2432 = vmatprep.subr.mxu0 0.0
    %2433 = vmatpush1.msra.mxu0 0.0
    %2434 = vmatprep.subr.mxu0 0.0
    %2435 = vmatpush1.msra.mxu0 0.0
    %2436 = vmatprep.subr.mxu0 0.0
    %2437 = vmatpush1.msra.mxu0 0.0
    %2438 = vmatprep.subr.mxu0 0.0
    %2439 = vmatpush1.msra.mxu0 0.0
    %2440 = vmatprep.subr.mxu0 0.0
    %2441 = vmatpush1.msra.mxu0 0.0
    %2442 = vmatprep.subr.mxu0 0.0
    %2443 = vmatpush1.msra.mxu0 0.0
    %2444 = vmatprep.subr.mxu0 0.0
    %2445 = vmatpush1.msra.mxu0 0.0
    %2446 = vmatprep.subr.mxu0 0.0
    %2447 = vmatpush1.msra.mxu0 0.0
    %2448 = vmatprep.subr.mxu0 0.0
    %2449 = vmatpush1.msra.mxu0 0.0
    %2450 = vmatprep.subr.mxu0 0.0
    %2451 = vmatpush1.msra.mxu0 0.0
    %2452 = vmatprep.subr.mxu0 0.0
    %2453 = vmatpush1.msra.mxu0 0.0
    %2454 = vmatprep.subr.mxu0 0.0
    %2455 = vmatpush1.msra.mxu0 0.0
    %2456 = vmatprep.subr.mxu0 0.0
    %2457 = vmatpush1.msra.mxu0 0.0
    %2458 = vmatprep.subr.mxu0 0.0
    %2459 = vmatpush1.msra.mxu0 0.0
    %2460 = vmatprep.subr.mxu0 0.0
    %2461 = vmatpush1.msra.mxu0 0.0
    %2462 = vmatprep.subr.mxu0 0.0
    %2463 = vmatpush1.msra.mxu0 0.0
    %2464 = vmatprep.subr.mxu0 0.0
    %2465 = vmatpush1.msra.mxu0 0.0
    %2466 = vmatprep.subr.mxu0 0.0
    %2467 = vmatpush1.msra.mxu0 0.0
    %2468 = vmatprep.subr.mxu0 0.0
    %2469 = vmatpush1.msra.mxu0 0.0
    %2470 = vmatprep.subr.mxu0 0.0
    %2471 = vmatpush1.msra.mxu0 0.0
    %2472 = vmatprep.subr.mxu0 0.0
    %2473 = vmatpush1.msra.mxu0 0.0
    %2474 = vmatprep.subr.mxu0 0.0
    %2475 = vmatpush1.msra.mxu0 0.0
    %2476 = vmatprep.subr.mxu0 0.0
    %2477 = vmatpush1.msra.mxu0 0.0
    %2478 = vmatprep.subr.mxu0 0.0
    %2479 = vmatpush1.msra.mxu0 0.0
    %2480 = vmatprep.subr.mxu0 0.0
    %2481 = vmatpush1.msra.mxu0 0.0
    %2482 = vmatprep.mubr.f32.mxu0 0.0
    %2483 = vmatmul.mubr.f32.gmra.mrb[0].mxu0 %v2416
    %v2484 = vpop.f32.mrb[0].mxu0
    %v2485 = vadd.f32 %v2200, %v2484
    %v2486 = vpop.f32.mrb[0].mxu0
    %2487 = vdwg.mxu0
    %v2488 = vadd.f32 %v2412, %v2485
    %v2489 = vxor.u32 %v2488, 2147483648
    %v2490 = vmul.f32 %v2489, 1.442695
    %v2491 = vpow.pop %v2490
    %v2492 = vadd.f32 %v2491, 1.0
    %v2493 = vrcp.pop %v2492
    %v2494 = vmul.f32 1.0, %v2493
    %2496 = vrot.lane.b32.xlu0 %v2485, 120
    %v2497 = vpop.permute.xlu0 %2496
    %v2499 = vmul.f32 %v2494, %v2497
    %2501 = vrot.lane.b32.xlu0 %v2499, 8
    %v2502 = vpop.permute.xlu0 %2501
    %v2504 = vadd.f32 %v2412, %v2502
    %v2505 = vtanh.pop %v2504
    %v2506 = vsub.f32 1.0, %v2494
    %2508 = vrot.lane.b32.xlu0 %v2505, 124
    %v2509 = vpop.permute.xlu0 %2508
    %v2511 = vmul.f32 %v2506, %v2509
    %v2512 = vmul.f32 %v2494, %v2407
    %v2513 = vadd.f32 %v2511, %v2512
    %v2514 = vrot.slane %v366, 6
    %v2516 = vrot.slane %v729, 4
    %v2518 = vsel %vm2194, %v2514, %v2516
    %2520 = vrot.lane.b32.xlu0 %v2513, 124
    %v2521 = vpop.permute.xlu0 %2520
    %v2522 = vsel %vm376, %v2521, 0
    %2524 = vmatprep.subr.mxu0 0.0
    %2525 = vmatpush1.msra.mxu0 %v2205
    %2526 = vmatprep.subr.mxu0 0.0
    %2527 = vmatpush1.msra.mxu0 0.0
    %2528 = vmatprep.subr.mxu0 0.0
    %2529 = vmatpush1.msra.mxu0 0.0
    %2530 = vmatprep.subr.mxu0 0.0
    %2531 = vmatpush1.msra.mxu0 0.0
    %2532 = vmatprep.subr.mxu0 0.0
    %2533 = vmatpush1.msra.mxu0 0.0
    %2534 = vmatprep.subr.mxu0 0.0
    %2535 = vmatpush1.msra.mxu0 0.0
    %2536 = vmatprep.subr.mxu0 0.0
    %2537 = vmatpush1.msra.mxu0 0.0
    %2538 = vmatprep.subr.mxu0 0.0
    %2539 = vmatpush1.msra.mxu0 0.0
    %2540 = vmatprep.subr.mxu0 0.0
    %2541 = vmatpush1.msra.mxu0 0.0
    %2542 = vmatprep.subr.mxu0 0.0
    %2543 = vmatpush1.msra.mxu0 0.0
    %2544 = vmatprep.subr.mxu0 0.0
    %2545 = vmatpush1.msra.mxu0 0.0
    %2546 = vmatprep.subr.mxu0 0.0
    %2547 = vmatpush1.msra.mxu0 0.0
    %2548 = vmatprep.subr.mxu0 0.0
    %2549 = vmatpush1.msra.mxu0 0.0
    %2550 = vmatprep.subr.mxu0 0.0
    %2551 = vmatpush1.msra.mxu0 0.0
    %2552 = vmatprep.subr.mxu0 0.0
    %2553 = vmatpush1.msra.mxu0 0.0
    %2554 = vmatprep.subr.mxu0 0.0
    %2555 = vmatpush1.msra.mxu0 0.0
    %2556 = vmatprep.subr.mxu0 0.0
    %2557 = vmatpush1.msra.mxu0 0.0
    %2558 = vmatprep.subr.mxu0 0.0
    %2559 = vmatpush1.msra.mxu0 0.0
    %2560 = vmatprep.subr.mxu0 0.0
    %2561 = vmatpush1.msra.mxu0 0.0
    %2562 = vmatprep.subr.mxu0 0.0
    %2563 = vmatpush1.msra.mxu0 0.0
    %2564 = vmatprep.subr.mxu0 0.0
    %2565 = vmatpush1.msra.mxu0 0.0
    %2566 = vmatprep.subr.mxu0 0.0
    %2567 = vmatpush1.msra.mxu0 0.0
    %2568 = vmatprep.subr.mxu0 0.0
    %2569 = vmatpush1.msra.mxu0 0.0
    %2570 = vmatprep.subr.mxu0 0.0
    %2571 = vmatpush1.msra.mxu0 0.0
    %2572 = vmatprep.subr.mxu0 0.0
    %2573 = vmatpush1.msra.mxu0 0.0
    %2574 = vmatprep.subr.mxu0 0.0
    %2575 = vmatpush1.msra.mxu0 0.0
    %2576 = vmatprep.subr.mxu0 0.0
    %2577 = vmatpush1.msra.mxu0 0.0
    %2578 = vmatprep.subr.mxu0 0.0
    %2579 = vmatpush1.msra.mxu0 0.0
    %2580 = vmatprep.subr.mxu0 0.0
    %2581 = vmatpush1.msra.mxu0 0.0
    %2582 = vmatprep.subr.mxu0 0.0
    %2583 = vmatpush1.msra.mxu0 0.0
    %2584 = vmatprep.subr.mxu0 0.0
    %2585 = vmatpush1.msra.mxu0 0.0
    %2586 = vmatprep.subr.mxu0 0.0
    %2587 = vmatpush1.msra.mxu0 0.0
    %2588 = vmatprep.mubr.f32.mxu0 0.0
    %2589 = vmatmul.mubr.f32.gmra.mrb[0].mxu0 %v2522
    %v2590 = vpop.f32.mrb[0].mxu0
    %v2591 = vadd.f32 %v2200, %v2590
    %v2592 = vpop.f32.mrb[0].mxu0
    %2593 = vdwg.mxu0
    %v2594 = vadd.f32 %v2518, %v2591
    %v2595 = vxor.u32 %v2594, 2147483648
    %v2596 = vmul.f32 %v2595, 1.442695
    %v2597 = vpow.pop %v2596
    %v2598 = vadd.f32 %v2597, 1.0
    %v2599 = vrcp.pop %v2598
    %v2600 = vmul.f32 1.0, %v2599
    %2602 = vrot.lane.b32.xlu0 %v2591, 120
    %v2603 = vpop.permute.xlu0 %2602
    %v2605 = vmul.f32 %v2600, %v2603
    %2607 = vrot.lane.b32.xlu0 %v2605, 8
    %v2608 = vpop.permute.xlu0 %2607
    %v2610 = vadd.f32 %v2518, %v2608
    %v2611 = vtanh.pop %v2610
    %v2612 = vsub.f32 1.0, %v2600
    %2614 = vrot.lane.b32.xlu0 %v2611, 124
    %v2615 = vpop.permute.xlu0 %2614
    %v2617 = vmul.f32 %v2612, %v2615
    %v2618 = vmul.f32 %v2600, %v2513
    %v2619 = vadd.f32 %v2617, %v2618
    %v2621 = vrot.slane %v734, 6
    %v2623 = vsel %vm2194, %v371, %v2621
    %2625 = vrot.lane.b32.xlu0 %v2619, 124
    %v2626 = vpop.permute.xlu0 %2625
    %v2627 = vsel %vm376, %v2626, 0
    %2629 = vmatprep.subr.mxu0 0.0
    %2630 = vmatpush1.msra.mxu0 %v2205
    %2631 = vmatprep.subr.mxu0 0.0
    %2632 = vmatpush1.msra.mxu0 0.0
    %2633 = vmatprep.subr.mxu0 0.0
    %2634 = vmatpush1.msra.mxu0 0.0
    %2635 = vmatprep.subr.mxu0 0.0
    %2636 = vmatpush1.msra.mxu0 0.0
    %2637 = vmatprep.subr.mxu0 0.0
    %2638 = vmatpush1.msra.mxu0 0.0
    %2639 = vmatprep.subr.mxu0 0.0
    %2640 = vmatpush1.msra.mxu0 0.0
    %2641 = vmatprep.subr.mxu0 0.0
    %2642 = vmatpush1.msra.mxu0 0.0
    %2643 = vmatprep.subr.mxu0 0.0
    %2644 = vmatpush1.msra.mxu0 0.0
    %2645 = vmatprep.subr.mxu0 0.0
    %2646 = vmatpush1.msra.mxu0 0.0
    %2647 = vmatprep.subr.mxu0 0.0
    %2648 = vmatpush1.msra.mxu0 0.0
    %2649 = vmatprep.subr.mxu0 0.0
    %2650 = vmatpush1.msra.mxu0 0.0
    %2651 = vmatprep.subr.mxu0 0.0
    %2652 = vmatpush1.msra.mxu0 0.0
    %2653 = vmatprep.subr.mxu0 0.0
    %2654 = vmatpush1.msra.mxu0 0.0
    %2655 = vmatprep.subr.mxu0 0.0
    %2656 = vmatpush1.msra.mxu0 0.0
    %2657 = vmatprep.subr.mxu0 0.0
    %2658 = vmatpush1.msra.mxu0 0.0
    %2659 = vmatprep.subr.mxu0 0.0
    %2660 = vmatpush1.msra.mxu0 0.0
    %2661 = vmatprep.subr.mxu0 0.0
    %2662 = vmatpush1.msra.mxu0 0.0
    %2663 = vmatprep.subr.mxu0 0.0
    %2664 = vmatpush1.msra.mxu0 0.0
    %2665 = vmatprep.subr.mxu0 0.0
    %2666 = vmatpush1.msra.mxu0 0.0
    %2667 = vmatprep.subr.mxu0 0.0
    %2668 = vmatpush1.msra.mxu0 0.0
    %2669 = vmatprep.subr.mxu0 0.0
    %2670 = vmatpush1.msra.mxu0 0.0
    %2671 = vmatprep.subr.mxu0 0.0
    %2672 = vmatpush1.msra.mxu0 0.0
    %2673 = vmatprep.subr.mxu0 0.0
    %2674 = vmatpush1.msra.mxu0 0.0
    %2675 = vmatprep.subr.mxu0 0.0
    %2676 = vmatpush1.msra.mxu0 0.0
    %2677 = vmatprep.subr.mxu0 0.0
    %2678 = vmatpush1.msra.mxu0 0.0
    %2679 = vmatprep.subr.mxu0 0.0
    %2680 = vmatpush1.msra.mxu0 0.0
    %2681 = vmatprep.subr.mxu0 0.0
    %2682 = vmatpush1.msra.mxu0 0.0
    %2683 = vmatprep.subr.mxu0 0.0
    %2684 = vmatpush1.msra.mxu0 0.0
    %2685 = vmatprep.subr.mxu0 0.0
    %2686 = vmatpush1.msra.mxu0 0.0
    %2687 = vmatprep.subr.mxu0 0.0
    %2688 = vmatpush1.msra.mxu0 0.0
    %2689 = vmatprep.subr.mxu0 0.0
    %2690 = vmatpush1.msra.mxu0 0.0
    %2691 = vmatprep.subr.mxu0 0.0
    %2692 = vmatpush1.msra.mxu0 0.0
    %2693 = vmatprep.mubr.f32.mxu0 0.0
    %2694 = vmatmul.mubr.f32.gmra.mrb[0].mxu0 %v2627
    %v2695 = vpop.f32.mrb[0].mxu0
    %v2696 = vadd.f32 %v2200, %v2695
    %v2697 = vpop.f32.mrb[0].mxu0
    %2698 = vdwg.mxu0
    %v2699 = vadd.f32 %v2623, %v2696
    %v2700 = vxor.u32 %v2699, 2147483648
    %v2701 = vmul.f32 %v2700, 1.442695
    %v2702 = vpow.pop %v2701
    %v2703 = vadd.f32 %v2702, 1.0
    %v2704 = vrcp.pop %v2703
    %v2705 = vmul.f32 1.0, %v2704
    %2707 = vrot.lane.b32.xlu0 %v2696, 120
    %v2708 = vpop.permute.xlu0 %2707
    %v2710 = vmul.f32 %v2705, %v2708
    %2712 = vrot.lane.b32.xlu0 %v2710, 8
    %v2713 = vpop.permute.xlu0 %2712
    %v2715 = vadd.f32 %v2623, %v2713
    %v2716 = vtanh.pop %v2715
    %v2717 = vsub.f32 1.0, %v2705
    %2719 = vrot.lane.b32.xlu0 %v2716, 124
    %v2720 = vpop.permute.xlu0 %2719
    %v2722 = vmul.f32 %v2717, %v2720
    %v2723 = vmul.f32 %v2705, %v2619
    %v2724 = vadd.f32 %v2722, %v2723
    %v2726 = vrot.slane %v371, 2
    %v2728 = vsel %vm2194, %v2726, %v734
    %2730 = vrot.lane.b32.xlu0 %v2724, 124
    %v2731 = vpop.permute.xlu0 %2730
    %v2732 = vsel %vm376, %v2731, 0
    %2734 = vmatprep.subr.mxu0 0.0
    %2735 = vmatpush1.msra.mxu0 %v2205
    %2736 = vmatprep.subr.mxu0 0.0
    %2737 = vmatpush1.msra.mxu0 0.0
    %2738 = vmatprep.subr.mxu0 0.0
    %2739 = vmatpush1.msra.mxu0 0.0
    %2740 = vmatprep.subr.mxu0 0.0
    %2741 = vmatpush1.msra.mxu0 0.0
    %2742 = vmatprep.subr.mxu0 0.0
    %2743 = vmatpush1.msra.mxu0 0.0
    %2744 = vmatprep.subr.mxu0 0.0
    %2745 = vmatpush1.msra.mxu0 0.0
    %2746 = vmatprep.subr.mxu0 0.0
    %2747 = vmatpush1.msra.mxu0 0.0
    %2748 = vmatprep.subr.mxu0 0.0
    %2749 = vmatpush1.msra.mxu0 0.0
    %2750 = vmatprep.subr.mxu0 0.0
    %2751 = vmatpush1.msra.mxu0 0.0
    %2752 = vmatprep.subr.mxu0 0.0
    %2753 = vmatpush1.msra.mxu0 0.0
    %2754 = vmatprep.subr.mxu0 0.0
    %2755 = vmatpush1.msra.mxu0 0.0
    %2756 = vmatprep.subr.mxu0 0.0
    %2757 = vmatpush1.msra.mxu0 0.0
    %2758 = vmatprep.subr.mxu0 0.0
    %2759 = vmatpush1.msra.mxu0 0.0
    %2760 = vmatprep.subr.mxu0 0.0
    %2761 = vmatpush1.msra.mxu0 0.0
    %2762 = vmatprep.subr.mxu0 0.0
    %2763 = vmatpush1.msra.mxu0 0.0
    %2764 = vmatprep.subr.mxu0 0.0
    %2765 = vmatpush1.msra.mxu0 0.0
    %2766 = vmatprep.subr.mxu0 0.0
    %2767 = vmatpush1.msra.mxu0 0.0
    %2768 = vmatprep.subr.mxu0 0.0
    %2769 = vmatpush1.msra.mxu0 0.0
    %2770 = vmatprep.subr.mxu0 0.0
    %2771 = vmatpush1.msra.mxu0 0.0
    %2772 = vmatprep.subr.mxu0 0.0
    %2773 = vmatpush1.msra.mxu0 0.0
    %2774 = vmatprep.subr.mxu0 0.0
    %2775 = vmatpush1.msra.mxu0 0.0
    %2776 = vmatprep.subr.mxu0 0.0
    %2777 = vmatpush1.msra.mxu0 0.0
    %2778 = vmatprep.subr.mxu0 0.0
    %2779 = vmatpush1.msra.mxu0 0.0
    %2780 = vmatprep.subr.mxu0 0.0
    %2781 = vmatpush1.msra.mxu0 0.0
    %2782 = vmatprep.subr.mxu0 0.0
    %2783 = vmatpush1.msra.mxu0 0.0
    %2784 = vmatprep.subr.mxu0 0.0
    %2785 = vmatpush1.msra.mxu0 0.0
    %2786 = vmatprep.subr.mxu0 0.0
    %2787 = vmatpush1.msra.mxu0 0.0
    %2788 = vmatprep.subr.mxu0 0.0
    %2789 = vmatpush1.msra.mxu0 0.0
    %2790 = vmatprep.subr.mxu0 0.0
    %2791 = vmatpush1.msra.mxu0 0.0
    %2792 = vmatprep.subr.mxu0 0.0
    %2793 = vmatpush1.msra.mxu0 0.0
    %2794 = vmatprep.subr.mxu0 0.0
    %2795 = vmatpush1.msra.mxu0 0.0
    %2796 = vmatprep.subr.mxu0 0.0
    %2797 = vmatpush1.msra.mxu0 0.0
    %2798 = vmatprep.mubr.f32.mxu0 0.0
    %2799 = vmatmul.mubr.f32.gmra.mrb[0].mxu0 %v2732
    %v2800 = vpop.f32.mrb[0].mxu0
    %v2801 = vadd.f32 %v2200, %v2800
    %v2802 = vpop.f32.mrb[0].mxu0
    %2803 = vdwg.mxu0
    %v2804 = vadd.f32 %v2728, %v2801
    %v2805 = vxor.u32 %v2804, 2147483648
    %v2806 = vmul.f32 %v2805, 1.442695
    %v2807 = vpow.pop %v2806
    %v2808 = vadd.f32 %v2807, 1.0
    %v2809 = vrcp.pop %v2808
    %v2810 = vmul.f32 1.0, %v2809
    %2812 = vrot.lane.b32.xlu0 %v2801, 120
    %v2813 = vpop.permute.xlu0 %2812
    %v2815 = vmul.f32 %v2810, %v2813
    %2817 = vrot.lane.b32.xlu0 %v2815, 8
    %v2818 = vpop.permute.xlu0 %2817
    %v2820 = vadd.f32 %v2728, %v2818
    %v2821 = vtanh.pop %v2820
    %v2822 = vsub.f32 1.0, %v2810
    %2824 = vrot.lane.b32.xlu0 %v2821, 124
    %v2825 = vpop.permute.xlu0 %2824
    %v2827 = vmul.f32 %v2822, %v2825
    %v2828 = vmul.f32 %v2810, %v2724
    %v2829 = vadd.f32 %v2827, %v2828
    %2831 = vrot.lane.b32.xlu0 %v2829, 124
    %v2832 = vpop.permute.xlu0 %2831
    %v2834 = vrot.slane %v2829, 1
    %v2836 = vsel %vm376, %v2832, %v2834
    %v2838 = vrot.slane %v2836, 1
    %v2840 = vsel %vm813, %v2836, %v2838
    %2842 = vrot.lane.b32.xlu0 %v2188, 112
    %v2843 = vpop.permute.xlu0 %2842
    %2846 = vrot.lane.b32.xlu0 %v2840, 16
    %v2847 = vpop.permute.xlu0 %2846
    %v2849 = vsel %vm100, %v2843, %v2847
    %v2851 = vlaneseq
    %v2852 = vshrl.u32 %v2851, 7
    %v2853 = vsub.s32 0, %v2852
    %v2854 = vrot.slane %v62, %v2853
    %v2857 = vsel %vm103, %v2849, 0
    %2859 = vmatprep.subr.mxu0 0.0
    %2860 = vmatpush1.msra.mxu0 %v59
    %2861 = vmatprep.subr.mxu0 0.0
    %2862 = vmatpush1.msra.mxu0 %v60
    %2863 = vmatprep.subr.mxu0 0.0
    %2864 = vmatpush1.msra.mxu0 %v61
    %2865 = vmatprep.subr.mxu0 0.0
    %2866 = vmatpush1.msra.mxu0 0.0
    %2867 = vmatprep.subr.mxu0 0.0
    %2868 = vmatpush1.msra.mxu0 0.0
    %2869 = vmatprep.subr.mxu0 0.0
    %2870 = vmatpush1.msra.mxu0 0.0
    %2871 = vmatprep.subr.mxu0 0.0
    %2872 = vmatpush1.msra.mxu0 0.0
    %2873 = vmatprep.subr.mxu0 0.0
    %2874 = vmatpush1.msra.mxu0 0.0
    %2875 = vmatprep.subr.mxu0 0.0
    %2876 = vmatpush1.msra.mxu0 0.0
    %2877 = vmatprep.subr.mxu0 0.0
    %2878 = vmatpush1.msra.mxu0 0.0
    %2879 = vmatprep.subr.mxu0 0.0
    %2880 = vmatpush1.msra.mxu0 0.0
    %2881 = vmatprep.subr.mxu0 0.0
    %2882 = vmatpush1.msra.mxu0 0.0
    %2883 = vmatprep.subr.mxu0 0.0
    %2884 = vmatpush1.msra.mxu0 0.0
    %2885 = vmatprep.subr.mxu0 0.0
    %2886 = vmatpush1.msra.mxu0 0.0
    %2887 = vmatprep.subr.mxu0 0.0
    %2888 = vmatpush1.msra.mxu0 0.0
    %2889 = vmatprep.subr.mxu0 0.0
    %2890 = vmatpush1.msra.mxu0 0.0
    %2891 = vmatprep.subr.mxu0 0.0
    %2892 = vmatpush1.msra.mxu0 0.0
    %2893 = vmatprep.subr.mxu0 0.0
    %2894 = vmatpush1.msra.mxu0 0.0
    %2895 = vmatprep.subr.mxu0 0.0
    %2896 = vmatpush1.msra.mxu0 0.0
    %2897 = vmatprep.subr.mxu0 0.0
    %2898 = vmatpush1.msra.mxu0 0.0
    %2899 = vmatprep.subr.mxu0 0.0
    %2900 = vmatpush1.msra.mxu0 0.0
    %2901 = vmatprep.subr.mxu0 0.0
    %2902 = vmatpush1.msra.mxu0 0.0
    %2903 = vmatprep.subr.mxu0 0.0
    %2904 = vmatpush1.msra.mxu0 0.0
    %2905 = vmatprep.subr.mxu0 0.0
    %2906 = vmatpush1.msra.mxu0 0.0
    %2907 = vmatprep.subr.mxu0 0.0
    %2908 = vmatpush1.msra.mxu0 0.0
    %2909 = vmatprep.subr.mxu0 0.0
    %2910 = vmatpush1.msra.mxu0 0.0
    %2911 = vmatprep.subr.mxu0 0.0
    %2912 = vmatpush1.msra.mxu0 0.0
    %2913 = vmatprep.subr.mxu0 0.0
    %2914 = vmatpush1.msra.mxu0 0.0
    %2915 = vmatprep.subr.mxu0 0.0
    %2916 = vmatpush1.msra.mxu0 0.0
    %2917 = vmatprep.subr.mxu0 0.0
    %2918 = vmatpush1.msra.mxu0 0.0
    %2919 = vmatprep.subr.mxu0 0.0
    %2920 = vmatpush1.msra.mxu0 0.0
    %2921 = vmatprep.subr.mxu0 0.0
    %2922 = vmatpush1.msra.mxu0 0.0
    %2923 = vmatprep.mubr.f32.mxu0 0.0
    %2924 = vmatmul.mubr.f32.gmra.mrb[0].mxu0 %v2857
    %v2925 = vpop.f32.mrb[0].mxu0
    %v2926 = vadd.f32 %v2854, %v2925
    %v2927 = vpop.f32.mrb[0].mxu0
    %2928 = vdwg.mxu0
    %v2930 = vrot.slane %v807, 7
    %v2932 = vsel %vm813, %v450, %v2930
    %v2933 = vadd.f32 %v2926, %v2932
    %v2934 = vxor.u32 %v2933, 2147483648
    %v2935 = vmul.f32 %v2934, 1.442695
    %v2936 = vpow.pop %v2935
    %v2937 = vadd.f32 %v2936, 1.0
    %v2938 = vrcp.pop %v2937
    %v2939 = vmul.f32 1.0, %v2938
    %vm2940 = vcmask 58368
    %2941 = vst.msk [vmem:[#allocation2] sm:$0x3] %vm2940, %v2939
    // Predicated region
    $region58: #{tpu_custom_call.1} parent=1 // pred_check
      _
    $region59: #{tpu_custom_call.1} parent=1 // pred_check_branch
      %2943 = sbr.rel (0) target = $region61
    $region60: #{tpu_custom_call.1} parent=1 // pred_region
      %s2945 = ssub.s32 32, 32
      %2946 = vsyncadd [#allocation3], %s2945
      %s2948 = sshll.u32 [#allocation2], 4
      %s2949 = int_to_ptr.vmem [resolvable:$true] %s2948
      %2951 = dma.vmem_to_hbm [thread:$0]  %s2949, 32, %s14, [#allocation3]
    $region61: #{tpu_custom_call.1} parent=1 // pred_fallthru
      _
    // Predicated region
    $region62: #{tpu_custom_call.1} parent=1 // pred_check
      _
    $region63: #{tpu_custom_call.1} parent=1 // pred_check_branch
      %2953 = sbr.rel (0) target = $region65
    $region64: #{tpu_custom_call.1} parent=1 // pred_region
      %2954 = dma.done [#allocation3], 32
    $region65: #{tpu_custom_call.1} parent=1 // pred_fallthru
      _
    %2955 = vsyncpa [#allocation3], 1

</llo_original>
